<compile_context>
chip_gen: v6e
topology: v6e:2x2x1
jax: 0.10.0
libtpu: 0.0.40
codegen_flags: <defaults>
</compile_context>

<pallas_src>
import math
import functools

import jax
import jax.numpy as jnp
import numpy as np
from jax.experimental import pallas as pl
from jax.experimental.pallas import tpu as pltpu


# ----------------------------------------------------------------------------
# helpers (pure jnp — used both inside the kernel and in the reference)
# ----------------------------------------------------------------------------
def _layernorm(x, w, b, eps=1e-5):
    mu = jnp.mean(x, axis=-1, keepdims=True)
    var = jnp.mean((x - mu) ** 2, axis=-1, keepdims=True)
    return (x - mu) * jax.lax.rsqrt(var + eps) * w + b


def build_pe(max_len, d_model):
    pos = jnp.arange(max_len, dtype=jnp.float32)[:, None]
    div = jnp.exp(jnp.arange(0, d_model, 2, dtype=jnp.float32)
                  * (-math.log(10000.0) / d_model))
    pe = jnp.zeros((max_len, d_model), dtype=jnp.float32)
    pe = pe.at[:, 0::2].set(jnp.sin(pos * div))
    pe = pe.at[:, 1::2].set(jnp.cos(pos * div))
    return pe


# ----------------------------------------------------------------------------
# fused kernel: embed + PE -> N encoder layers -> (mean + last) -> MLP head
# (one grid step processes a batch tile of Bt elements; weights stay resident)
# ----------------------------------------------------------------------------
def _encoder_forward_kernel(x_ref, pe_ref,
                            emb_wT_ref, emb_b_ref,
                            wqkvT_ref, bqkv_ref, woT_ref, bo_ref,
                            ln1w_ref, ln1b_ref, w1T_ref, b1_ref,
                            w2T_ref, b2_ref, ln2w_ref, ln2b_ref,
                            mw1T_ref, mb1_ref, mw2T_ref, mb2_ref,
                            o_ref, *, Bt, S, H, num_layers, d_model):
    d = d_model
    hd = d // H
    scale = 1.0 / math.sqrt(hd)

    # ---- embedding + sqrt(d) scale + positional encoding ---------------------
    x = x_ref[...]                                                   # (Bt*S, F)
    h = (jnp.dot(x, emb_wT_ref[...], preferred_element_type=jnp.float32)
         + emb_b_ref[...]) * math.sqrt(d)                            # (Bt*S, d)
    # PE row b is added to every timestep of batch element b (PyTorch quirk);
    # broadcast in-kernel from (Bt, d) instead of DMA-ing an (Bt*S, d) copy.
    h = (h.reshape(Bt, S, d) + pe_ref[...][:, None, :]).reshape(Bt * S, d)

    # ---- encoder layers (post-norm, ReLU FFN); weights VMEM-resident ---------
    # TODO(synk): switch this static unroll to lax.fori_loop with dynamic first-axis
    # indexing into the stacked weight refs once num_layers grows beyond ~4.
    for l in range(num_layers):
        qkv = (jnp.dot(h, wqkvT_ref[l], preferred_element_type=jnp.float32)
               + bqkv_ref[l])                                        # (Bt*S, 3d)

        # Head split: O(H) static lane slices + leading-dim reshapes + one concat.
        # Constant op count in batch size (no per-(b,h) Python unrolling).
        def heads(off):
            return jnp.concatenate(
                [qkv[:, off + i * hd: off + (i + 1) * hd].reshape(Bt, S, hd)
                 for i in range(H)], axis=0)                         # (H*Bt, S, hd)

        qh = heads(0) * scale
        kh = heads(d)
        vh = heads(2 * d)

        # Single batched attention over the (head, batch) leading axis.
        s = jnp.einsum('nqd,nkd->nqk', qh, kh,
                       preferred_element_type=jnp.float32)           # (H*Bt, S, S)
        s = s - jnp.max(s, axis=-1, keepdims=True)
        p = jnp.exp(s)
        p = p * pl.reciprocal(jnp.sum(p, axis=-1, keepdims=True), approx=True)
        oh = jnp.einsum('nqk,nkd->nqd', p, vh,
                        preferred_element_type=jnp.float32)          # (H*Bt, S, hd)

        # Head merge: H leading-dim slices + one lane concat + leading reshape.
        attn = jnp.concatenate([oh[i * Bt:(i + 1) * Bt] for i in range(H)],
                               axis=-1).reshape(Bt * S, d)           # (Bt*S, d)
        attn = (jnp.dot(attn, woT_ref[l], preferred_element_type=jnp.float32)
                + bo_ref[l])

        h = _layernorm(h + attn, ln1w_ref[l], ln1b_ref[l])           # norm1

        ff = jnp.maximum(
            jnp.dot(h, w1T_ref[l], preferred_element_type=jnp.float32) + b1_ref[l],
            0.0)
        ff = jnp.dot(ff, w2T_ref[l], preferred_element_type=jnp.float32) + b2_ref[l]
        h = _layernorm(h + ff, ln2w_ref[l], ln2b_ref[l])              # norm2

    # ---- epilogue: mean over seq + last timestep, then 2-layer MLP ------------
    h3 = h.reshape(Bt, S, d)
    r = jnp.sum(h3, axis=1) * (1.0 / S) + h3[:, S - 1, :]            # (Bt, d)

    t = jnp.maximum(
        jnp.dot(r, mw1T_ref[...], preferred_element_type=jnp.float32) + mb1_ref[...],
        0.0)
    # TODO(synk): for production batch sizes emit a lane-dense (1, Bt) output slab
    # instead of (Bt, 1) to avoid masked vst.msk partial stores.
    o_ref[...] = (jnp.dot(t, mw2T_ref[...], preferred_element_type=jnp.float32)
                  + mb2_ref[...])


# ----------------------------------------------------------------------------
# host wrapper: batch grid + resident weights
# ----------------------------------------------------------------------------
def _pick_batch_tile(B, S):
    """Batch tile so one grid step holds >=256 rows of the flattened (B*S, d) stream
    (fills a 256x256 MXU on v6e/v7x; >=128 already suffices on v5e).  Falls back to
    the full batch when it is small or does not tile into 8-aligned pieces."""
    target_rows = 256
    bt = max(1, target_rows // max(S, 1))
    bt = (bt // 8) * 8                       # second-minor block dims: 8-aligned
    if bt <= 0 or bt >= B or B % bt != 0:
        return B
    return bt


def _vmem_limit_bytes(operands, Bt, S, d, dff, H):
    """Derive the scoped-VMEM request from the real resident set (weights + the
    double-buffered activation tiles + in-kernel temporaries), with headroom,
    clamped so it is valid on every generation (v7x scoped default = 32 MiB)."""
    weight_bytes = sum(int(np.prod(a.shape)) * a.dtype.itemsize for a in operands)
    rows = Bt * S
    act_bytes = 4 * rows * (3 * d + 2 * dff + 8 * d)      # qkv / ffn / residual temps
    score_bytes = 4 * H * Bt * S * S * 3                  # scores / probs / head out
    est = 2 * weight_bytes + 2 * act_bytes + score_bytes + (1 << 20)
    return int(min(max(4 * est, 16 << 20), 32 << 20))


def forward_pallas(x, params, cfg, *, batch_tile=None):
    B, S, F = x.shape
    d, H, nl, dff = cfg["d_model"], cfg["num_heads"], cfg["num_layers"], cfg["dff"]

    Bt = batch_tile if batch_tile is not None else _pick_batch_tile(B, S)
    assert B % Bt == 0
    nb = B // Bt

    # Host-side layout-only prep (no model math): flatten batch*seq, take the first
    # B PE rows as (B, d) (broadcast in-kernel), pre-transpose every weight so the
    # kernel never transposes, and stack per-layer weights along a leading axis.
    x_flat = x.reshape(B * S, F)
    pe_b = params["pe"][:B, :]                                       # (B, d)

    layers = params["layers"]
    stack = lambda key, f: jnp.stack([f(Lp[key]) for Lp in layers], axis=0)
    tr = lambda a: a.T
    row = lambda a: a.reshape(1, -1)

    weights = (
        params["emb_w"].T, params["emb_b"].reshape(1, -1),
        stack("wqkv", tr), stack("bqkv", row),
        stack("wo", tr), stack("bo", row),
        stack("ln1_w", row), stack("ln1_b", row),
        stack("w1", tr), stack("b1", row),
        stack("w2", tr), stack("b2", row),
        stack("ln2_w", row), stack("ln2_b", row),
        params["mlp_w1"].T, params["mlp_b1"].reshape(1, -1),
        params["mlp_w2"].T, params["mlp_b2"].reshape(1, -1),
    )

    def resident(arr):
        # Constant index_map -> weight DMA'd once, stays VMEM-resident across steps.
        zeros = (0,) * arr.ndim
        return pl.BlockSpec(arr.shape, lambda i, _z=zeros: _z)

    in_specs = ([pl.BlockSpec((Bt * S, F), lambda i: (i, 0)),        # x tile
                 pl.BlockSpec((Bt, d), lambda i: (i, 0))]            # pe tile
                + [resident(w) for w in weights])
    out_specs = pl.BlockSpec((Bt, 1), lambda i: (i, 0))

    kern = functools.partial(_encoder_forward_kernel, Bt=Bt, S=S, H=H,
                             num_layers=nl, d_model=d)

    return pl.pallas_call(
        kern,
        out_shape=jax.ShapeDtypeStruct((B, 1), jnp.float32),
        grid_spec=pltpu.PrefetchScalarGridSpec(
            num_scalar_prefetch=0, grid=(nb,),
            in_specs=in_specs, out_specs=out_specs),
        compiler_params=pltpu.CompilerParams(
            dimension_semantics=("parallel",),
            vmem_limit_bytes=_vmem_limit_bytes((x_flat, pe_b) + weights,
                                               Bt, S, d, dff, H)),
    )(x_flat, pe_b, *weights)


# ----------------------------------------------------------------------------
# pure-JAX reference
# ----------------------------------------------------------------------------
def ref_forward(x, params, cfg):
    B, S, F = x.shape
    d, H = cfg["d_model"], cfg["num_heads"]
    hd = d // H
    h = (x @ params["emb_w"].T + params["emb_b"]) * math.sqrt(d)
    h = h + params["pe"][:B][:, None, :]
    for L in params["layers"]:
        qkv = h @ L["wqkv"].T + L["bqkv"]
        q, k, v = jnp.split(qkv, 3, axis=-1)
        to_heads = lambda t: t.reshape(B, S, H, hd).transpose(0, 2, 1, 3)
        q, k, v = to_heads(q), to_heads(k), to_heads(v)
        s = jnp.einsum("bhqd,bhkd->bhqk", q, k) / math.sqrt(hd)
        p = jax.nn.softmax(s, axis=-1)
        o = jnp.einsum("bhqk,bhkd->bhqd", p, v).transpose(0, 2, 1, 3).reshape(B, S, d)
        attn = o @ L["wo"].T + L["bo"]
        h = _layernorm(h + attn, L["ln1_w"], L["ln1_b"])
        ff = jnp.maximum(h @ L["w1"].T + L["b1"], 0.0) @ L["w2"].T + L["b2"]
        h = _layernorm(h + ff, L["ln2_w"], L["ln2_b"])
    r = jnp.mean(h, axis=1) + h[:, -1, :]
    t = jnp.maximum(r @ params["mlp_w1"].T + params["mlp_b1"], 0.0)
    return t @ params["mlp_w2"].T + params["mlp_b2"]


# ----------------------------------------------------------------------------
if __name__ == "__main__":
    cfg = dict(num_features=4, d_model=32, num_layers=2, num_heads=4,
               dff=64, mlp_size=32)
    B, S = 2, 8
    d, F, dff, m = cfg["d_model"], cfg["num_features"], cfg["dff"], cfg["mlp_size"]

    kit = iter(jax.random.split(jax.random.PRNGKey(0), 64))

    def nrm(shape, scale=0.1):
        return scale * jax.random.normal(next(kit), shape, dtype=jnp.float32)

    params = {
        "emb_w": nrm((d, F)), "emb_b": nrm((d,)),
        "pe": build_pe(5000, d),
        "mlp_w1": nrm((m, d)), "mlp_b1": nrm((m,)),
        "mlp_w2": nrm((1, m)), "mlp_b2": nrm((1,)),
        "layers": [],
    }
    for _ in range(cfg["num_layers"]):
        params["layers"].append(dict(
            wqkv=nrm((3 * d, d)), bqkv=nrm((3 * d,)),
            wo=nrm((d, d)), bo=nrm((d,)),
            ln1_w=jnp.ones((d,), jnp.float32), ln1_b=jnp.zeros((d,), jnp.float32),
            w1=nrm((dff, d)), b1=nrm((dff,)),
            w2=nrm((d, dff)), b2=nrm((d,)),
            ln2_w=jnp.ones((d,), jnp.float32), ln2_b=jnp.zeros((d,), jnp.float32),
        ))

    x = jax.random.normal(next(kit), (B, S, F), dtype=jnp.float32)

    out = jax.block_until_ready(forward_pallas(x, params, cfg))
    ref = ref_forward(x, params, cfg)
    np.testing.assert_allclose(np.asarray(out), np.asarray(ref), rtol=2e-3, atol=2e-3)
    print("KERNEL_OK")
</pallas_src>

<mosaic_0001>
module attributes {stable_mosaic.version = 11 : i64} {
  func.func @_encoder_forward_kernel(%arg0: i32, %arg1: memref<16x4xf32, #tpu.memory_space<vmem>>, %arg2: memref<2x32xf32, #tpu.memory_space<vmem>>, %arg3: memref<4x32xf32, #tpu.memory_space<vmem>>, %arg4: memref<1x32xf32, #tpu.memory_space<vmem>>, %arg5: memref<2x32x96xf32, #tpu.memory_space<vmem>>, %arg6: memref<2x1x96xf32, #tpu.memory_space<vmem>>, %arg7: memref<2x32x32xf32, #tpu.memory_space<vmem>>, %arg8: memref<2x1x32xf32, #tpu.memory_space<vmem>>, %arg9: memref<2x1x32xf32, #tpu.memory_space<vmem>>, %arg10: memref<2x1x32xf32, #tpu.memory_space<vmem>>, %arg11: memref<2x32x64xf32, #tpu.memory_space<vmem>>, %arg12: memref<2x1x64xf32, #tpu.memory_space<vmem>>, %arg13: memref<2x64x32xf32, #tpu.memory_space<vmem>>, %arg14: memref<2x1x32xf32, #tpu.memory_space<vmem>>, %arg15: memref<2x1x32xf32, #tpu.memory_space<vmem>>, %arg16: memref<2x1x32xf32, #tpu.memory_space<vmem>>, %arg17: memref<32x32xf32, #tpu.memory_space<vmem>>, %arg18: memref<1x32xf32, #tpu.memory_space<vmem>>, %arg19: memref<32x1xf32, #tpu.memory_space<vmem>>, %arg20: memref<1x1xf32, #tpu.memory_space<vmem>>, %arg21: memref<2x1xf32, #tpu.memory_space<vmem>>) attributes {dimension_semantics = [#tpu.dimension_semantics<parallel>], iteration_bounds = array<i64: 1>, scalar_prefetch = 0 : i64, scratch_operands = 0 : i64, tpu.core_type = #tpu.core_type<tc>, window_params = [{transform_indices = @transform_0, window_bounds = array<i64: 16, 4>}, {transform_indices = @transform_1, window_bounds = array<i64: 2, 32>}, {pipeline_mode = #tpu.pipeline_mode<synchronous>, transform_indices = @transform_2, window_bounds = array<i64: 4, 32>}, {pipeline_mode = #tpu.pipeline_mode<synchronous>, transform_indices = @transform_3, window_bounds = array<i64: 1, 32>}, {pipeline_mode = #tpu.pipeline_mode<synchronous>, transform_indices = @transform_4, window_bounds = array<i64: 2, 32, 96>}, {pipeline_mode = #tpu.pipeline_mode<synchronous>, transform_indices = @transform_5, window_bounds = array<i64: 2, 1, 96>}, {pipeline_mode = #tpu.pipeline_mode<synchronous>, transform_indices = @transform_6, window_bounds = array<i64: 2, 32, 32>}, {pipeline_mode = #tpu.pipeline_mode<synchronous>, transform_indices = @transform_7, window_bounds = array<i64: 2, 1, 32>}, {pipeline_mode = #tpu.pipeline_mode<synchronous>, transform_indices = @transform_8, window_bounds = array<i64: 2, 1, 32>}, {pipeline_mode = #tpu.pipeline_mode<synchronous>, transform_indices = @transform_9, window_bounds = array<i64: 2, 1, 32>}, {pipeline_mode = #tpu.pipeline_mode<synchronous>, transform_indices = @transform_10, window_bounds = array<i64: 2, 32, 64>}, {pipeline_mode = #tpu.pipeline_mode<synchronous>, transform_indices = @transform_11, window_bounds = array<i64: 2, 1, 64>}, {pipeline_mode = #tpu.pipeline_mode<synchronous>, transform_indices = @transform_12, window_bounds = array<i64: 2, 64, 32>}, {pipeline_mode = #tpu.pipeline_mode<synchronous>, transform_indices = @transform_13, window_bounds = array<i64: 2, 1, 32>}, {pipeline_mode = #tpu.pipeline_mode<synchronous>, transform_indices = @transform_14, window_bounds = array<i64: 2, 1, 32>}, {pipeline_mode = #tpu.pipeline_mode<synchronous>, transform_indices = @transform_15, window_bounds = array<i64: 2, 1, 32>}, {pipeline_mode = #tpu.pipeline_mode<synchronous>, transform_indices = @transform_16, window_bounds = array<i64: 32, 32>}, {pipeline_mode = #tpu.pipeline_mode<synchronous>, transform_indices = @transform_17, window_bounds = array<i64: 1, 32>}, {pipeline_mode = #tpu.pipeline_mode<synchronous>, transform_indices = @transform_18, window_bounds = array<i64: 32, 1>}, {pipeline_mode = #tpu.pipeline_mode<synchronous>, transform_indices = @transform_19, window_bounds = array<i64: 1, 1>}, {transform_indices = @transform_20, window_bounds = array<i64: 2, 1>}]} {
    %c0 = arith.constant 0 : index
    %c0_0 = arith.constant 0 : index
    %0 = vector.load %arg1[%c0, %c0_0] : memref<16x4xf32, #tpu.memory_space<vmem>>, vector<16x4xf32>
    %c0_1 = arith.constant 0 : index
    %c0_2 = arith.constant 0 : index
    %1 = vector.load %arg3[%c0_1, %c0_2] : memref<4x32xf32, #tpu.memory_space<vmem>>, vector<4x32xf32>
    %cst = arith.constant dense<0.000000e+00> : vector<16x32xf32>
    %2 = tpu.matmul %0, %1, %cst {dimension_numbers = #tpu.dot_dimension_numbers<[1], [0], [0], [1], [0, 0, 1, 1], [], []>} : vector<16x4xf32>, vector<4x32xf32>, vector<16x32xf32> -> vector<16x32xf32>
    %c0_3 = arith.constant 0 : index
    %c0_4 = arith.constant 0 : index
    %3 = vector.load %arg4[%c0_3, %c0_4] : memref<1x32xf32, #tpu.memory_space<vmem>>, vector<1x32xf32>
    %4 = vector.broadcast %3 : vector<1x32xf32> to vector<16x32xf32>
    %5 = arith.addf %2, %4 : vector<16x32xf32>
    %cst_5 = arith.constant 5.65685415 : f32
    %6 = vector.broadcast %cst_5 : f32 to vector<16x32xf32>
    %7 = arith.mulf %5, %6 : vector<16x32xf32>
    %8 = vector.shape_cast %7 : vector<16x32xf32> to vector<2x8x32xf32>
    %c0_6 = arith.constant 0 : index
    %c0_7 = arith.constant 0 : index
    %9 = vector.load %arg2[%c0_6, %c0_7] : memref<2x32xf32, #tpu.memory_space<vmem>>, vector<2x32xf32>
    %10 = vector.shape_cast %9 : vector<2x32xf32> to vector<2x1x32xf32>
    %11 = vector.broadcast %10 : vector<2x1x32xf32> to vector<2x8x32xf32>
    %12 = arith.addf %8, %11 : vector<2x8x32xf32>
    %13 = vector.shape_cast %12 : vector<2x8x32xf32> to vector<16x32xf32>
    %c0_8 = arith.constant 0 : index
    %c0_9 = arith.constant 0 : index
    %c0_10 = arith.constant 0 : index
    %14 = vector.load %arg5[%c0_8, %c0_9, %c0_10] : memref<2x32x96xf32, #tpu.memory_space<vmem>>, vector<1x32x96xf32>
    %15 = vector.shape_cast %14 : vector<1x32x96xf32> to vector<32x96xf32>
    %cst_11 = arith.constant dense<0.000000e+00> : vector<16x96xf32>
    %16 = tpu.matmul %13, %15, %cst_11 {dimension_numbers = #tpu.dot_dimension_numbers<[1], [0], [0], [1], [0, 0, 1, 1], [], []>} : vector<16x32xf32>, vector<32x96xf32>, vector<16x96xf32> -> vector<16x96xf32>
    %c0_12 = arith.constant 0 : index
    %c0_13 = arith.constant 0 : index
    %c0_14 = arith.constant 0 : index
    %17 = vector.load %arg6[%c0_12, %c0_13, %c0_14] : memref<2x1x96xf32, #tpu.memory_space<vmem>>, vector<1x1x96xf32>
    %18 = vector.shape_cast %17 : vector<1x1x96xf32> to vector<1x96xf32>
    %19 = vector.broadcast %18 : vector<1x96xf32> to vector<16x96xf32>
    %20 = arith.addf %16, %19 : vector<16x96xf32>
    %21 = vector.extract_strided_slice %20 {offsets = [0, 0], sizes = [16, 8], strides = [1, 1]} : vector<16x96xf32> to vector<16x8xf32>
    %22 = vector.shape_cast %21 : vector<16x8xf32> to vector<2x8x8xf32>
    %23 = vector.extract_strided_slice %20 {offsets = [0, 8], sizes = [16, 8], strides = [1, 1]} : vector<16x96xf32> to vector<16x8xf32>
    %24 = vector.shape_cast %23 : vector<16x8xf32> to vector<2x8x8xf32>
    %25 = vector.extract_strided_slice %20 {offsets = [0, 16], sizes = [16, 8], strides = [1, 1]} : vector<16x96xf32> to vector<16x8xf32>
    %26 = vector.shape_cast %25 : vector<16x8xf32> to vector<2x8x8xf32>
    %27 = vector.extract_strided_slice %20 {offsets = [0, 24], sizes = [16, 8], strides = [1, 1]} : vector<16x96xf32> to vector<16x8xf32>
    %28 = vector.shape_cast %27 : vector<16x8xf32> to vector<2x8x8xf32>
    %29 = tpu.concatenate %22, %24, %26, %28 in 0 : vector<2x8x8xf32>, vector<2x8x8xf32>, vector<2x8x8xf32>, vector<2x8x8xf32> -> vector<8x8x8xf32>
    %cst_15 = arith.constant 0.353553385 : f32
    %30 = vector.broadcast %cst_15 : f32 to vector<8x8x8xf32>
    %31 = arith.mulf %29, %30 : vector<8x8x8xf32>
    %32 = vector.extract_strided_slice %20 {offsets = [0, 32], sizes = [16, 8], strides = [1, 1]} : vector<16x96xf32> to vector<16x8xf32>
    %33 = vector.shape_cast %32 : vector<16x8xf32> to vector<2x8x8xf32>
    %34 = vector.extract_strided_slice %20 {offsets = [0, 40], sizes = [16, 8], strides = [1, 1]} : vector<16x96xf32> to vector<16x8xf32>
    %35 = vector.shape_cast %34 : vector<16x8xf32> to vector<2x8x8xf32>
    %36 = vector.extract_strided_slice %20 {offsets = [0, 48], sizes = [16, 8], strides = [1, 1]} : vector<16x96xf32> to vector<16x8xf32>
    %37 = vector.shape_cast %36 : vector<16x8xf32> to vector<2x8x8xf32>
    %38 = vector.extract_strided_slice %20 {offsets = [0, 56], sizes = [16, 8], strides = [1, 1]} : vector<16x96xf32> to vector<16x8xf32>
    %39 = vector.shape_cast %38 : vector<16x8xf32> to vector<2x8x8xf32>
    %40 = tpu.concatenate %33, %35, %37, %39 in 0 : vector<2x8x8xf32>, vector<2x8x8xf32>, vector<2x8x8xf32>, vector<2x8x8xf32> -> vector<8x8x8xf32>
    %41 = vector.extract_strided_slice %20 {offsets = [0, 64], sizes = [16, 8], strides = [1, 1]} : vector<16x96xf32> to vector<16x8xf32>
    %42 = vector.shape_cast %41 : vector<16x8xf32> to vector<2x8x8xf32>
    %43 = vector.extract_strided_slice %20 {offsets = [0, 72], sizes = [16, 8], strides = [1, 1]} : vector<16x96xf32> to vector<16x8xf32>
    %44 = vector.shape_cast %43 : vector<16x8xf32> to vector<2x8x8xf32>
    %45 = vector.extract_strided_slice %20 {offsets = [0, 80], sizes = [16, 8], strides = [1, 1]} : vector<16x96xf32> to vector<16x8xf32>
    %46 = vector.shape_cast %45 : vector<16x8xf32> to vector<2x8x8xf32>
    %47 = vector.extract_strided_slice %20 {offsets = [0, 88], sizes = [16, 8], strides = [1, 1]} : vector<16x96xf32> to vector<16x8xf32>
    %48 = vector.shape_cast %47 : vector<16x8xf32> to vector<2x8x8xf32>
    %49 = tpu.concatenate %42, %44, %46, %48 in 0 : vector<2x8x8xf32>, vector<2x8x8xf32>, vector<2x8x8xf32>, vector<2x8x8xf32> -> vector<8x8x8xf32>
    "tpu.trace_start"() <{level = 10 : i32, message = "nqd,nkd->nqk"}> : () -> ()
    %cst_16 = arith.constant dense<0.000000e+00> : vector<8x8x8xf32>
    %50 = tpu.matmul %31, %40, %cst_16 {dimension_numbers = #tpu.dot_dimension_numbers<[2], [2], [1], [1], [0, 0, 0, 1, 1, 1], [0], [0]>} : vector<8x8x8xf32>, vector<8x8x8xf32>, vector<8x8x8xf32> -> vector<8x8x8xf32>
    "tpu.trace_stop"() : () -> ()
    %cst_17 = arith.constant dense<0xFF800000> : vector<8x8xf32>
    %51 = vector.multi_reduction <maximumf>, %50, %cst_17 [2] : vector<8x8x8xf32> to vector<8x8xf32>
    %52 = vector.shape_cast %51 : vector<8x8xf32> to vector<8x8x1xf32>
    %53 = vector.broadcast %52 : vector<8x8x1xf32> to vector<8x8x8xf32>
    %54 = arith.subf %50, %53 : vector<8x8x8xf32>
    %55 = math.exp %54 : vector<8x8x8xf32>
    %cst_18 = arith.constant dense<0.000000e+00> : vector<8x8xf32>
    %56 = vector.multi_reduction <add>, %55, %cst_18 [2] : vector<8x8x8xf32> to vector<8x8xf32>
    %57 = vector.shape_cast %56 : vector<8x8xf32> to vector<8x8x1xf32>
    %58 = tpu.reciprocal %57 {approx = true} : vector<8x8x1xf32> -> vector<8x8x1xf32>
    %59 = vector.broadcast %58 : vector<8x8x1xf32> to vector<8x8x8xf32>
    %60 = arith.mulf %55, %59 : vector<8x8x8xf32>
    "tpu.trace_start"() <{level = 10 : i32, message = "nqk,nkd->nqd"}> : () -> ()
    %cst_19 = arith.constant dense<0.000000e+00> : vector<8x8x8xf32>
    %61 = tpu.matmul %60, %49, %cst_19 {dimension_numbers = #tpu.dot_dimension_numbers<[2], [1], [1], [2], [0, 0, 0, 1, 1, 2], [0], [0]>} : vector<8x8x8xf32>, vector<8x8x8xf32>, vector<8x8x8xf32> -> vector<8x8x8xf32>
    "tpu.trace_stop"() : () -> ()
    %62 = vector.extract_strided_slice %61 {offsets = [0, 0, 0], sizes = [2, 8, 8], strides = [1, 1, 1]} : vector<8x8x8xf32> to vector<2x8x8xf32>
    %63 = vector.extract_strided_slice %61 {offsets = [2, 0, 0], sizes = [2, 8, 8], strides = [1, 1, 1]} : vector<8x8x8xf32> to vector<2x8x8xf32>
    %64 = vector.extract_strided_slice %61 {offsets = [4, 0, 0], sizes = [2, 8, 8], strides = [1, 1, 1]} : vector<8x8x8xf32> to vector<2x8x8xf32>
    %65 = vector.extract_strided_slice %61 {offsets = [6, 0, 0], sizes = [2, 8, 8], strides = [1, 1, 1]} : vector<8x8x8xf32> to vector<2x8x8xf32>
    %66 = tpu.concatenate %62, %63, %64, %65 in 2 : vector<2x8x8xf32>, vector<2x8x8xf32>, vector<2x8x8xf32>, vector<2x8x8xf32> -> vector<2x8x32xf32>
    %67 = vector.shape_cast %66 : vector<2x8x32xf32> to vector<16x32xf32>
    %c0_20 = arith.constant 0 : index
    %c0_21 = arith.constant 0 : index
    %c0_22 = arith.constant 0 : index
    %68 = vector.load %arg7[%c0_20, %c0_21, %c0_22] : memref<2x32x32xf32, #tpu.memory_space<vmem>>, vector<1x32x32xf32>
    %69 = vector.shape_cast %68 : vector<1x32x32xf32> to vector<32x32xf32>
    %cst_23 = arith.constant dense<0.000000e+00> : vector<16x32xf32>
    %70 = tpu.matmul %67, %69, %cst_23 {dimension_numbers = #tpu.dot_dimension_numbers<[1], [0], [0], [1], [0, 0, 1, 1], [], []>} : vector<16x32xf32>, vector<32x32xf32>, vector<16x32xf32> -> vector<16x32xf32>
    %c0_24 = arith.constant 0 : index
    %c0_25 = arith.constant 0 : index
    %c0_26 = arith.constant 0 : index
    %71 = vector.load %arg8[%c0_24, %c0_25, %c0_26] : memref<2x1x32xf32, #tpu.memory_space<vmem>>, vector<1x1x32xf32>
    %72 = vector.shape_cast %71 : vector<1x1x32xf32> to vector<1x32xf32>
    %73 = vector.broadcast %72 : vector<1x32xf32> to vector<16x32xf32>
    %74 = arith.addf %70, %73 : vector<16x32xf32>
    %75 = arith.addf %13, %74 : vector<16x32xf32>
    %c0_27 = arith.constant 0 : index
    %c0_28 = arith.constant 0 : index
    %c0_29 = arith.constant 0 : index
    %76 = vector.load %arg9[%c0_27, %c0_28, %c0_29] : memref<2x1x32xf32, #tpu.memory_space<vmem>>, vector<1x1x32xf32>
    %77 = vector.shape_cast %76 : vector<1x1x32xf32> to vector<1x32xf32>
    %c0_30 = arith.constant 0 : index
    %c0_31 = arith.constant 0 : index
    %c0_32 = arith.constant 0 : index
    %78 = vector.load %arg10[%c0_30, %c0_31, %c0_32] : memref<2x1x32xf32, #tpu.memory_space<vmem>>, vector<1x1x32xf32>
    %79 = vector.shape_cast %78 : vector<1x1x32xf32> to vector<1x32xf32>
    %cst_33 = arith.constant dense<0.000000e+00> : vector<16xf32>
    %80 = vector.multi_reduction <add>, %75, %cst_33 [1] : vector<16x32xf32> to vector<16xf32>
    %81 = vector.shape_cast %80 : vector<16xf32> to vector<16x1xf32>
    %cst_34 = arith.constant 3.200000e+01 : f32
    %82 = vector.broadcast %cst_34 : f32 to vector<16x1xf32>
    %83 = arith.divf %81, %82 : vector<16x1xf32>
    %84 = vector.broadcast %83 : vector<16x1xf32> to vector<16x32xf32>
    %85 = arith.subf %75, %84 : vector<16x32xf32>
    %86 = arith.mulf %85, %85 : vector<16x32xf32>
    %cst_35 = arith.constant dense<0.000000e+00> : vector<16xf32>
    %87 = vector.multi_reduction <add>, %86, %cst_35 [1] : vector<16x32xf32> to vector<16xf32>
    %88 = vector.shape_cast %87 : vector<16xf32> to vector<16x1xf32>
    %cst_36 = arith.constant 3.200000e+01 : f32
    %89 = vector.broadcast %cst_36 : f32 to vector<16x1xf32>
    %90 = arith.divf %88, %89 : vector<16x1xf32>
    %91 = vector.broadcast %83 : vector<16x1xf32> to vector<16x32xf32>
    %92 = arith.subf %75, %91 : vector<16x32xf32>
    %cst_37 = arith.constant 9.99999974E-6 : f32
    %93 = vector.broadcast %cst_37 : f32 to vector<16x1xf32>
    %94 = arith.addf %90, %93 : vector<16x1xf32>
    %95 = math.rsqrt %94 : vector<16x1xf32>
    %96 = vector.broadcast %95 : vector<16x1xf32> to vector<16x32xf32>
    %97 = arith.mulf %92, %96 : vector<16x32xf32>
    %98 = vector.broadcast %77 : vector<1x32xf32> to vector<16x32xf32>
    %99 = arith.mulf %97, %98 : vector<16x32xf32>
    %100 = vector.broadcast %79 : vector<1x32xf32> to vector<16x32xf32>
    %101 = arith.addf %99, %100 : vector<16x32xf32>
    %c0_38 = arith.constant 0 : index
    %c0_39 = arith.constant 0 : index
    %c0_40 = arith.constant 0 : index
    %102 = vector.load %arg11[%c0_38, %c0_39, %c0_40] : memref<2x32x64xf32, #tpu.memory_space<vmem>>, vector<1x32x64xf32>
    %103 = vector.shape_cast %102 : vector<1x32x64xf32> to vector<32x64xf32>
    %cst_41 = arith.constant dense<0.000000e+00> : vector<16x64xf32>
    %104 = tpu.matmul %101, %103, %cst_41 {dimension_numbers = #tpu.dot_dimension_numbers<[1], [0], [0], [1], [0, 0, 1, 1], [], []>} : vector<16x32xf32>, vector<32x64xf32>, vector<16x64xf32> -> vector<16x64xf32>
    %c0_42 = arith.constant 0 : index
    %c0_43 = arith.constant 0 : index
    %c0_44 = arith.constant 0 : index
    %105 = vector.load %arg12[%c0_42, %c0_43, %c0_44] : memref<2x1x64xf32, #tpu.memory_space<vmem>>, vector<1x1x64xf32>
    %106 = vector.shape_cast %105 : vector<1x1x64xf32> to vector<1x64xf32>
    %107 = vector.broadcast %106 : vector<1x64xf32> to vector<16x64xf32>
    %108 = arith.addf %104, %107 : vector<16x64xf32>
    %cst_45 = arith.constant 0.000000e+00 : f32
    %109 = vector.broadcast %cst_45 : f32 to vector<16x64xf32>
    %110 = arith.maximumf %108, %109 : vector<16x64xf32>
    %c0_46 = arith.constant 0 : index
    %c0_47 = arith.constant 0 : index
    %c0_48 = arith.constant 0 : index
    %111 = vector.load %arg13[%c0_46, %c0_47, %c0_48] : memref<2x64x32xf32, #tpu.memory_space<vmem>>, vector<1x64x32xf32>
    %112 = vector.shape_cast %111 : vector<1x64x32xf32> to vector<64x32xf32>
    %cst_49 = arith.constant dense<0.000000e+00> : vector<16x32xf32>
    %113 = tpu.matmul %110, %112, %cst_49 {dimension_numbers = #tpu.dot_dimension_numbers<[1], [0], [0], [1], [0, 0, 1, 1], [], []>} : vector<16x64xf32>, vector<64x32xf32>, vector<16x32xf32> -> vector<16x32xf32>
    %c0_50 = arith.constant 0 : index
    %c0_51 = arith.constant 0 : index
    %c0_52 = arith.constant 0 : index
    %114 = vector.load %arg14[%c0_50, %c0_51, %c0_52] : memref<2x1x32xf32, #tpu.memory_space<vmem>>, vector<1x1x32xf32>
    %115 = vector.shape_cast %114 : vector<1x1x32xf32> to vector<1x32xf32>
    %116 = vector.broadcast %115 : vector<1x32xf32> to vector<16x32xf32>
    %117 = arith.addf %113, %116 : vector<16x32xf32>
    %118 = arith.addf %101, %117 : vector<16x32xf32>
    %c0_53 = arith.constant 0 : index
    %c0_54 = arith.constant 0 : index
    %c0_55 = arith.constant 0 : index
    %119 = vector.load %arg15[%c0_53, %c0_54, %c0_55] : memref<2x1x32xf32, #tpu.memory_space<vmem>>, vector<1x1x32xf32>
    %120 = vector.shape_cast %119 : vector<1x1x32xf32> to vector<1x32xf32>
    %c0_56 = arith.constant 0 : index
    %c0_57 = arith.constant 0 : index
    %c0_58 = arith.constant 0 : index
    %121 = vector.load %arg16[%c0_56, %c0_57, %c0_58] : memref<2x1x32xf32, #tpu.memory_space<vmem>>, vector<1x1x32xf32>
    %122 = vector.shape_cast %121 : vector<1x1x32xf32> to vector<1x32xf32>
    %cst_59 = arith.constant dense<0.000000e+00> : vector<16xf32>
    %123 = vector.multi_reduction <add>, %118, %cst_59 [1] : vector<16x32xf32> to vector<16xf32>
    %124 = vector.shape_cast %123 : vector<16xf32> to vector<16x1xf32>
    %cst_60 = arith.constant 3.200000e+01 : f32
    %125 = vector.broadcast %cst_60 : f32 to vector<16x1xf32>
    %126 = arith.divf %124, %125 : vector<16x1xf32>
    %127 = vector.broadcast %126 : vector<16x1xf32> to vector<16x32xf32>
    %128 = arith.subf %118, %127 : vector<16x32xf32>
    %129 = arith.mulf %128, %128 : vector<16x32xf32>
    %cst_61 = arith.constant dense<0.000000e+00> : vector<16xf32>
    %130 = vector.multi_reduction <add>, %129, %cst_61 [1] : vector<16x32xf32> to vector<16xf32>
    %131 = vector.shape_cast %130 : vector<16xf32> to vector<16x1xf32>
    %cst_62 = arith.constant 3.200000e+01 : f32
    %132 = vector.broadcast %cst_62 : f32 to vector<16x1xf32>
    %133 = arith.divf %131, %132 : vector<16x1xf32>
    %134 = vector.broadcast %126 : vector<16x1xf32> to vector<16x32xf32>
    %135 = arith.subf %118, %134 : vector<16x32xf32>
    %cst_63 = arith.constant 9.99999974E-6 : f32
    %136 = vector.broadcast %cst_63 : f32 to vector<16x1xf32>
    %137 = arith.addf %133, %136 : vector<16x1xf32>
    %138 = math.rsqrt %137 : vector<16x1xf32>
    %139 = vector.broadcast %138 : vector<16x1xf32> to vector<16x32xf32>
    %140 = arith.mulf %135, %139 : vector<16x32xf32>
    %141 = vector.broadcast %120 : vector<1x32xf32> to vector<16x32xf32>
    %142 = arith.mulf %140, %141 : vector<16x32xf32>
    %143 = vector.broadcast %122 : vector<1x32xf32> to vector<16x32xf32>
    %144 = arith.addf %142, %143 : vector<16x32xf32>
    %c1 = arith.constant 1 : index
    %c0_64 = arith.constant 0 : index
    %c0_65 = arith.constant 0 : index
    %145 = vector.load %arg5[%c1, %c0_64, %c0_65] : memref<2x32x96xf32, #tpu.memory_space<vmem>>, vector<1x32x96xf32>
    %146 = vector.shape_cast %145 : vector<1x32x96xf32> to vector<32x96xf32>
    %cst_66 = arith.constant dense<0.000000e+00> : vector<16x96xf32>
    %147 = tpu.matmul %144, %146, %cst_66 {dimension_numbers = #tpu.dot_dimension_numbers<[1], [0], [0], [1], [0, 0, 1, 1], [], []>} : vector<16x32xf32>, vector<32x96xf32>, vector<16x96xf32> -> vector<16x96xf32>
    %c1_67 = arith.constant 1 : index
    %c0_68 = arith.constant 0 : index
    %c0_69 = arith.constant 0 : index
    %148 = vector.load %arg6[%c1_67, %c0_68, %c0_69] : memref<2x1x96xf32, #tpu.memory_space<vmem>>, vector<1x1x96xf32>
    %149 = vector.shape_cast %148 : vector<1x1x96xf32> to vector<1x96xf32>
    %150 = vector.broadcast %149 : vector<1x96xf32> to vector<16x96xf32>
    %151 = arith.addf %147, %150 : vector<16x96xf32>
    %152 = vector.extract_strided_slice %151 {offsets = [0, 0], sizes = [16, 8], strides = [1, 1]} : vector<16x96xf32> to vector<16x8xf32>
    %153 = vector.shape_cast %152 : vector<16x8xf32> to vector<2x8x8xf32>
    %154 = vector.extract_strided_slice %151 {offsets = [0, 8], sizes = [16, 8], strides = [1, 1]} : vector<16x96xf32> to vector<16x8xf32>
    %155 = vector.shape_cast %154 : vector<16x8xf32> to vector<2x8x8xf32>
    %156 = vector.extract_strided_slice %151 {offsets = [0, 16], sizes = [16, 8], strides = [1, 1]} : vector<16x96xf32> to vector<16x8xf32>
    %157 = vector.shape_cast %156 : vector<16x8xf32> to vector<2x8x8xf32>
    %158 = vector.extract_strided_slice %151 {offsets = [0, 24], sizes = [16, 8], strides = [1, 1]} : vector<16x96xf32> to vector<16x8xf32>
    %159 = vector.shape_cast %158 : vector<16x8xf32> to vector<2x8x8xf32>
    %160 = tpu.concatenate %153, %155, %157, %159 in 0 : vector<2x8x8xf32>, vector<2x8x8xf32>, vector<2x8x8xf32>, vector<2x8x8xf32> -> vector<8x8x8xf32>
    %cst_70 = arith.constant 0.353553385 : f32
    %161 = vector.broadcast %cst_70 : f32 to vector<8x8x8xf32>
    %162 = arith.mulf %160, %161 : vector<8x8x8xf32>
    %163 = vector.extract_strided_slice %151 {offsets = [0, 32], sizes = [16, 8], strides = [1, 1]} : vector<16x96xf32> to vector<16x8xf32>
    %164 = vector.shape_cast %163 : vector<16x8xf32> to vector<2x8x8xf32>
    %165 = vector.extract_strided_slice %151 {offsets = [0, 40], sizes = [16, 8], strides = [1, 1]} : vector<16x96xf32> to vector<16x8xf32>
    %166 = vector.shape_cast %165 : vector<16x8xf32> to vector<2x8x8xf32>
    %167 = vector.extract_strided_slice %151 {offsets = [0, 48], sizes = [16, 8], strides = [1, 1]} : vector<16x96xf32> to vector<16x8xf32>
    %168 = vector.shape_cast %167 : vector<16x8xf32> to vector<2x8x8xf32>
    %169 = vector.extract_strided_slice %151 {offsets = [0, 56], sizes = [16, 8], strides = [1, 1]} : vector<16x96xf32> to vector<16x8xf32>
    %170 = vector.shape_cast %169 : vector<16x8xf32> to vector<2x8x8xf32>
    %171 = tpu.concatenate %164, %166, %168, %170 in 0 : vector<2x8x8xf32>, vector<2x8x8xf32>, vector<2x8x8xf32>, vector<2x8x8xf32> -> vector<8x8x8xf32>
    %172 = vector.extract_strided_slice %151 {offsets = [0, 64], sizes = [16, 8], strides = [1, 1]} : vector<16x96xf32> to vector<16x8xf32>
    %173 = vector.shape_cast %172 : vector<16x8xf32> to vector<2x8x8xf32>
    %174 = vector.extract_strided_slice %151 {offsets = [0, 72], sizes = [16, 8], strides = [1, 1]} : vector<16x96xf32> to vector<16x8xf32>
    %175 = vector.shape_cast %174 : vector<16x8xf32> to vector<2x8x8xf32>
    %176 = vector.extract_strided_slice %151 {offsets = [0, 80], sizes = [16, 8], strides = [1, 1]} : vector<16x96xf32> to vector<16x8xf32>
    %177 = vector.shape_cast %176 : vector<16x8xf32> to vector<2x8x8xf32>
    %178 = vector.extract_strided_slice %151 {offsets = [0, 88], sizes = [16, 8], strides = [1, 1]} : vector<16x96xf32> to vector<16x8xf32>
    %179 = vector.shape_cast %178 : vector<16x8xf32> to vector<2x8x8xf32>
    %180 = tpu.concatenate %173, %175, %177, %179 in 0 : vector<2x8x8xf32>, vector<2x8x8xf32>, vector<2x8x8xf32>, vector<2x8x8xf32> -> vector<8x8x8xf32>
    "tpu.trace_start"() <{level = 10 : i32, message = "nqd,nkd->nqk"}> : () -> ()
    %cst_71 = arith.constant dense<0.000000e+00> : vector<8x8x8xf32>
    %181 = tpu.matmul %162, %171, %cst_71 {dimension_numbers = #tpu.dot_dimension_numbers<[2], [2], [1], [1], [0, 0, 0, 1, 1, 1], [0], [0]>} : vector<8x8x8xf32>, vector<8x8x8xf32>, vector<8x8x8xf32> -> vector<8x8x8xf32>
    "tpu.trace_stop"() : () -> ()
    %cst_72 = arith.constant dense<0xFF800000> : vector<8x8xf32>
    %182 = vector.multi_reduction <maximumf>, %181, %cst_72 [2] : vector<8x8x8xf32> to vector<8x8xf32>
    %183 = vector.shape_cast %182 : vector<8x8xf32> to vector<8x8x1xf32>
    %184 = vector.broadcast %183 : vector<8x8x1xf32> to vector<8x8x8xf32>
    %185 = arith.subf %181, %184 : vector<8x8x8xf32>
    %186 = math.exp %185 : vector<8x8x8xf32>
    %cst_73 = arith.constant dense<0.000000e+00> : vector<8x8xf32>
    %187 = vector.multi_reduction <add>, %186, %cst_73 [2] : vector<8x8x8xf32> to vector<8x8xf32>
    %188 = vector.shape_cast %187 : vector<8x8xf32> to vector<8x8x1xf32>
    %189 = tpu.reciprocal %188 {approx = true} : vector<8x8x1xf32> -> vector<8x8x1xf32>
    %190 = vector.broadcast %189 : vector<8x8x1xf32> to vector<8x8x8xf32>
    %191 = arith.mulf %186, %190 : vector<8x8x8xf32>
    "tpu.trace_start"() <{level = 10 : i32, message = "nqk,nkd->nqd"}> : () -> ()
    %cst_74 = arith.constant dense<0.000000e+00> : vector<8x8x8xf32>
    %192 = tpu.matmul %191, %180, %cst_74 {dimension_numbers = #tpu.dot_dimension_numbers<[2], [1], [1], [2], [0, 0, 0, 1, 1, 2], [0], [0]>} : vector<8x8x8xf32>, vector<8x8x8xf32>, vector<8x8x8xf32> -> vector<8x8x8xf32>
    "tpu.trace_stop"() : () -> ()
    %193 = vector.extract_strided_slice %192 {offsets = [0, 0, 0], sizes = [2, 8, 8], strides = [1, 1, 1]} : vector<8x8x8xf32> to vector<2x8x8xf32>
    %194 = vector.extract_strided_slice %192 {offsets = [2, 0, 0], sizes = [2, 8, 8], strides = [1, 1, 1]} : vector<8x8x8xf32> to vector<2x8x8xf32>
    %195 = vector.extract_strided_slice %192 {offsets = [4, 0, 0], sizes = [2, 8, 8], strides = [1, 1, 1]} : vector<8x8x8xf32> to vector<2x8x8xf32>
    %196 = vector.extract_strided_slice %192 {offsets = [6, 0, 0], sizes = [2, 8, 8], strides = [1, 1, 1]} : vector<8x8x8xf32> to vector<2x8x8xf32>
    %197 = tpu.concatenate %193, %194, %195, %196 in 2 : vector<2x8x8xf32>, vector<2x8x8xf32>, vector<2x8x8xf32>, vector<2x8x8xf32> -> vector<2x8x32xf32>
    %198 = vector.shape_cast %197 : vector<2x8x32xf32> to vector<16x32xf32>
    %c1_75 = arith.constant 1 : index
    %c0_76 = arith.constant 0 : index
    %c0_77 = arith.constant 0 : index
    %199 = vector.load %arg7[%c1_75, %c0_76, %c0_77] : memref<2x32x32xf32, #tpu.memory_space<vmem>>, vector<1x32x32xf32>
    %200 = vector.shape_cast %199 : vector<1x32x32xf32> to vector<32x32xf32>
    %cst_78 = arith.constant dense<0.000000e+00> : vector<16x32xf32>
    %201 = tpu.matmul %198, %200, %cst_78 {dimension_numbers = #tpu.dot_dimension_numbers<[1], [0], [0], [1], [0, 0, 1, 1], [], []>} : vector<16x32xf32>, vector<32x32xf32>, vector<16x32xf32> -> vector<16x32xf32>
    %c1_79 = arith.constant 1 : index
    %c0_80 = arith.constant 0 : index
    %c0_81 = arith.constant 0 : index
    %202 = vector.load %arg8[%c1_79, %c0_80, %c0_81] : memref<2x1x32xf32, #tpu.memory_space<vmem>>, vector<1x1x32xf32>
    %203 = vector.shape_cast %202 : vector<1x1x32xf32> to vector<1x32xf32>
    %204 = vector.broadcast %203 : vector<1x32xf32> to vector<16x32xf32>
    %205 = arith.addf %201, %204 : vector<16x32xf32>
    %206 = arith.addf %144, %205 : vector<16x32xf32>
    %c1_82 = arith.constant 1 : index
    %c0_83 = arith.constant 0 : index
    %c0_84 = arith.constant 0 : index
    %207 = vector.load %arg9[%c1_82, %c0_83, %c0_84] : memref<2x1x32xf32, #tpu.memory_space<vmem>>, vector<1x1x32xf32>
    %208 = vector.shape_cast %207 : vector<1x1x32xf32> to vector<1x32xf32>
    %c1_85 = arith.constant 1 : index
    %c0_86 = arith.constant 0 : index
    %c0_87 = arith.constant 0 : index
    %209 = vector.load %arg10[%c1_85, %c0_86, %c0_87] : memref<2x1x32xf32, #tpu.memory_space<vmem>>, vector<1x1x32xf32>
    %210 = vector.shape_cast %209 : vector<1x1x32xf32> to vector<1x32xf32>
    %cst_88 = arith.constant dense<0.000000e+00> : vector<16xf32>
    %211 = vector.multi_reduction <add>, %206, %cst_88 [1] : vector<16x32xf32> to vector<16xf32>
    %212 = vector.shape_cast %211 : vector<16xf32> to vector<16x1xf32>
    %cst_89 = arith.constant 3.200000e+01 : f32
    %213 = vector.broadcast %cst_89 : f32 to vector<16x1xf32>
    %214 = arith.divf %212, %213 : vector<16x1xf32>
    %215 = vector.broadcast %214 : vector<16x1xf32> to vector<16x32xf32>
    %216 = arith.subf %206, %215 : vector<16x32xf32>
    %217 = arith.mulf %216, %216 : vector<16x32xf32>
    %cst_90 = arith.constant dense<0.000000e+00> : vector<16xf32>
    %218 = vector.multi_reduction <add>, %217, %cst_90 [1] : vector<16x32xf32> to vector<16xf32>
    %219 = vector.shape_cast %218 : vector<16xf32> to vector<16x1xf32>
    %cst_91 = arith.constant 3.200000e+01 : f32
    %220 = vector.broadcast %cst_91 : f32 to vector<16x1xf32>
    %221 = arith.divf %219, %220 : vector<16x1xf32>
    %222 = vector.broadcast %214 : vector<16x1xf32> to vector<16x32xf32>
    %223 = arith.subf %206, %222 : vector<16x32xf32>
    %cst_92 = arith.constant 9.99999974E-6 : f32
    %224 = vector.broadcast %cst_92 : f32 to vector<16x1xf32>
    %225 = arith.addf %221, %224 : vector<16x1xf32>
    %226 = math.rsqrt %225 : vector<16x1xf32>
    %227 = vector.broadcast %226 : vector<16x1xf32> to vector<16x32xf32>
    %228 = arith.mulf %223, %227 : vector<16x32xf32>
    %229 = vector.broadcast %208 : vector<1x32xf32> to vector<16x32xf32>
    %230 = arith.mulf %228, %229 : vector<16x32xf32>
    %231 = vector.broadcast %210 : vector<1x32xf32> to vector<16x32xf32>
    %232 = arith.addf %230, %231 : vector<16x32xf32>
    %c1_93 = arith.constant 1 : index
    %c0_94 = arith.constant 0 : index
    %c0_95 = arith.constant 0 : index
    %233 = vector.load %arg11[%c1_93, %c0_94, %c0_95] : memref<2x32x64xf32, #tpu.memory_space<vmem>>, vector<1x32x64xf32>
    %234 = vector.shape_cast %233 : vector<1x32x64xf32> to vector<32x64xf32>
    %cst_96 = arith.constant dense<0.000000e+00> : vector<16x64xf32>
    %235 = tpu.matmul %232, %234, %cst_96 {dimension_numbers = #tpu.dot_dimension_numbers<[1], [0], [0], [1], [0, 0, 1, 1], [], []>} : vector<16x32xf32>, vector<32x64xf32>, vector<16x64xf32> -> vector<16x64xf32>
    %c1_97 = arith.constant 1 : index
    %c0_98 = arith.constant 0 : index
    %c0_99 = arith.constant 0 : index
    %236 = vector.load %arg12[%c1_97, %c0_98, %c0_99] : memref<2x1x64xf32, #tpu.memory_space<vmem>>, vector<1x1x64xf32>
    %237 = vector.shape_cast %236 : vector<1x1x64xf32> to vector<1x64xf32>
    %238 = vector.broadcast %237 : vector<1x64xf32> to vector<16x64xf32>
    %239 = arith.addf %235, %238 : vector<16x64xf32>
    %cst_100 = arith.constant 0.000000e+00 : f32
    %240 = vector.broadcast %cst_100 : f32 to vector<16x64xf32>
    %241 = arith.maximumf %239, %240 : vector<16x64xf32>
    %c1_101 = arith.constant 1 : index
    %c0_102 = arith.constant 0 : index
    %c0_103 = arith.constant 0 : index
    %242 = vector.load %arg13[%c1_101, %c0_102, %c0_103] : memref<2x64x32xf32, #tpu.memory_space<vmem>>, vector<1x64x32xf32>
    %243 = vector.shape_cast %242 : vector<1x64x32xf32> to vector<64x32xf32>
    %cst_104 = arith.constant dense<0.000000e+00> : vector<16x32xf32>
    %244 = tpu.matmul %241, %243, %cst_104 {dimension_numbers = #tpu.dot_dimension_numbers<[1], [0], [0], [1], [0, 0, 1, 1], [], []>} : vector<16x64xf32>, vector<64x32xf32>, vector<16x32xf32> -> vector<16x32xf32>
    %c1_105 = arith.constant 1 : index
    %c0_106 = arith.constant 0 : index
    %c0_107 = arith.constant 0 : index
    %245 = vector.load %arg14[%c1_105, %c0_106, %c0_107] : memref<2x1x32xf32, #tpu.memory_space<vmem>>, vector<1x1x32xf32>
    %246 = vector.shape_cast %245 : vector<1x1x32xf32> to vector<1x32xf32>
    %247 = vector.broadcast %246 : vector<1x32xf32> to vector<16x32xf32>
    %248 = arith.addf %244, %247 : vector<16x32xf32>
    %249 = arith.addf %232, %248 : vector<16x32xf32>
    %c1_108 = arith.constant 1 : index
    %c0_109 = arith.constant 0 : index
    %c0_110 = arith.constant 0 : index
    %250 = vector.load %arg15[%c1_108, %c0_109, %c0_110] : memref<2x1x32xf32, #tpu.memory_space<vmem>>, vector<1x1x32xf32>
    %251 = vector.shape_cast %250 : vector<1x1x32xf32> to vector<1x32xf32>
    %c1_111 = arith.constant 1 : index
    %c0_112 = arith.constant 0 : index
    %c0_113 = arith.constant 0 : index
    %252 = vector.load %arg16[%c1_111, %c0_112, %c0_113] : memref<2x1x32xf32, #tpu.memory_space<vmem>>, vector<1x1x32xf32>
    %253 = vector.shape_cast %252 : vector<1x1x32xf32> to vector<1x32xf32>
    %cst_114 = arith.constant dense<0.000000e+00> : vector<16xf32>
    %254 = vector.multi_reduction <add>, %249, %cst_114 [1] : vector<16x32xf32> to vector<16xf32>
    %255 = vector.shape_cast %254 : vector<16xf32> to vector<16x1xf32>
    %cst_115 = arith.constant 3.200000e+01 : f32
    %256 = vector.broadcast %cst_115 : f32 to vector<16x1xf32>
    %257 = arith.divf %255, %256 : vector<16x1xf32>
    %258 = vector.broadcast %257 : vector<16x1xf32> to vector<16x32xf32>
    %259 = arith.subf %249, %258 : vector<16x32xf32>
    %260 = arith.mulf %259, %259 : vector<16x32xf32>
    %cst_116 = arith.constant dense<0.000000e+00> : vector<16xf32>
    %261 = vector.multi_reduction <add>, %260, %cst_116 [1] : vector<16x32xf32> to vector<16xf32>
    %262 = vector.shape_cast %261 : vector<16xf32> to vector<16x1xf32>
    %cst_117 = arith.constant 3.200000e+01 : f32
    %263 = vector.broadcast %cst_117 : f32 to vector<16x1xf32>
    %264 = arith.divf %262, %263 : vector<16x1xf32>
    %265 = vector.broadcast %257 : vector<16x1xf32> to vector<16x32xf32>
    %266 = arith.subf %249, %265 : vector<16x32xf32>
    %cst_118 = arith.constant 9.99999974E-6 : f32
    %267 = vector.broadcast %cst_118 : f32 to vector<16x1xf32>
    %268 = arith.addf %264, %267 : vector<16x1xf32>
    %269 = math.rsqrt %268 : vector<16x1xf32>
    %270 = vector.broadcast %269 : vector<16x1xf32> to vector<16x32xf32>
    %271 = arith.mulf %266, %270 : vector<16x32xf32>
    %272 = vector.broadcast %251 : vector<1x32xf32> to vector<16x32xf32>
    %273 = arith.mulf %271, %272 : vector<16x32xf32>
    %274 = vector.broadcast %253 : vector<1x32xf32> to vector<16x32xf32>
    %275 = arith.addf %273, %274 : vector<16x32xf32>
    %276 = vector.shape_cast %275 : vector<16x32xf32> to vector<2x8x32xf32>
    %cst_119 = arith.constant dense<0.000000e+00> : vector<2x32xf32>
    %277 = vector.multi_reduction <add>, %276, %cst_119 [1] : vector<2x8x32xf32> to vector<2x32xf32>
    %cst_120 = arith.constant 1.250000e-01 : f32
    %278 = vector.broadcast %cst_120 : f32 to vector<2x32xf32>
    %279 = arith.mulf %277, %278 : vector<2x32xf32>
    %280 = vector.extract_strided_slice %276 {offsets = [0, 7, 0], sizes = [2, 1, 32], strides = [1, 1, 1]} : vector<2x8x32xf32> to vector<2x1x32xf32>
    %281 = vector.shape_cast %280 : vector<2x1x32xf32> to vector<2x32xf32>
    %282 = arith.addf %279, %281 : vector<2x32xf32>
    %c0_121 = arith.constant 0 : index
    %c0_122 = arith.constant 0 : index
    %283 = vector.load %arg17[%c0_121, %c0_122] : memref<32x32xf32, #tpu.memory_space<vmem>>, vector<32x32xf32>
    %cst_123 = arith.constant dense<0.000000e+00> : vector<2x32xf32>
    %284 = tpu.matmul %282, %283, %cst_123 {dimension_numbers = #tpu.dot_dimension_numbers<[1], [0], [0], [1], [0, 0, 1, 1], [], []>} : vector<2x32xf32>, vector<32x32xf32>, vector<2x32xf32> -> vector<2x32xf32>
    %c0_124 = arith.constant 0 : index
    %c0_125 = arith.constant 0 : index
    %285 = vector.load %arg18[%c0_124, %c0_125] : memref<1x32xf32, #tpu.memory_space<vmem>>, vector<1x32xf32>
    %286 = vector.broadcast %285 : vector<1x32xf32> to vector<2x32xf32>
    %287 = arith.addf %284, %286 : vector<2x32xf32>
    %cst_126 = arith.constant 0.000000e+00 : f32
    %288 = vector.broadcast %cst_126 : f32 to vector<2x32xf32>
    %289 = arith.maximumf %287, %288 : vector<2x32xf32>
    %c0_127 = arith.constant 0 : index
    %c0_128 = arith.constant 0 : index
    %290 = vector.load %arg19[%c0_127, %c0_128] : memref<32x1xf32, #tpu.memory_space<vmem>>, vector<32x1xf32>
    %cst_129 = arith.constant dense<0.000000e+00> : vector<2x1xf32>
    %291 = tpu.matmul %289, %290, %cst_129 {dimension_numbers = #tpu.dot_dimension_numbers<[1], [0], [0], [1], [0, 0, 1, 1], [], []>} : vector<2x32xf32>, vector<32x1xf32>, vector<2x1xf32> -> vector<2x1xf32>
    %c0_130 = arith.constant 0 : index
    %c0_131 = arith.constant 0 : index
    %292 = vector.load %arg20[%c0_130, %c0_131] : memref<1x1xf32, #tpu.memory_space<vmem>>, vector<1x1xf32>
    %293 = vector.broadcast %292 : vector<1x1xf32> to vector<2x1xf32>
    %294 = arith.addf %291, %293 : vector<2x1xf32>
    %c0_132 = arith.constant 0 : index
    %c0_133 = arith.constant 0 : index
    %295 = vector.load %arg21[%c0_132, %c0_133] : memref<2x1xf32, #tpu.memory_space<vmem>>, vector<2x1xf32>
    tpu.vector_store %arg21[%c0_132, %c0_133], %294 {strides = array<i32>} : memref<2x1xf32, #tpu.memory_space<vmem>>, vector<2x1xf32>,
    return
  }
  func.func @transform_0(%arg0: i32) -> (i32, i32) {
    %c0_i32 = arith.constant 0 : i32
    %c0_i32_0 = arith.constant 0 : i32
    return %arg0, %c0_i32 : i32, i32
  }
  func.func @transform_1(%arg0: i32) -> (i32, i32) {
    %c0_i32 = arith.constant 0 : i32
    %c0_i32_0 = arith.constant 0 : i32
    return %arg0, %c0_i32 : i32, i32
  }
  func.func @transform_2(%arg0: i32) -> (i32, i32) {
    %c0_i32 = arith.constant 0 : i32
    %c0_i32_0 = arith.constant 0 : i32
    %c0_i32_1 = arith.constant 0 : i32
    return %c0_i32, %c0_i32_0 : i32, i32
  }
  func.func @transform_3(%arg0: i32) -> (i32, i32) {
    %c0_i32 = arith.constant 0 : i32
    %c0_i32_0 = arith.constant 0 : i32
    %c0_i32_1 = arith.constant 0 : i32
    return %c0_i32, %c0_i32_0 : i32, i32
  }
  func.func @transform_4(%arg0: i32) -> (i32, i32, i32) {
    %c0_i32 = arith.constant 0 : i32
    %c0_i32_0 = arith.constant 0 : i32
    %c0_i32_1 = arith.constant 0 : i32
    %c0_i32_2 = arith.constant 0 : i32
    return %c0_i32, %c0_i32_0, %c0_i32_1 : i32, i32, i32
  }
  func.func @transform_5(%arg0: i32) -> (i32, i32, i32) {
    %c0_i32 = arith.constant 0 : i32
    %c0_i32_0 = arith.constant 0 : i32
    %c0_i32_1 = arith.constant 0 : i32
    %c0_i32_2 = arith.constant 0 : i32
    return %c0_i32, %c0_i32_0, %c0_i32_1 : i32, i32, i32
  }
  func.func @transform_6(%arg0: i32) -> (i32, i32, i32) {
    %c0_i32 = arith.constant 0 : i32
    %c0_i32_0 = arith.constant 0 : i32
    %c0_i32_1 = arith.constant 0 : i32
    %c0_i32_2 = arith.constant 0 : i32
    return %c0_i32, %c0_i32_0, %c0_i32_1 : i32, i32, i32
  }
  func.func @transform_7(%arg0: i32) -> (i32, i32, i32) {
    %c0_i32 = arith.constant 0 : i32
    %c0_i32_0 = arith.constant 0 : i32
    %c0_i32_1 = arith.constant 0 : i32
    %c0_i32_2 = arith.constant 0 : i32
    return %c0_i32, %c0_i32_0, %c0_i32_1 : i32, i32, i32
  }
  func.func @transform_8(%arg0: i32) -> (i32, i32, i32) {
    %c0_i32 = arith.constant 0 : i32
    %c0_i32_0 = arith.constant 0 : i32
    %c0_i32_1 = arith.constant 0 : i32
    %c0_i32_2 = arith.constant 0 : i32
    return %c0_i32, %c0_i32_0, %c0_i32_1 : i32, i32, i32
  }
  func.func @transform_9(%arg0: i32) -> (i32, i32, i32) {
    %c0_i32 = arith.constant 0 : i32
    %c0_i32_0 = arith.constant 0 : i32
    %c0_i32_1 = arith.constant 0 : i32
    %c0_i32_2 = arith.constant 0 : i32
    return %c0_i32, %c0_i32_0, %c0_i32_1 : i32, i32, i32
  }
  func.func @transform_10(%arg0: i32) -> (i32, i32, i32) {
    %c0_i32 = arith.constant 0 : i32
    %c0_i32_0 = arith.constant 0 : i32
    %c0_i32_1 = arith.constant 0 : i32
    %c0_i32_2 = arith.constant 0 : i32
    return %c0_i32, %c0_i32_0, %c0_i32_1 : i32, i32, i32
  }
  func.func @transform_11(%arg0: i32) -> (i32, i32, i32) {
    %c0_i32 = arith.constant 0 : i32
    %c0_i32_0 = arith.constant 0 : i32
    %c0_i32_1 = arith.constant 0 : i32
    %c0_i32_2 = arith.constant 0 : i32
    return %c0_i32, %c0_i32_0, %c0_i32_1 : i32, i32, i32
  }
  func.func @transform_12(%arg0: i32) -> (i32, i32, i32) {
    %c0_i32 = arith.constant 0 : i32
    %c0_i32_0 = arith.constant 0 : i32
    %c0_i32_1 = arith.constant 0 : i32
    %c0_i32_2 = arith.constant 0 : i32
    return %c0_i32, %c0_i32_0, %c0_i32_1 : i32, i32, i32
  }
  func.func @transform_13(%arg0: i32) -> (i32, i32, i32) {
    %c0_i32 = arith.constant 0 : i32
    %c0_i32_0 = arith.constant 0 : i32
    %c0_i32_1 = arith.constant 0 : i32
    %c0_i32_2 = arith.constant 0 : i32
    return %c0_i32, %c0_i32_0, %c0_i32_1 : i32, i32, i32
  }
  func.func @transform_14(%arg0: i32) -> (i32, i32, i32) {
    %c0_i32 = arith.constant 0 : i32
    %c0_i32_0 = arith.constant 0 : i32
    %c0_i32_1 = arith.constant 0 : i32
    %c0_i32_2 = arith.constant 0 : i32
    return %c0_i32, %c0_i32_0, %c0_i32_1 : i32, i32, i32
  }
  func.func @transform_15(%arg0: i32) -> (i32, i32, i32) {
    %c0_i32 = arith.constant 0 : i32
    %c0_i32_0 = arith.constant 0 : i32
    %c0_i32_1 = arith.constant 0 : i32
    %c0_i32_2 = arith.constant 0 : i32
    return %c0_i32, %c0_i32_0, %c0_i32_1 : i32, i32, i32
  }
  func.func @transform_16(%arg0: i32) -> (i32, i32) {
    %c0_i32 = arith.constant 0 : i32
    %c0_i32_0 = arith.constant 0 : i32
    %c0_i32_1 = arith.constant 0 : i32
    return %c0_i32, %c0_i32_0 : i32, i32
  }
  func.func @transform_17(%arg0: i32) -> (i32, i32) {
    %c0_i32 = arith.constant 0 : i32
    %c0_i32_0 = arith.constant 0 : i32
    %c0_i32_1 = arith.constant 0 : i32
    return %c0_i32, %c0_i32_0 : i32, i32
  }
  func.func @transform_18(%arg0: i32) -> (i32, i32) {
    %c0_i32 = arith.constant 0 : i32
    %c0_i32_0 = arith.constant 0 : i32
    %c0_i32_1 = arith.constant 0 : i32
    return %c0_i32, %c0_i32_0 : i32, i32
  }
  func.func @transform_19(%arg0: i32) -> (i32, i32) {
    %c0_i32 = arith.constant 0 : i32
    %c0_i32_0 = arith.constant 0 : i32
    %c0_i32_1 = arith.constant 0 : i32
    return %c0_i32, %c0_i32_0 : i32, i32
  }
  func.func @transform_20(%arg0: i32) -> (i32, i32) {
    %c0_i32 = arith.constant 0 : i32
    %c0_i32_0 = arith.constant 0 : i32
    return %arg0, %c0_i32 : i32, i32
  }
}

</mosaic_0001>

<llo_original>
// kernel: tpu_custom_call.1
$region0: #{tpu_custom_call.1}
  #allocation0 [shape = 'u32[]', space=smem, size = 0x4, offset = 0x4, fixed_abs, tag = 'smem constant byte address 0x4 - core index']
  #allocation1 [shape = 'u32[144,128]{1,0:T(1,128)}', space=vmem, size = 0x12000, scoped, tag = 'internal scratch']
  #allocation2 [shape = 'f32[1,1]{1,0:T(1,128)S(1)}', space=vmem, size = 0x200, scoped, tag = 'scoped memory for tpu_custom_call.1']
  %s0 = inlined_call_operand.vmem [shape: f32[16,4], index: 0, kind: input, shape index: {}]
  %s1 = inlined_call_operand.vmem [shape: f32[2,32], index: 1, kind: input, shape index: {}]
  %s2 = inlined_call_operand.vmem [shape: f32[4,32], index: 2, kind: input, shape index: {}]
  %s3 = inlined_call_operand.hbm [shape: f32[1,32], index: 3, kind: input, shape index: {}]
  %s4 = inlined_call_operand.vmem [shape: f32[2,32,96], index: 4, kind: input, shape index: {}]
  %s5 = inlined_call_operand.vmem [shape: f32[2,1,96], index: 5, kind: input, shape index: {}]
  %s6 = inlined_call_operand.vmem [shape: f32[2,32,32], index: 6, kind: input, shape index: {}]
  %s7 = inlined_call_operand.vmem [shape: f32[2,1,32], index: 7, kind: input, shape index: {}]
  %s8 = inlined_call_operand.vmem [shape: f32[2,1,32], index: 8, kind: input, shape index: {}]
  %s9 = inlined_call_operand.hbm [shape: f32[2,1,32], index: 9, kind: input, shape index: {}]
  %s10 = inlined_call_operand.vmem [shape: f32[2,32,64], index: 10, kind: input, shape index: {}]
  %s11 = inlined_call_operand.hbm [shape: f32[2,1,64], index: 11, kind: input, shape index: {}]
  %s12 = inlined_call_operand.vmem [shape: f32[2,64,32], index: 12, kind: input, shape index: {}]
  %s13 = inlined_call_operand.vmem [shape: f32[2,1,32], index: 13, kind: input, shape index: {}]
  %s14 = inlined_call_operand.hbm [shape: f32[2,1,32], index: 14, kind: input, shape index: {}]
  %s15 = inlined_call_operand.vmem [shape: f32[2,1,32], index: 15, kind: input, shape index: {}]
  %s16 = inlined_call_operand.hbm [shape: f32[32,32], index: 16, kind: input, shape index: {}]
  %s17 = inlined_call_operand.vmem [shape: f32[1,32], index: 17, kind: input, shape index: {}]
  %s18 = inlined_call_operand.vmem [shape: f32[32,1], index: 18, kind: input, shape index: {}]
  %s19 = inlined_call_operand.<no memory space> [shape: f32[1,1], index: 19, kind: input, shape index: {}]
  %s20 = inlined_call_operand.vmem [shape: f32[2,1], index: 20, kind: output, shape index: {}]
  %s21 = sld [smem:[#allocation0]]
  $region110: #{tpu_custom_call.1} parent=0
    _
  %s23 = ssub.s32 1, %s21
  %s24 = scalar_select 0, %s23, %s21
  %v25 = vstv %s19
  %26 = vst [vmem:[#allocation2] sm:$0x1] %v25
  $region1: #{tpu_custom_call.1} parent=0
    #allocation3 [shape = 'u8[512]{0}', space=vmem, size = 0x400, scoped, tag = 'input window, operand 3, single buffered']
    #allocation4 [shape = 's32[1]{0}', space=sflag, size = 0x4, scoped, tag = 'scoped memory for tpu_custom_call.1']
    #allocation5 [shape = 'u8[1024]{0}', space=vmem, size = 0x400, scoped, tag = 'input window, operand 9, single buffered']
    #allocation6 [shape = 's32[1]{0}', space=sflag, size = 0x4, scoped, tag = 'scoped memory for tpu_custom_call.1']
    #allocation7 [shape = 'u8[1024]{0}', space=vmem, size = 0x400, scoped, tag = 'input window, operand 11, single buffered']
    #allocation8 [shape = 'u8[1024]{0}', space=vmem, size = 0x400, scoped, tag = 'input window, operand 14, single buffered']
    #allocation9 [shape = 's32[1]{0}', space=sflag, size = 0x4, scoped, tag = 'scoped memory for tpu_custom_call.1']
    #allocation10 [shape = 'u8[16384]{0}', space=vmem, size = 0x4000, scoped, tag = 'input window, operand 16, single buffered']
    %27 = vsyncpa [#allocation4], 0
    %28 = vsyncpa [#allocation6], 0
    %29 = vsyncpa [#allocation9], 0
    // Predicated region
    $region2: #{tpu_custom_call.1} parent=1 // pred_check
      _
    $region3: #{tpu_custom_call.1} parent=1 // pred_check_branch
      %31 = sbr.rel (0) target = $region5
    $region4: #{tpu_custom_call.1} parent=1 // pred_region
      _
    $region5: #{tpu_custom_call.1} parent=1 // pred_fallthru
      _
    // Predicated region
    $region6: #{tpu_custom_call.1} parent=1 // pred_check
      _
    $region7: #{tpu_custom_call.1} parent=1 // pred_check_branch
      %33 = sbr.rel (0) target = $region9
    $region8: #{tpu_custom_call.1} parent=1 // pred_region
      _
    $region9: #{tpu_custom_call.1} parent=1 // pred_fallthru
      _
    // Predicated region
    $region10: #{tpu_custom_call.1} parent=1 // pred_check
      _
    $region11: #{tpu_custom_call.1} parent=1 // pred_check_branch
      %35 = sbr.rel (0) target = $region13
    $region12: #{tpu_custom_call.1} parent=1 // pred_region
      _
    $region13: #{tpu_custom_call.1} parent=1 // pred_fallthru
      _
    // Predicated region
    $region14: #{tpu_custom_call.1} parent=1 // pred_check
      _
    $region15: #{tpu_custom_call.1} parent=1 // pred_check_branch
      %37 = sbr.rel (0) target = $region17
    $region16: #{tpu_custom_call.1} parent=1 // pred_region
      %s39 = ssub.s32 16, 16
      %40 = vsyncadd [#allocation4], %s39
      %s42 = sshll.u32 [#allocation3], 4
      %s43 = int_to_ptr.vmem [resolvable:$true] %s42
      %45 = dma.hbm_to_vmem [thread:$0]  %s3, 16, %s43, [#allocation4]
    $region17: #{tpu_custom_call.1} parent=1 // pred_fallthru
      _
    // Predicated region
    $region18: #{tpu_custom_call.1} parent=1 // pred_check
      _
    $region19: #{tpu_custom_call.1} parent=1 // pred_check_branch
      %47 = sbr.rel (0) target = $region21
    $region20: #{tpu_custom_call.1} parent=1 // pred_region
      _
    $region21: #{tpu_custom_call.1} parent=1 // pred_fallthru
      _
    // Predicated region
    $region22: #{tpu_custom_call.1} parent=1 // pred_check
      _
    $region23: #{tpu_custom_call.1} parent=1 // pred_check_branch
      %49 = sbr.rel (0) target = $region25
    $region24: #{tpu_custom_call.1} parent=1 // pred_region
      _
    $region25: #{tpu_custom_call.1} parent=1 // pred_fallthru
      _
    // Predicated region
    $region26: #{tpu_custom_call.1} parent=1 // pred_check
      _
    $region27: #{tpu_custom_call.1} parent=1 // pred_check_branch
      %51 = sbr.rel (0) target = $region29
    $region28: #{tpu_custom_call.1} parent=1 // pred_region
      _
    $region29: #{tpu_custom_call.1} parent=1 // pred_fallthru
      _
    // Predicated region
    $region30: #{tpu_custom_call.1} parent=1 // pred_check
      _
    $region31: #{tpu_custom_call.1} parent=1 // pred_check_branch
      %53 = sbr.rel (0) target = $region33
    $region32: #{tpu_custom_call.1} parent=1 // pred_region
      _
    $region33: #{tpu_custom_call.1} parent=1 // pred_fallthru
      _
    // Predicated region
    $region34: #{tpu_custom_call.1} parent=1 // pred_check
      _
    $region35: #{tpu_custom_call.1} parent=1 // pred_check_branch
      %55 = sbr.rel (0) target = $region37
    $region36: #{tpu_custom_call.1} parent=1 // pred_region
      _
    $region37: #{tpu_custom_call.1} parent=1 // pred_fallthru
      _
    // Predicated region
    $region38: #{tpu_custom_call.1} parent=1 // pred_check
      _
    $region39: #{tpu_custom_call.1} parent=1 // pred_check_branch
      %57 = sbr.rel (0) target = $region41
    $region40: #{tpu_custom_call.1} parent=1 // pred_region
      %s59 = ssub.s32 32, 32
      %60 = vsyncadd [#allocation6], %s59
      %s61 = sshll.u32 [#allocation5], 4
      %s62 = int_to_ptr.vmem [resolvable:$true] %s61
      %67 = dma.hbm_to_vmem [thread:$0]  %s9, 32, %s62, [#allocation6], 16, 16, 1
    $region41: #{tpu_custom_call.1} parent=1 // pred_fallthru
      _
    // Predicated region
    $region42: #{tpu_custom_call.1} parent=1 // pred_check
      _
    $region43: #{tpu_custom_call.1} parent=1 // pred_check_branch
      %69 = sbr.rel (0) target = $region45
    $region44: #{tpu_custom_call.1} parent=1 // pred_region
      _
    $region45: #{tpu_custom_call.1} parent=1 // pred_fallthru
      _
    // Predicated region
    $region46: #{tpu_custom_call.1} parent=1 // pred_check
      _
    $region47: #{tpu_custom_call.1} parent=1 // pred_check_branch
      %71 = sbr.rel (0) target = $region49
    $region48: #{tpu_custom_call.1} parent=1 // pred_region
      %s73 = ssub.s32 32, 32
      %74 = vsyncadd [#allocation6], %s73
      %s75 = sshll.u32 [#allocation7], 4
      %s76 = int_to_ptr.vmem [resolvable:$true] %s75
      %81 = dma.hbm_to_vmem [thread:$0]  %s11, 32, %s76, [#allocation6], 16, 16, 1
    $region49: #{tpu_custom_call.1} parent=1 // pred_fallthru
      _
    // Predicated region
    $region50: #{tpu_custom_call.1} parent=1 // pred_check
      _
    $region51: #{tpu_custom_call.1} parent=1 // pred_check_branch
      %83 = sbr.rel (0) target = $region53
    $region52: #{tpu_custom_call.1} parent=1 // pred_region
      _
    $region53: #{tpu_custom_call.1} parent=1 // pred_fallthru
      _
    // Predicated region
    $region54: #{tpu_custom_call.1} parent=1 // pred_check
      _
    $region55: #{tpu_custom_call.1} parent=1 // pred_check_branch
      %85 = sbr.rel (0) target = $region57
    $region56: #{tpu_custom_call.1} parent=1 // pred_region
      _
    $region57: #{tpu_custom_call.1} parent=1 // pred_fallthru
      _
    // Predicated region
    $region58: #{tpu_custom_call.1} parent=1 // pred_check
      _
    $region59: #{tpu_custom_call.1} parent=1 // pred_check_branch
      %87 = sbr.rel (0) target = $region61
    $region60: #{tpu_custom_call.1} parent=1 // pred_region
      %s89 = ssub.s32 32, 32
      %90 = vsyncadd [#allocation9], %s89
      %s91 = sshll.u32 [#allocation8], 4
      %s92 = int_to_ptr.vmem [resolvable:$true] %s91
      %97 = dma.hbm_to_vmem [thread:$0]  %s14, 32, %s92, [#allocation9], 16, 16, 1
    $region61: #{tpu_custom_call.1} parent=1 // pred_fallthru
      _
    // Predicated region
    $region62: #{tpu_custom_call.1} parent=1 // pred_check
      _
    $region63: #{tpu_custom_call.1} parent=1 // pred_check_branch
      %99 = sbr.rel (0) target = $region65
    $region64: #{tpu_custom_call.1} parent=1 // pred_region
      _
    $region65: #{tpu_custom_call.1} parent=1 // pred_fallthru
      _
    // Predicated region
    $region66: #{tpu_custom_call.1} parent=1 // pred_check
      _
    $region67: #{tpu_custom_call.1} parent=1 // pred_check_branch
      %101 = sbr.rel (0) target = $region69
    $region68: #{tpu_custom_call.1} parent=1 // pred_region
      %s103 = ssub.s32 512, 512
      %104 = vsyncadd [#allocation9], %s103
      %s105 = sshll.u32 [#allocation10], 4
      %s106 = int_to_ptr.vmem [resolvable:$true] %s105
      %111 = dma.hbm_to_vmem [thread:$0]  %s16, 512, %s106, [#allocation9], 128, 128, 8
    $region69: #{tpu_custom_call.1} parent=1 // pred_fallthru
      _
    // Predicated region
    $region70: #{tpu_custom_call.1} parent=1 // pred_check
      _
    $region71: #{tpu_custom_call.1} parent=1 // pred_check_branch
      %113 = sbr.rel (0) target = $region73
    $region72: #{tpu_custom_call.1} parent=1 // pred_region
      _
    $region73: #{tpu_custom_call.1} parent=1 // pred_fallthru
      _
    // Predicated region
    $region74: #{tpu_custom_call.1} parent=1 // pred_check
      _
    $region75: #{tpu_custom_call.1} parent=1 // pred_check_branch
      %115 = sbr.rel (0) target = $region77
    $region76: #{tpu_custom_call.1} parent=1 // pred_region
      _
    $region77: #{tpu_custom_call.1} parent=1 // pred_fallthru
      _
    // Predicated region
    $region78: #{tpu_custom_call.1} parent=1 // pred_check
      _
    $region79: #{tpu_custom_call.1} parent=1 // pred_check_branch
      %117 = sbr.rel (0) target = $region81
    $region80: #{tpu_custom_call.1} parent=1 // pred_region
      _
    $region81: #{tpu_custom_call.1} parent=1 // pred_fallthru
      _
    // Predicated region
    $region82: #{tpu_custom_call.1} parent=1 // pred_check
      _
    $region83: #{tpu_custom_call.1} parent=1 // pred_check_branch
      %119 = sbr.rel (0) target = $region85
    $region84: #{tpu_custom_call.1} parent=1 // pred_region
      %120 = dma.done [#allocation4], 16
    $region85: #{tpu_custom_call.1} parent=1 // pred_fallthru
      _
    // Predicated region
    $region86: #{tpu_custom_call.1} parent=1 // pred_check
      _
    $region87: #{tpu_custom_call.1} parent=1 // pred_check_branch
      %122 = sbr.rel (0) target = $region89
    $region88: #{tpu_custom_call.1} parent=1 // pred_region
      %123 = dma.done [#allocation6], 32
    $region89: #{tpu_custom_call.1} parent=1 // pred_fallthru
      _
    // Predicated region
    $region90: #{tpu_custom_call.1} parent=1 // pred_check
      _
    $region91: #{tpu_custom_call.1} parent=1 // pred_check_branch
      %125 = sbr.rel (0) target = $region93
    $region92: #{tpu_custom_call.1} parent=1 // pred_region
      %126 = dma.done [#allocation6], 32
    $region93: #{tpu_custom_call.1} parent=1 // pred_fallthru
      _
    // Predicated region
    $region94: #{tpu_custom_call.1} parent=1 // pred_check
      _
    $region95: #{tpu_custom_call.1} parent=1 // pred_check_branch
      %128 = sbr.rel (0) target = $region97
    $region96: #{tpu_custom_call.1} parent=1 // pred_region
      %129 = dma.done [#allocation9], 32
    $region97: #{tpu_custom_call.1} parent=1 // pred_fallthru
      _
    // Predicated region
    $region98: #{tpu_custom_call.1} parent=1 // pred_check
      _
    $region99: #{tpu_custom_call.1} parent=1 // pred_check_branch
      %131 = sbr.rel (0) target = $region101
    $region100: #{tpu_custom_call.1} parent=1 // pred_region
      %132 = dma.done [#allocation9], 512
    $region101: #{tpu_custom_call.1} parent=1 // pred_fallthru
      _
    %v133 = vld [vmem:[%s0] sm:$0xff]
    %v134 = vld [vmem:[%s0 + $0x8] sm:$0xff]
    %v135 = vld [vmem:[%s2] sm:$0xf]
    %v136 = vld [vmem:[#allocation3] sm:$0x1]
    %v138 = vlaneseq
    %v139 = vshrl.u32 %v138, 7
    %v140 = vsub.s32 0, %v139
    %v141 = vrot.slane %v136, %v140
    %vm143 = vcmask 31744
    %v145 = vsel %vm143, %v133, 0
    %v148 = vsel %vm143, %v134, 0
    %vm150 = vcmask 1043456
    %v152 = vsel %vm150, %v135, 0
    %154 = vmatprep.subr.mxu0 0.0
    %155 = vmatpush1.msra.mxu0 0.0
    %156 = vmatprep.subr.mxu0 0.0
    %157 = vmatpush1.msra.mxu0 0.0
    %158 = vmatprep.subr.mxu0 0.0
    %159 = vmatpush1.msra.mxu0 0.0
    %160 = vmatprep.subr.mxu0 0.0
    %161 = vmatpush1.msra.mxu0 0.0
    %162 = vmatprep.subr.mxu0 0.0
    %163 = vmatpush1.msra.mxu0 0.0
    %164 = vmatprep.subr.mxu0 0.0
    %165 = vmatpush1.msra.mxu0 0.0
    %166 = vmatprep.subr.mxu0 0.0
    %167 = vmatpush1.msra.mxu0 0.0
    %168 = vmatprep.subr.mxu0 0.0
    %169 = vmatpush1.msra.mxu0 0.0
    %170 = vmatprep.subr.mxu0 0.0
    %171 = vmatpush1.msra.mxu0 0.0
    %172 = vmatprep.subr.mxu0 0.0
    %173 = vmatpush1.msra.mxu0 0.0
    %174 = vmatprep.subr.mxu0 0.0
    %175 = vmatpush1.msra.mxu0 0.0
    %176 = vmatprep.subr.mxu0 0.0
    %177 = vmatpush1.msra.mxu0 0.0
    %178 = vmatprep.subr.mxu0 0.0
    %179 = vmatpush1.msra.mxu0 0.0
    %180 = vmatprep.subr.mxu0 0.0
    %181 = vmatpush1.msra.mxu0 0.0
    %182 = vmatprep.subr.mxu0 0.0
    %183 = vmatpush1.msra.mxu0 0.0
    %184 = vmatprep.subr.mxu0 0.0
    %185 = vmatpush1.msra.mxu0 %v152
    %186 = vmatprep.subr.mxu0 0.0
    %187 = vmatpush2.msra.mxu0 0.0
    %188 = vmatprep.subr.mxu0 0.0
    %189 = vmatpush2.msra.mxu0 0.0
    %190 = vmatprep.subr.mxu0 0.0
    %191 = vmatpush2.msra.mxu0 0.0
    %192 = vmatprep.subr.mxu0 0.0
    %193 = vmatpush2.msra.mxu0 0.0
    %194 = vmatprep.subr.mxu0 0.0
    %195 = vmatpush2.msra.mxu0 0.0
    %196 = vmatprep.subr.mxu0 0.0
    %197 = vmatpush2.msra.mxu0 0.0
    %198 = vmatprep.subr.mxu0 0.0
    %199 = vmatpush2.msra.mxu0 0.0
    %200 = vmatprep.subr.mxu0 0.0
    %201 = vmatpush2.msra.mxu0 0.0
    %202 = vmatprep.subr.mxu0 0.0
    %203 = vmatpush2.msra.mxu0 0.0
    %204 = vmatprep.subr.mxu0 0.0
    %205 = vmatpush2.msra.mxu0 0.0
    %206 = vmatprep.subr.mxu0 0.0
    %207 = vmatpush2.msra.mxu0 0.0
    %208 = vmatprep.subr.mxu0 0.0
    %209 = vmatpush2.msra.mxu0 0.0
    %210 = vmatprep.subr.mxu0 0.0
    %211 = vmatpush2.msra.mxu0 0.0
    %212 = vmatprep.subr.mxu0 0.0
    %213 = vmatpush2.msra.mxu0 0.0
    %214 = vmatprep.subr.mxu0 0.0
    %215 = vmatpush2.msra.mxu0 0.0
    %216 = vmatprep.subr.mxu0 0.0
    %217 = vmatpush2.msra.mxu0 0.0
    %218 = vmatprep.mubr.f32.mxu0 0.0
    %219 = vmatmul.mubr.f32.gmra.mxu0 %v145
    %v220 = vpop.f32.mrf.mxu0
    %v221 = vadd.f32 %v141, %v220
    %v222 = vpop.f32.mrf.mxu0
    %223 = vmatprep.mubr.f32.mxu0 0.0
    %224 = vmatmul.mubr.f32.gmra.mxu0 %v148
    %v225 = vpop.f32.mrf.mxu0
    %v226 = vadd.f32 %v141, %v225
    %v227 = vpop.f32.mrf.mxu0
    %228 = vdwg.mxu0
    %v229 = vmul.f32 %v221, 5.656854
    %v230 = vmul.f32 %v226, 5.656854
    %v231 = vld [vmem:[%s1] sm:$0x3]
    %v234 = vunpack.c.l.s4 1966171168
    %v235 = vunpack.c.0.s8 %v234
    %v236 = vlaneseq
    %v237 = vshrl.u32 %v236, 7
    %v238 = vsub.s32 %v235, %v237
    %v239 = vrot.slane %v231, %v238
    %v240 = vcombine.high %v239, %v239
    %v242 = vunpack.c.l.s4 1966171168
    %v243 = vunpack.c.0.s8 %v242
    %v244 = vlaneseq
    %v245 = vshrl.u32 %v244, 7
    %v246 = vsub.s32 %v243, %v245
    %v247 = vrot.slane %v239, %v246
    %v249 = vunpack.c.l.s4 1966171168
    %v250 = vunpack.c.0.s8 %v249
    %v251 = vlaneseq
    %v252 = vshrl.u32 %v251, 7
    %v253 = vsub.s32 %v250, %v252
    %v254 = vrot.slane %v240, %v253
    %v255 = vlaneseq
    %v256 = vshrl.u32 %v255, 7
    %v257 = vsub.s32 0, %v256
    %v258 = vrot.slane %v247, %v257
    %v259 = vlaneseq
    %v260 = vshrl.u32 %v259, 7
    %v261 = vsub.s32 0, %v260
    %v262 = vrot.slane %v254, %v261
    %v265 = vadd.f32 %v229, %v258
    %v266 = vadd.f32 %v230, %v262
    %v267 = vld [vmem:[%s4] sm:$0xff]
    %v268 = vld [vmem:[%s4 + $0x8] sm:$0xff]
    %v269 = vld [vmem:[%s4 + $0x10] sm:$0xff]
    %v270 = vld [vmem:[%s4 + $0x18] sm:$0xff]
    %v271 = vld [vmem:[%s5] sm:$0x1]
    %v273 = vlaneseq
    %v274 = vshrl.u32 %v273, 7
    %v275 = vsub.s32 0, %v274
    %v276 = vrot.slane %v271, %v275
    %vm278 = vcmask 261120
    %v280 = vsel %vm278, %v265, 0
    %v283 = vsel %vm278, %v266, 0
    %285 = vmatprep.subr.mxu0 0.0
    %286 = vmatpush1.msra.mxu0 0.0
    %287 = vmatprep.subr.mxu0 0.0
    %288 = vmatpush1.msra.mxu0 0.0
    %289 = vmatprep.subr.mxu0 0.0
    %290 = vmatpush1.msra.mxu0 0.0
    %291 = vmatprep.subr.mxu0 0.0
    %292 = vmatpush1.msra.mxu0 0.0
    %293 = vmatprep.subr.mxu0 0.0
    %294 = vmatpush1.msra.mxu0 0.0
    %295 = vmatprep.subr.mxu0 0.0
    %296 = vmatpush1.msra.mxu0 0.0
    %297 = vmatprep.subr.mxu0 0.0
    %298 = vmatpush1.msra.mxu0 0.0
    %299 = vmatprep.subr.mxu0 0.0
    %300 = vmatpush1.msra.mxu0 0.0
    %301 = vmatprep.subr.mxu0 0.0
    %302 = vmatpush1.msra.mxu0 0.0
    %303 = vmatprep.subr.mxu0 0.0
    %304 = vmatpush1.msra.mxu0 0.0
    %305 = vmatprep.subr.mxu0 0.0
    %306 = vmatpush1.msra.mxu0 0.0
    %307 = vmatprep.subr.mxu0 0.0
    %308 = vmatpush1.msra.mxu0 0.0
    %309 = vmatprep.subr.mxu0 0.0
    %310 = vmatpush1.msra.mxu0 %v270
    %311 = vmatprep.subr.mxu0 0.0
    %312 = vmatpush1.msra.mxu0 %v269
    %313 = vmatprep.subr.mxu0 0.0
    %314 = vmatpush1.msra.mxu0 %v268
    %315 = vmatprep.subr.mxu0 0.0
    %316 = vmatpush1.msra.mxu0 %v267
    %317 = vmatprep.subr.mxu0 0.0
    %318 = vmatpush2.msra.mxu0 0.0
    %319 = vmatprep.subr.mxu0 0.0
    %320 = vmatpush2.msra.mxu0 0.0
    %321 = vmatprep.subr.mxu0 0.0
    %322 = vmatpush2.msra.mxu0 0.0
    %323 = vmatprep.subr.mxu0 0.0
    %324 = vmatpush2.msra.mxu0 0.0
    %325 = vmatprep.subr.mxu0 0.0
    %326 = vmatpush2.msra.mxu0 0.0
    %327 = vmatprep.subr.mxu0 0.0
    %328 = vmatpush2.msra.mxu0 0.0
    %329 = vmatprep.subr.mxu0 0.0
    %330 = vmatpush2.msra.mxu0 0.0
    %331 = vmatprep.subr.mxu0 0.0
    %332 = vmatpush2.msra.mxu0 0.0
    %333 = vmatprep.subr.mxu0 0.0
    %334 = vmatpush2.msra.mxu0 0.0
    %335 = vmatprep.subr.mxu0 0.0
    %336 = vmatpush2.msra.mxu0 0.0
    %337 = vmatprep.subr.mxu0 0.0
    %338 = vmatpush2.msra.mxu0 0.0
    %339 = vmatprep.subr.mxu0 0.0
    %340 = vmatpush2.msra.mxu0 0.0
    %341 = vmatprep.subr.mxu0 0.0
    %342 = vmatpush2.msra.mxu0 0.0
    %343 = vmatprep.subr.mxu0 0.0
    %344 = vmatpush2.msra.mxu0 0.0
    %345 = vmatprep.subr.mxu0 0.0
    %346 = vmatpush2.msra.mxu0 0.0
    %347 = vmatprep.subr.mxu0 0.0
    %348 = vmatpush2.msra.mxu0 0.0
    %349 = vmatprep.mubr.f32.mxu0 0.0
    %350 = vmatmul.mubr.f32.gmra.mxu0 %v280
    %v351 = vpop.f32.mrf.mxu0
    %v352 = vadd.f32 %v276, %v351
    %v353 = vpop.f32.mrf.mxu0
    %354 = vmatprep.mubr.f32.mxu0 0.0
    %355 = vmatmul.mubr.f32.gmra.mxu0 %v283
    %v356 = vpop.f32.mrf.mxu0
    %v357 = vadd.f32 %v276, %v356
    %v358 = vpop.f32.mrf.mxu0
    %359 = vdwg.mxu0
    %362 = vrot.lane.b32.xlu0 %v352, 120
    %v363 = vpop.permute.xlu0 %362
    %364 = vrot.lane.b32.xlu0 %v357, 120
    %v365 = vpop.permute.xlu0 %364
    %368 = vrot.lane.b32.xlu0 %v352, 112
    %v369 = vpop.permute.xlu0 %368
    %370 = vrot.lane.b32.xlu0 %v357, 112
    %v371 = vpop.permute.xlu0 %370
    %374 = vrot.lane.b32.xlu0 %v352, 104
    %v375 = vpop.permute.xlu0 %374
    %376 = vrot.lane.b32.xlu0 %v357, 104
    %v377 = vpop.permute.xlu0 %376
    %v380 = vmul.f32 %v352, 0.35355338
    %v381 = vmul.f32 %v357, 0.35355338
    %v382 = vmul.f32 %v363, 0.35355338
    %v383 = vmul.f32 %v365, 0.35355338
    %v384 = vmul.f32 %v369, 0.35355338
    %v385 = vmul.f32 %v371, 0.35355338
    %v386 = vmul.f32 %v375, 0.35355338
    %v387 = vmul.f32 %v377, 0.35355338
    %388 = vrot.lane.b32.xlu0 %v352, 96
    %v389 = vpop.permute.xlu0 %388
    %vm390 = vcmask 64512
    %v392 = vsel %vm390, %v380, 0
    %v394 = vsel %vm390, %v389, 0
    %396 = vmatprep.subr.mxu0 0.0
    %397 = vmatpush1.xpose.msra.mxu0 0.0
    %398 = vmatprep.subr.mxu0 0.0
    %399 = vmatpush1.xpose.msra.mxu0 0.0
    %400 = vmatprep.subr.mxu0 0.0
    %401 = vmatpush1.xpose.msra.mxu0 0.0
    %402 = vmatprep.subr.mxu0 0.0
    %403 = vmatpush1.xpose.msra.mxu0 0.0
    %404 = vmatprep.subr.mxu0 0.0
    %405 = vmatpush1.xpose.msra.mxu0 0.0
    %406 = vmatprep.subr.mxu0 0.0
    %407 = vmatpush1.xpose.msra.mxu0 0.0
    %408 = vmatprep.subr.mxu0 0.0
    %409 = vmatpush1.xpose.msra.mxu0 0.0
    %410 = vmatprep.subr.mxu0 0.0
    %411 = vmatpush1.xpose.msra.mxu0 0.0
    %412 = vmatprep.subr.mxu0 0.0
    %413 = vmatpush1.xpose.msra.mxu0 0.0
    %414 = vmatprep.subr.mxu0 0.0
    %415 = vmatpush1.xpose.msra.mxu0 0.0
    %416 = vmatprep.subr.mxu0 0.0
    %417 = vmatpush1.xpose.msra.mxu0 0.0
    %418 = vmatprep.subr.mxu0 0.0
    %419 = vmatpush1.xpose.msra.mxu0 0.0
    %420 = vmatprep.subr.mxu0 0.0
    %421 = vmatpush1.xpose.msra.mxu0 0.0
    %422 = vmatprep.subr.mxu0 0.0
    %423 = vmatpush1.xpose.msra.mxu0 0.0
    %424 = vmatprep.subr.mxu0 0.0
    %425 = vmatpush1.xpose.msra.mxu0 0.0
    %426 = vmatprep.subr.mxu0 0.0
    %427 = vmatpush1.xpose.msra.mxu0 %v394
    %428 = vmatprep.subr.mxu0 0.0
    %429 = vmatpush2.xpose.msra.mxu0 0.0
    %430 = vmatprep.subr.mxu0 0.0
    %431 = vmatpush2.xpose.msra.mxu0 0.0
    %432 = vmatprep.subr.mxu0 0.0
    %433 = vmatpush2.xpose.msra.mxu0 0.0
    %434 = vmatprep.subr.mxu0 0.0
    %435 = vmatpush2.xpose.msra.mxu0 0.0
    %436 = vmatprep.subr.mxu0 0.0
    %437 = vmatpush2.xpose.msra.mxu0 0.0
    %438 = vmatprep.subr.mxu0 0.0
    %439 = vmatpush2.xpose.msra.mxu0 0.0
    %440 = vmatprep.subr.mxu0 0.0
    %441 = vmatpush2.xpose.msra.mxu0 0.0
    %442 = vmatprep.subr.mxu0 0.0
    %443 = vmatpush2.xpose.msra.mxu0 0.0
    %444 = vmatprep.subr.mxu0 0.0
    %445 = vmatpush2.xpose.msra.mxu0 0.0
    %446 = vmatprep.subr.mxu0 0.0
    %447 = vmatpush2.xpose.msra.mxu0 0.0
    %448 = vmatprep.subr.mxu0 0.0
    %449 = vmatpush2.xpose.msra.mxu0 0.0
    %450 = vmatprep.subr.mxu0 0.0
    %451 = vmatpush2.xpose.msra.mxu0 0.0
    %452 = vmatprep.subr.mxu0 0.0
    %453 = vmatpush2.xpose.msra.mxu0 0.0
    %454 = vmatprep.subr.mxu0 0.0
    %455 = vmatpush2.xpose.msra.mxu0 0.0
    %456 = vmatprep.subr.mxu0 0.0
    %457 = vmatpush2.xpose.msra.mxu0 0.0
    %458 = vmatprep.subr.mxu0 0.0
    %459 = vmatpush2.xpose.msra.mxu0 0.0
    %460 = vmatprep.mubr.f32.mxu0 0.0
    %461 = vmatmul.mubr.f32.gmra.mxu0 %v392
    %v462 = vpop.f32.mrf.mxu0
    %v463 = vadd.f32 0.0, %v462
    %v464 = vpop.f32.mrf.mxu0
    %465 = vdwg.mxu0
    %466 = vrot.lane.b32.xlu0 %v357, 96
    %v467 = vpop.permute.xlu0 %466
    %v469 = vsel %vm390, %v381, 0
    %v471 = vsel %vm390, %v467, 0
    %473 = vmatprep.subr.mxu0 0.0
    %474 = vmatpush1.xpose.msra.mxu0 0.0
    %475 = vmatprep.subr.mxu0 0.0
    %476 = vmatpush1.xpose.msra.mxu0 0.0
    %477 = vmatprep.subr.mxu0 0.0
    %478 = vmatpush1.xpose.msra.mxu0 0.0
    %479 = vmatprep.subr.mxu0 0.0
    %480 = vmatpush1.xpose.msra.mxu0 0.0
    %481 = vmatprep.subr.mxu0 0.0
    %482 = vmatpush1.xpose.msra.mxu0 0.0
    %483 = vmatprep.subr.mxu0 0.0
    %484 = vmatpush1.xpose.msra.mxu0 0.0
    %485 = vmatprep.subr.mxu0 0.0
    %486 = vmatpush1.xpose.msra.mxu0 0.0
    %487 = vmatprep.subr.mxu0 0.0
    %488 = vmatpush1.xpose.msra.mxu0 0.0
    %489 = vmatprep.subr.mxu0 0.0
    %490 = vmatpush1.xpose.msra.mxu0 0.0
    %491 = vmatprep.subr.mxu0 0.0
    %492 = vmatpush1.xpose.msra.mxu0 0.0
    %493 = vmatprep.subr.mxu0 0.0
    %494 = vmatpush1.xpose.msra.mxu0 0.0
    %495 = vmatprep.subr.mxu0 0.0
    %496 = vmatpush1.xpose.msra.mxu0 0.0
    %497 = vmatprep.subr.mxu0 0.0
    %498 = vmatpush1.xpose.msra.mxu0 0.0
    %499 = vmatprep.subr.mxu0 0.0
    %500 = vmatpush1.xpose.msra.mxu0 0.0
    %501 = vmatprep.subr.mxu0 0.0
    %502 = vmatpush1.xpose.msra.mxu0 0.0
    %503 = vmatprep.subr.mxu0 0.0
    %504 = vmatpush1.xpose.msra.mxu0 %v471
    %505 = vmatprep.subr.mxu0 0.0
    %506 = vmatpush2.xpose.msra.mxu0 0.0
    %507 = vmatprep.subr.mxu0 0.0
    %508 = vmatpush2.xpose.msra.mxu0 0.0
    %509 = vmatprep.subr.mxu0 0.0
    %510 = vmatpush2.xpose.msra.mxu0 0.0
    %511 = vmatprep.subr.mxu0 0.0
    %512 = vmatpush2.xpose.msra.mxu0 0.0
    %513 = vmatprep.subr.mxu0 0.0
    %514 = vmatpush2.xpose.msra.mxu0 0.0
    %515 = vmatprep.subr.mxu0 0.0
    %516 = vmatpush2.xpose.msra.mxu0 0.0
    %517 = vmatprep.subr.mxu0 0.0
    %518 = vmatpush2.xpose.msra.mxu0 0.0
    %519 = vmatprep.subr.mxu0 0.0
    %520 = vmatpush2.xpose.msra.mxu0 0.0
    %521 = vmatprep.subr.mxu0 0.0
    %522 = vmatpush2.xpose.msra.mxu0 0.0
    %523 = vmatprep.subr.mxu0 0.0
    %524 = vmatpush2.xpose.msra.mxu0 0.0
    %525 = vmatprep.subr.mxu0 0.0
    %526 = vmatpush2.xpose.msra.mxu0 0.0
    %527 = vmatprep.subr.mxu0 0.0
    %528 = vmatpush2.xpose.msra.mxu0 0.0
    %529 = vmatprep.subr.mxu0 0.0
    %530 = vmatpush2.xpose.msra.mxu0 0.0
    %531 = vmatprep.subr.mxu0 0.0
    %532 = vmatpush2.xpose.msra.mxu0 0.0
    %533 = vmatprep.subr.mxu0 0.0
    %534 = vmatpush2.xpose.msra.mxu0 0.0
    %535 = vmatprep.subr.mxu0 0.0
    %536 = vmatpush2.xpose.msra.mxu0 0.0
    %537 = vmatprep.mubr.f32.mxu0 0.0
    %538 = vmatmul.mubr.f32.gmra.mxu0 %v469
    %v539 = vpop.f32.mrf.mxu0
    %v540 = vadd.f32 0.0, %v539
    %v541 = vpop.f32.mrf.mxu0
    %542 = vdwg.mxu0
    %543 = vrot.lane.b32.xlu0 %v363, 96
    %v544 = vpop.permute.xlu0 %543
    %v546 = vsel %vm390, %v382, 0
    %v548 = vsel %vm390, %v544, 0
    %550 = vmatprep.subr.mxu0 0.0
    %551 = vmatpush1.xpose.msra.mxu0 0.0
    %552 = vmatprep.subr.mxu0 0.0
    %553 = vmatpush1.xpose.msra.mxu0 0.0
    %554 = vmatprep.subr.mxu0 0.0
    %555 = vmatpush1.xpose.msra.mxu0 0.0
    %556 = vmatprep.subr.mxu0 0.0
    %557 = vmatpush1.xpose.msra.mxu0 0.0
    %558 = vmatprep.subr.mxu0 0.0
    %559 = vmatpush1.xpose.msra.mxu0 0.0
    %560 = vmatprep.subr.mxu0 0.0
    %561 = vmatpush1.xpose.msra.mxu0 0.0
    %562 = vmatprep.subr.mxu0 0.0
    %563 = vmatpush1.xpose.msra.mxu0 0.0
    %564 = vmatprep.subr.mxu0 0.0
    %565 = vmatpush1.xpose.msra.mxu0 0.0
    %566 = vmatprep.subr.mxu0 0.0
    %567 = vmatpush1.xpose.msra.mxu0 0.0
    %568 = vmatprep.subr.mxu0 0.0
    %569 = vmatpush1.xpose.msra.mxu0 0.0
    %570 = vmatprep.subr.mxu0 0.0
    %571 = vmatpush1.xpose.msra.mxu0 0.0
    %572 = vmatprep.subr.mxu0 0.0
    %573 = vmatpush1.xpose.msra.mxu0 0.0
    %574 = vmatprep.subr.mxu0 0.0
    %575 = vmatpush1.xpose.msra.mxu0 0.0
    %576 = vmatprep.subr.mxu0 0.0
    %577 = vmatpush1.xpose.msra.mxu0 0.0
    %578 = vmatprep.subr.mxu0 0.0
    %579 = vmatpush1.xpose.msra.mxu0 0.0
    %580 = vmatprep.subr.mxu0 0.0
    %581 = vmatpush1.xpose.msra.mxu0 %v548
    %582 = vmatprep.subr.mxu0 0.0
    %583 = vmatpush2.xpose.msra.mxu0 0.0
    %584 = vmatprep.subr.mxu0 0.0
    %585 = vmatpush2.xpose.msra.mxu0 0.0
    %586 = vmatprep.subr.mxu0 0.0
    %587 = vmatpush2.xpose.msra.mxu0 0.0
    %588 = vmatprep.subr.mxu0 0.0
    %589 = vmatpush2.xpose.msra.mxu0 0.0
    %590 = vmatprep.subr.mxu0 0.0
    %591 = vmatpush2.xpose.msra.mxu0 0.0
    %592 = vmatprep.subr.mxu0 0.0
    %593 = vmatpush2.xpose.msra.mxu0 0.0
    %594 = vmatprep.subr.mxu0 0.0
    %595 = vmatpush2.xpose.msra.mxu0 0.0
    %596 = vmatprep.subr.mxu0 0.0
    %597 = vmatpush2.xpose.msra.mxu0 0.0
    %598 = vmatprep.subr.mxu0 0.0
    %599 = vmatpush2.xpose.msra.mxu0 0.0
    %600 = vmatprep.subr.mxu0 0.0
    %601 = vmatpush2.xpose.msra.mxu0 0.0
    %602 = vmatprep.subr.mxu0 0.0
    %603 = vmatpush2.xpose.msra.mxu0 0.0
    %604 = vmatprep.subr.mxu0 0.0
    %605 = vmatpush2.xpose.msra.mxu0 0.0
    %606 = vmatprep.subr.mxu0 0.0
    %607 = vmatpush2.xpose.msra.mxu0 0.0
    %608 = vmatprep.subr.mxu0 0.0
    %609 = vmatpush2.xpose.msra.mxu0 0.0
    %610 = vmatprep.subr.mxu0 0.0
    %611 = vmatpush2.xpose.msra.mxu0 0.0
    %612 = vmatprep.subr.mxu0 0.0
    %613 = vmatpush2.xpose.msra.mxu0 0.0
    %614 = vmatprep.mubr.f32.mxu0 0.0
    %615 = vmatmul.mubr.f32.gmra.mxu0 %v546
    %v616 = vpop.f32.mrf.mxu0
    %v617 = vadd.f32 0.0, %v616
    %v618 = vpop.f32.mrf.mxu0
    %619 = vdwg.mxu0
    %620 = vrot.lane.b32.xlu0 %v365, 96
    %v621 = vpop.permute.xlu0 %620
    %v623 = vsel %vm390, %v383, 0
    %v625 = vsel %vm390, %v621, 0
    %627 = vmatprep.subr.mxu0 0.0
    %628 = vmatpush1.xpose.msra.mxu0 0.0
    %629 = vmatprep.subr.mxu0 0.0
    %630 = vmatpush1.xpose.msra.mxu0 0.0
    %631 = vmatprep.subr.mxu0 0.0
    %632 = vmatpush1.xpose.msra.mxu0 0.0
    %633 = vmatprep.subr.mxu0 0.0
    %634 = vmatpush1.xpose.msra.mxu0 0.0
    %635 = vmatprep.subr.mxu0 0.0
    %636 = vmatpush1.xpose.msra.mxu0 0.0
    %637 = vmatprep.subr.mxu0 0.0
    %638 = vmatpush1.xpose.msra.mxu0 0.0
    %639 = vmatprep.subr.mxu0 0.0
    %640 = vmatpush1.xpose.msra.mxu0 0.0
    %641 = vmatprep.subr.mxu0 0.0
    %642 = vmatpush1.xpose.msra.mxu0 0.0
    %643 = vmatprep.subr.mxu0 0.0
    %644 = vmatpush1.xpose.msra.mxu0 0.0
    %645 = vmatprep.subr.mxu0 0.0
    %646 = vmatpush1.xpose.msra.mxu0 0.0
    %647 = vmatprep.subr.mxu0 0.0
    %648 = vmatpush1.xpose.msra.mxu0 0.0
    %649 = vmatprep.subr.mxu0 0.0
    %650 = vmatpush1.xpose.msra.mxu0 0.0
    %651 = vmatprep.subr.mxu0 0.0
    %652 = vmatpush1.xpose.msra.mxu0 0.0
    %653 = vmatprep.subr.mxu0 0.0
    %654 = vmatpush1.xpose.msra.mxu0 0.0
    %655 = vmatprep.subr.mxu0 0.0
    %656 = vmatpush1.xpose.msra.mxu0 0.0
    %657 = vmatprep.subr.mxu0 0.0
    %658 = vmatpush1.xpose.msra.mxu0 %v625
    %659 = vmatprep.subr.mxu0 0.0
    %660 = vmatpush2.xpose.msra.mxu0 0.0
    %661 = vmatprep.subr.mxu0 0.0
    %662 = vmatpush2.xpose.msra.mxu0 0.0
    %663 = vmatprep.subr.mxu0 0.0
    %664 = vmatpush2.xpose.msra.mxu0 0.0
    %665 = vmatprep.subr.mxu0 0.0
    %666 = vmatpush2.xpose.msra.mxu0 0.0
    %667 = vmatprep.subr.mxu0 0.0
    %668 = vmatpush2.xpose.msra.mxu0 0.0
    %669 = vmatprep.subr.mxu0 0.0
    %670 = vmatpush2.xpose.msra.mxu0 0.0
    %671 = vmatprep.subr.mxu0 0.0
    %672 = vmatpush2.xpose.msra.mxu0 0.0
    %673 = vmatprep.subr.mxu0 0.0
    %674 = vmatpush2.xpose.msra.mxu0 0.0
    %675 = vmatprep.subr.mxu0 0.0
    %676 = vmatpush2.xpose.msra.mxu0 0.0
    %677 = vmatprep.subr.mxu0 0.0
    %678 = vmatpush2.xpose.msra.mxu0 0.0
    %679 = vmatprep.subr.mxu0 0.0
    %680 = vmatpush2.xpose.msra.mxu0 0.0
    %681 = vmatprep.subr.mxu0 0.0
    %682 = vmatpush2.xpose.msra.mxu0 0.0
    %683 = vmatprep.subr.mxu0 0.0
    %684 = vmatpush2.xpose.msra.mxu0 0.0
    %685 = vmatprep.subr.mxu0 0.0
    %686 = vmatpush2.xpose.msra.mxu0 0.0
    %687 = vmatprep.subr.mxu0 0.0
    %688 = vmatpush2.xpose.msra.mxu0 0.0
    %689 = vmatprep.subr.mxu0 0.0
    %690 = vmatpush2.xpose.msra.mxu0 0.0
    %691 = vmatprep.mubr.f32.mxu0 0.0
    %692 = vmatmul.mubr.f32.gmra.mxu0 %v623
    %v693 = vpop.f32.mrf.mxu0
    %v694 = vadd.f32 0.0, %v693
    %v695 = vpop.f32.mrf.mxu0
    %696 = vdwg.mxu0
    %697 = vrot.lane.b32.xlu0 %v369, 96
    %v698 = vpop.permute.xlu0 %697
    %v700 = vsel %vm390, %v384, 0
    %v702 = vsel %vm390, %v698, 0
    %704 = vmatprep.subr.mxu0 0.0
    %705 = vmatpush1.xpose.msra.mxu0 0.0
    %706 = vmatprep.subr.mxu0 0.0
    %707 = vmatpush1.xpose.msra.mxu0 0.0
    %708 = vmatprep.subr.mxu0 0.0
    %709 = vmatpush1.xpose.msra.mxu0 0.0
    %710 = vmatprep.subr.mxu0 0.0
    %711 = vmatpush1.xpose.msra.mxu0 0.0
    %712 = vmatprep.subr.mxu0 0.0
    %713 = vmatpush1.xpose.msra.mxu0 0.0
    %714 = vmatprep.subr.mxu0 0.0
    %715 = vmatpush1.xpose.msra.mxu0 0.0
    %716 = vmatprep.subr.mxu0 0.0
    %717 = vmatpush1.xpose.msra.mxu0 0.0
    %718 = vmatprep.subr.mxu0 0.0
    %719 = vmatpush1.xpose.msra.mxu0 0.0
    %720 = vmatprep.subr.mxu0 0.0
    %721 = vmatpush1.xpose.msra.mxu0 0.0
    %722 = vmatprep.subr.mxu0 0.0
    %723 = vmatpush1.xpose.msra.mxu0 0.0
    %724 = vmatprep.subr.mxu0 0.0
    %725 = vmatpush1.xpose.msra.mxu0 0.0
    %726 = vmatprep.subr.mxu0 0.0
    %727 = vmatpush1.xpose.msra.mxu0 0.0
    %728 = vmatprep.subr.mxu0 0.0
    %729 = vmatpush1.xpose.msra.mxu0 0.0
    %730 = vmatprep.subr.mxu0 0.0
    %731 = vmatpush1.xpose.msra.mxu0 0.0
    %732 = vmatprep.subr.mxu0 0.0
    %733 = vmatpush1.xpose.msra.mxu0 0.0
    %734 = vmatprep.subr.mxu0 0.0
    %735 = vmatpush1.xpose.msra.mxu0 %v702
    %736 = vmatprep.subr.mxu0 0.0
    %737 = vmatpush2.xpose.msra.mxu0 0.0
    %738 = vmatprep.subr.mxu0 0.0
    %739 = vmatpush2.xpose.msra.mxu0 0.0
    %740 = vmatprep.subr.mxu0 0.0
    %741 = vmatpush2.xpose.msra.mxu0 0.0
    %742 = vmatprep.subr.mxu0 0.0
    %743 = vmatpush2.xpose.msra.mxu0 0.0
    %744 = vmatprep.subr.mxu0 0.0
    %745 = vmatpush2.xpose.msra.mxu0 0.0
    %746 = vmatprep.subr.mxu0 0.0
    %747 = vmatpush2.xpose.msra.mxu0 0.0
    %748 = vmatprep.subr.mxu0 0.0
    %749 = vmatpush2.xpose.msra.mxu0 0.0
    %750 = vmatprep.subr.mxu0 0.0
    %751 = vmatpush2.xpose.msra.mxu0 0.0
    %752 = vmatprep.subr.mxu0 0.0
    %753 = vmatpush2.xpose.msra.mxu0 0.0
    %754 = vmatprep.subr.mxu0 0.0
    %755 = vmatpush2.xpose.msra.mxu0 0.0
    %756 = vmatprep.subr.mxu0 0.0
    %757 = vmatpush2.xpose.msra.mxu0 0.0
    %758 = vmatprep.subr.mxu0 0.0
    %759 = vmatpush2.xpose.msra.mxu0 0.0
    %760 = vmatprep.subr.mxu0 0.0
    %761 = vmatpush2.xpose.msra.mxu0 0.0
    %762 = vmatprep.subr.mxu0 0.0
    %763 = vmatpush2.xpose.msra.mxu0 0.0
    %764 = vmatprep.subr.mxu0 0.0
    %765 = vmatpush2.xpose.msra.mxu0 0.0
    %766 = vmatprep.subr.mxu0 0.0
    %767 = vmatpush2.xpose.msra.mxu0 0.0
    %768 = vmatprep.mubr.f32.mxu0 0.0
    %769 = vmatmul.mubr.f32.gmra.mxu0 %v700
    %v770 = vpop.f32.mrf.mxu0
    %v771 = vadd.f32 0.0, %v770
    %v772 = vpop.f32.mrf.mxu0
    %773 = vdwg.mxu0
    %774 = vrot.lane.b32.xlu0 %v371, 96
    %v775 = vpop.permute.xlu0 %774
    %v777 = vsel %vm390, %v385, 0
    %v779 = vsel %vm390, %v775, 0
    %781 = vmatprep.subr.mxu0 0.0
    %782 = vmatpush1.xpose.msra.mxu0 0.0
    %783 = vmatprep.subr.mxu0 0.0
    %784 = vmatpush1.xpose.msra.mxu0 0.0
    %785 = vmatprep.subr.mxu0 0.0
    %786 = vmatpush1.xpose.msra.mxu0 0.0
    %787 = vmatprep.subr.mxu0 0.0
    %788 = vmatpush1.xpose.msra.mxu0 0.0
    %789 = vmatprep.subr.mxu0 0.0
    %790 = vmatpush1.xpose.msra.mxu0 0.0
    %791 = vmatprep.subr.mxu0 0.0
    %792 = vmatpush1.xpose.msra.mxu0 0.0
    %793 = vmatprep.subr.mxu0 0.0
    %794 = vmatpush1.xpose.msra.mxu0 0.0
    %795 = vmatprep.subr.mxu0 0.0
    %796 = vmatpush1.xpose.msra.mxu0 0.0
    %797 = vmatprep.subr.mxu0 0.0
    %798 = vmatpush1.xpose.msra.mxu0 0.0
    %799 = vmatprep.subr.mxu0 0.0
    %800 = vmatpush1.xpose.msra.mxu0 0.0
    %801 = vmatprep.subr.mxu0 0.0
    %802 = vmatpush1.xpose.msra.mxu0 0.0
    %803 = vmatprep.subr.mxu0 0.0
    %804 = vmatpush1.xpose.msra.mxu0 0.0
    %805 = vmatprep.subr.mxu0 0.0
    %806 = vmatpush1.xpose.msra.mxu0 0.0
    %807 = vmatprep.subr.mxu0 0.0
    %808 = vmatpush1.xpose.msra.mxu0 0.0
    %809 = vmatprep.subr.mxu0 0.0
    %810 = vmatpush1.xpose.msra.mxu0 0.0
    %811 = vmatprep.subr.mxu0 0.0
    %812 = vmatpush1.xpose.msra.mxu0 %v779
    %813 = vmatprep.subr.mxu0 0.0
    %814 = vmatpush2.xpose.msra.mxu0 0.0
    %815 = vmatprep.subr.mxu0 0.0
    %816 = vmatpush2.xpose.msra.mxu0 0.0
    %817 = vmatprep.subr.mxu0 0.0
    %818 = vmatpush2.xpose.msra.mxu0 0.0
    %819 = vmatprep.subr.mxu0 0.0
    %820 = vmatpush2.xpose.msra.mxu0 0.0
    %821 = vmatprep.subr.mxu0 0.0
    %822 = vmatpush2.xpose.msra.mxu0 0.0
    %823 = vmatprep.subr.mxu0 0.0
    %824 = vmatpush2.xpose.msra.mxu0 0.0
    %825 = vmatprep.subr.mxu0 0.0
    %826 = vmatpush2.xpose.msra.mxu0 0.0
    %827 = vmatprep.subr.mxu0 0.0
    %828 = vmatpush2.xpose.msra.mxu0 0.0
    %829 = vmatprep.subr.mxu0 0.0
    %830 = vmatpush2.xpose.msra.mxu0 0.0
    %831 = vmatprep.subr.mxu0 0.0
    %832 = vmatpush2.xpose.msra.mxu0 0.0
    %833 = vmatprep.subr.mxu0 0.0
    %834 = vmatpush2.xpose.msra.mxu0 0.0
    %835 = vmatprep.subr.mxu0 0.0
    %836 = vmatpush2.xpose.msra.mxu0 0.0
    %837 = vmatprep.subr.mxu0 0.0
    %838 = vmatpush2.xpose.msra.mxu0 0.0
    %839 = vmatprep.subr.mxu0 0.0
    %840 = vmatpush2.xpose.msra.mxu0 0.0
    %841 = vmatprep.subr.mxu0 0.0
    %842 = vmatpush2.xpose.msra.mxu0 0.0
    %843 = vmatprep.subr.mxu0 0.0
    %844 = vmatpush2.xpose.msra.mxu0 0.0
    %845 = vmatprep.mubr.f32.mxu0 0.0
    %846 = vmatmul.mubr.f32.gmra.mxu0 %v777
    %v847 = vpop.f32.mrf.mxu0
    %v848 = vadd.f32 0.0, %v847
    %v849 = vpop.f32.mrf.mxu0
    %850 = vdwg.mxu0
    %851 = vrot.lane.b32.xlu0 %v375, 96
    %v852 = vpop.permute.xlu0 %851
    %v854 = vsel %vm390, %v386, 0
    %v856 = vsel %vm390, %v852, 0
    %858 = vmatprep.subr.mxu0 0.0
    %859 = vmatpush1.xpose.msra.mxu0 0.0
    %860 = vmatprep.subr.mxu0 0.0
    %861 = vmatpush1.xpose.msra.mxu0 0.0
    %862 = vmatprep.subr.mxu0 0.0
    %863 = vmatpush1.xpose.msra.mxu0 0.0
    %864 = vmatprep.subr.mxu0 0.0
    %865 = vmatpush1.xpose.msra.mxu0 0.0
    %866 = vmatprep.subr.mxu0 0.0
    %867 = vmatpush1.xpose.msra.mxu0 0.0
    %868 = vmatprep.subr.mxu0 0.0
    %869 = vmatpush1.xpose.msra.mxu0 0.0
    %870 = vmatprep.subr.mxu0 0.0
    %871 = vmatpush1.xpose.msra.mxu0 0.0
    %872 = vmatprep.subr.mxu0 0.0
    %873 = vmatpush1.xpose.msra.mxu0 0.0
    %874 = vmatprep.subr.mxu0 0.0
    %875 = vmatpush1.xpose.msra.mxu0 0.0
    %876 = vmatprep.subr.mxu0 0.0
    %877 = vmatpush1.xpose.msra.mxu0 0.0
    %878 = vmatprep.subr.mxu0 0.0
    %879 = vmatpush1.xpose.msra.mxu0 0.0
    %880 = vmatprep.subr.mxu0 0.0
    %881 = vmatpush1.xpose.msra.mxu0 0.0
    %882 = vmatprep.subr.mxu0 0.0
    %883 = vmatpush1.xpose.msra.mxu0 0.0
    %884 = vmatprep.subr.mxu0 0.0
    %885 = vmatpush1.xpose.msra.mxu0 0.0
    %886 = vmatprep.subr.mxu0 0.0
    %887 = vmatpush1.xpose.msra.mxu0 0.0
    %888 = vmatprep.subr.mxu0 0.0
    %889 = vmatpush1.xpose.msra.mxu0 %v856
    %890 = vmatprep.subr.mxu0 0.0
    %891 = vmatpush2.xpose.msra.mxu0 0.0
    %892 = vmatprep.subr.mxu0 0.0
    %893 = vmatpush2.xpose.msra.mxu0 0.0
    %894 = vmatprep.subr.mxu0 0.0
    %895 = vmatpush2.xpose.msra.mxu0 0.0
    %896 = vmatprep.subr.mxu0 0.0
    %897 = vmatpush2.xpose.msra.mxu0 0.0
    %898 = vmatprep.subr.mxu0 0.0
    %899 = vmatpush2.xpose.msra.mxu0 0.0
    %900 = vmatprep.subr.mxu0 0.0
    %901 = vmatpush2.xpose.msra.mxu0 0.0
    %902 = vmatprep.subr.mxu0 0.0
    %903 = vmatpush2.xpose.msra.mxu0 0.0
    %904 = vmatprep.subr.mxu0 0.0
    %905 = vmatpush2.xpose.msra.mxu0 0.0
    %906 = vmatprep.subr.mxu0 0.0
    %907 = vmatpush2.xpose.msra.mxu0 0.0
    %908 = vmatprep.subr.mxu0 0.0
    %909 = vmatpush2.xpose.msra.mxu0 0.0
    %910 = vmatprep.subr.mxu0 0.0
    %911 = vmatpush2.xpose.msra.mxu0 0.0
    %912 = vmatprep.subr.mxu0 0.0
    %913 = vmatpush2.xpose.msra.mxu0 0.0
    %914 = vmatprep.subr.mxu0 0.0
    %915 = vmatpush2.xpose.msra.mxu0 0.0
    %916 = vmatprep.subr.mxu0 0.0
    %917 = vmatpush2.xpose.msra.mxu0 0.0
    %918 = vmatprep.subr.mxu0 0.0
    %919 = vmatpush2.xpose.msra.mxu0 0.0
    %920 = vmatprep.subr.mxu0 0.0
    %921 = vmatpush2.xpose.msra.mxu0 0.0
    %922 = vmatprep.mubr.f32.mxu0 0.0
    %923 = vmatmul.mubr.f32.gmra.mxu0 %v854
    %v924 = vpop.f32.mrf.mxu0
    %v925 = vadd.f32 0.0, %v924
    %v926 = vpop.f32.mrf.mxu0
    %927 = vdwg.mxu0
    %928 = vrot.lane.b32.xlu0 %v377, 96
    %v929 = vpop.permute.xlu0 %928
    %v931 = vsel %vm390, %v387, 0
    %v933 = vsel %vm390, %v929, 0
    %935 = vmatprep.subr.mxu0 0.0
    %936 = vmatpush1.xpose.msra.mxu0 0.0
    %937 = vmatprep.subr.mxu0 0.0
    %938 = vmatpush1.xpose.msra.mxu0 0.0
    %939 = vmatprep.subr.mxu0 0.0
    %940 = vmatpush1.xpose.msra.mxu0 0.0
    %941 = vmatprep.subr.mxu0 0.0
    %942 = vmatpush1.xpose.msra.mxu0 0.0
    %943 = vmatprep.subr.mxu0 0.0
    %944 = vmatpush1.xpose.msra.mxu0 0.0
    %945 = vmatprep.subr.mxu0 0.0
    %946 = vmatpush1.xpose.msra.mxu0 0.0
    %947 = vmatprep.subr.mxu0 0.0
    %948 = vmatpush1.xpose.msra.mxu0 0.0
    %949 = vmatprep.subr.mxu0 0.0
    %950 = vmatpush1.xpose.msra.mxu0 0.0
    %951 = vmatprep.subr.mxu0 0.0
    %952 = vmatpush1.xpose.msra.mxu0 0.0
    %953 = vmatprep.subr.mxu0 0.0
    %954 = vmatpush1.xpose.msra.mxu0 0.0
    %955 = vmatprep.subr.mxu0 0.0
    %956 = vmatpush1.xpose.msra.mxu0 0.0
    %957 = vmatprep.subr.mxu0 0.0
    %958 = vmatpush1.xpose.msra.mxu0 0.0
    %959 = vmatprep.subr.mxu0 0.0
    %960 = vmatpush1.xpose.msra.mxu0 0.0
    %961 = vmatprep.subr.mxu0 0.0
    %962 = vmatpush1.xpose.msra.mxu0 0.0
    %963 = vmatprep.subr.mxu0 0.0
    %964 = vmatpush1.xpose.msra.mxu0 0.0
    %965 = vmatprep.subr.mxu0 0.0
    %966 = vmatpush1.xpose.msra.mxu0 %v933
    %967 = vmatprep.subr.mxu0 0.0
    %968 = vmatpush2.xpose.msra.mxu0 0.0
    %969 = vmatprep.subr.mxu0 0.0
    %970 = vmatpush2.xpose.msra.mxu0 0.0
    %971 = vmatprep.subr.mxu0 0.0
    %972 = vmatpush2.xpose.msra.mxu0 0.0
    %973 = vmatprep.subr.mxu0 0.0
    %974 = vmatpush2.xpose.msra.mxu0 0.0
    %975 = vmatprep.subr.mxu0 0.0
    %976 = vmatpush2.xpose.msra.mxu0 0.0
    %977 = vmatprep.subr.mxu0 0.0
    %978 = vmatpush2.xpose.msra.mxu0 0.0
    %979 = vmatprep.subr.mxu0 0.0
    %980 = vmatpush2.xpose.msra.mxu0 0.0
    %981 = vmatprep.subr.mxu0 0.0
    %982 = vmatpush2.xpose.msra.mxu0 0.0
    %983 = vmatprep.subr.mxu0 0.0
    %984 = vmatpush2.xpose.msra.mxu0 0.0
    %985 = vmatprep.subr.mxu0 0.0
    %986 = vmatpush2.xpose.msra.mxu0 0.0
    %987 = vmatprep.subr.mxu0 0.0
    %988 = vmatpush2.xpose.msra.mxu0 0.0
    %989 = vmatprep.subr.mxu0 0.0
    %990 = vmatpush2.xpose.msra.mxu0 0.0
    %991 = vmatprep.subr.mxu0 0.0
    %992 = vmatpush2.xpose.msra.mxu0 0.0
    %993 = vmatprep.subr.mxu0 0.0
    %994 = vmatpush2.xpose.msra.mxu0 0.0
    %995 = vmatprep.subr.mxu0 0.0
    %996 = vmatpush2.xpose.msra.mxu0 0.0
    %997 = vmatprep.subr.mxu0 0.0
    %998 = vmatpush2.xpose.msra.mxu0 0.0
    %999 = vmatprep.mubr.f32.mxu0 0.0
    %1000 = vmatmul.mubr.f32.gmra.mxu0 %v931
    %v1001 = vpop.f32.mrf.mxu0
    %v1002 = vadd.f32 0.0, %v1001
    %v1003 = vpop.f32.mrf.mxu0
    %1004 = vdwg.mxu0
    %v1005 = vsel %vm390, %v463, -inf
    %1006 = vmax.xlane.f32.xlu0 %v1005
    %v1007 = vpop.xlane.xlu0 %1006
    %v1008 = vsel %vm390, %v540, -inf
    %1009 = vmax.xlane.f32.xlu0 %v1008
    %v1010 = vpop.xlane.xlu0 %1009
    %v1011 = vsel %vm390, %v617, -inf
    %1012 = vmax.xlane.f32.xlu0 %v1011
    %v1013 = vpop.xlane.xlu0 %1012
    %v1014 = vsel %vm390, %v694, -inf
    %1015 = vmax.xlane.f32.xlu0 %v1014
    %v1016 = vpop.xlane.xlu0 %1015
    %v1017 = vsel %vm390, %v771, -inf
    %1018 = vmax.xlane.f32.xlu0 %v1017
    %v1019 = vpop.xlane.xlu0 %1018
    %v1020 = vsel %vm390, %v848, -inf
    %1021 = vmax.xlane.f32.xlu0 %v1020
    %v1022 = vpop.xlane.xlu0 %1021
    %v1023 = vsel %vm390, %v925, -inf
    %1024 = vmax.xlane.f32.xlu0 %v1023
    %v1025 = vpop.xlane.xlu0 %1024
    %v1026 = vsel %vm390, %v1002, -inf
    %1027 = vmax.xlane.f32.xlu0 %v1026
    %v1028 = vpop.xlane.xlu0 %1027
    %v1029 = vsub.f32 %v463, %v1007
    %v1030 = vsub.f32 %v540, %v1010
    %v1031 = vsub.f32 %v617, %v1013
    %v1032 = vsub.f32 %v694, %v1016
    %v1033 = vsub.f32 %v771, %v1019
    %v1034 = vsub.f32 %v848, %v1022
    %v1035 = vsub.f32 %v925, %v1025
    %v1036 = vsub.f32 %v1002, %v1028
    %v1037 = vmul.f32 %v1029, 1.442695
    %v1038 = vpow.pop %v1037
    %v1039 = vmul.f32 %v1030, 1.442695
    %v1040 = vpow.pop %v1039
    %v1041 = vmul.f32 %v1031, 1.442695
    %v1042 = vpow.pop %v1041
    %v1043 = vmul.f32 %v1032, 1.442695
    %v1044 = vpow.pop %v1043
    %v1045 = vmul.f32 %v1033, 1.442695
    %v1046 = vpow.pop %v1045
    %v1047 = vmul.f32 %v1034, 1.442695
    %v1048 = vpow.pop %v1047
    %v1049 = vmul.f32 %v1035, 1.442695
    %v1050 = vpow.pop %v1049
    %v1051 = vmul.f32 %v1036, 1.442695
    %v1052 = vpow.pop %v1051
    %v1053 = vsel %vm390, %v1038, 0.0
    %1054 = vadd.xlane.f32.xlu0 %v1053
    %v1055 = vpop.xlane.xlu0 %1054
    %v1056 = vsel %vm390, %v1040, 0.0
    %1057 = vadd.xlane.f32.xlu0 %v1056
    %v1058 = vpop.xlane.xlu0 %1057
    %v1059 = vsel %vm390, %v1042, 0.0
    %1060 = vadd.xlane.f32.xlu0 %v1059
    %v1061 = vpop.xlane.xlu0 %1060
    %v1062 = vsel %vm390, %v1044, 0.0
    %1063 = vadd.xlane.f32.xlu0 %v1062
    %v1064 = vpop.xlane.xlu0 %1063
    %v1065 = vsel %vm390, %v1046, 0.0
    %1066 = vadd.xlane.f32.xlu0 %v1065
    %v1067 = vpop.xlane.xlu0 %1066
    %v1068 = vsel %vm390, %v1048, 0.0
    %1069 = vadd.xlane.f32.xlu0 %v1068
    %v1070 = vpop.xlane.xlu0 %1069
    %v1071 = vsel %vm390, %v1050, 0.0
    %1072 = vadd.xlane.f32.xlu0 %v1071
    %v1073 = vpop.xlane.xlu0 %1072
    %v1074 = vsel %vm390, %v1052, 0.0
    %1075 = vadd.xlane.f32.xlu0 %v1074
    %v1076 = vpop.xlane.xlu0 %1075
    %v1077 = vrcp.pop %v1055
    %v1078 = vrcp.pop %v1058
    %v1079 = vrcp.pop %v1061
    %v1080 = vrcp.pop %v1064
    %v1081 = vrcp.pop %v1067
    %v1082 = vrcp.pop %v1070
    %v1083 = vrcp.pop %v1073
    %v1084 = vrcp.pop %v1076
    %v1085 = vmul.f32 %v1038, %v1077
    %v1086 = vmul.f32 %v1040, %v1078
    %v1087 = vmul.f32 %v1042, %v1079
    %v1088 = vmul.f32 %v1044, %v1080
    %v1089 = vmul.f32 %v1046, %v1081
    %v1090 = vmul.f32 %v1048, %v1082
    %v1091 = vmul.f32 %v1050, %v1083
    %v1092 = vmul.f32 %v1052, %v1084
    %1093 = vrot.lane.b32.xlu0 %v352, 64
    %v1094 = vpop.permute.xlu0 %1093
    %v1097 = vsel %vm390, %v1085, 0
    %1099 = vmatprep.subr.mxu0 0.0
    %1100 = vmatpush1.msra.mxu0 0.0
    %1101 = vmatprep.subr.mxu0 0.0
    %1102 = vmatpush1.msra.mxu0 0.0
    %1103 = vmatprep.subr.mxu0 0.0
    %1104 = vmatpush1.msra.mxu0 0.0
    %1105 = vmatprep.subr.mxu0 0.0
    %1106 = vmatpush1.msra.mxu0 0.0
    %1107 = vmatprep.subr.mxu0 0.0
    %1108 = vmatpush1.msra.mxu0 0.0
    %1109 = vmatprep.subr.mxu0 0.0
    %1110 = vmatpush1.msra.mxu0 0.0
    %1111 = vmatprep.subr.mxu0 0.0
    %1112 = vmatpush1.msra.mxu0 0.0
    %1113 = vmatprep.subr.mxu0 0.0
    %1114 = vmatpush1.msra.mxu0 0.0
    %1115 = vmatprep.subr.mxu0 0.0
    %1116 = vmatpush1.msra.mxu0 0.0
    %1117 = vmatprep.subr.mxu0 0.0
    %1118 = vmatpush1.msra.mxu0 0.0
    %1119 = vmatprep.subr.mxu0 0.0
    %1120 = vmatpush1.msra.mxu0 0.0
    %1121 = vmatprep.subr.mxu0 0.0
    %1122 = vmatpush1.msra.mxu0 0.0
    %1123 = vmatprep.subr.mxu0 0.0
    %1124 = vmatpush1.msra.mxu0 0.0
    %1125 = vmatprep.subr.mxu0 0.0
    %1126 = vmatpush1.msra.mxu0 0.0
    %1127 = vmatprep.subr.mxu0 0.0
    %1128 = vmatpush1.msra.mxu0 0.0
    %1129 = vmatprep.subr.mxu0 0.0
    %1130 = vmatpush1.msra.mxu0 %v1094
    %1131 = vmatprep.subr.mxu0 0.0
    %1132 = vmatpush2.msra.mxu0 0.0
    %1133 = vmatprep.subr.mxu0 0.0
    %1134 = vmatpush2.msra.mxu0 0.0
    %1135 = vmatprep.subr.mxu0 0.0
    %1136 = vmatpush2.msra.mxu0 0.0
    %1137 = vmatprep.subr.mxu0 0.0
    %1138 = vmatpush2.msra.mxu0 0.0
    %1139 = vmatprep.subr.mxu0 0.0
    %1140 = vmatpush2.msra.mxu0 0.0
    %1141 = vmatprep.subr.mxu0 0.0
    %1142 = vmatpush2.msra.mxu0 0.0
    %1143 = vmatprep.subr.mxu0 0.0
    %1144 = vmatpush2.msra.mxu0 0.0
    %1145 = vmatprep.subr.mxu0 0.0
    %1146 = vmatpush2.msra.mxu0 0.0
    %1147 = vmatprep.subr.mxu0 0.0
    %1148 = vmatpush2.msra.mxu0 0.0
    %1149 = vmatprep.subr.mxu0 0.0
    %1150 = vmatpush2.msra.mxu0 0.0
    %1151 = vmatprep.subr.mxu0 0.0
    %1152 = vmatpush2.msra.mxu0 0.0
    %1153 = vmatprep.subr.mxu0 0.0
    %1154 = vmatpush2.msra.mxu0 0.0
    %1155 = vmatprep.subr.mxu0 0.0
    %1156 = vmatpush2.msra.mxu0 0.0
    %1157 = vmatprep.subr.mxu0 0.0
    %1158 = vmatpush2.msra.mxu0 0.0
    %1159 = vmatprep.subr.mxu0 0.0
    %1160 = vmatpush2.msra.mxu0 0.0
    %1161 = vmatprep.subr.mxu0 0.0
    %1162 = vmatpush2.msra.mxu0 0.0
    %1163 = vmatprep.mubr.f32.mxu0 0.0
    %1164 = vmatmul.mubr.f32.gmra.mxu0 %v1097
    %v1165 = vpop.f32.mrf.mxu0
    %v1166 = vadd.f32 0.0, %v1165
    %v1167 = vpop.f32.mrf.mxu0
    %1168 = vdwg.mxu0
    %1169 = vrot.lane.b32.xlu0 %v357, 64
    %v1170 = vpop.permute.xlu0 %1169
    %v1173 = vsel %vm390, %v1086, 0
    %1175 = vmatprep.subr.mxu0 0.0
    %1176 = vmatpush1.msra.mxu0 0.0
    %1177 = vmatprep.subr.mxu0 0.0
    %1178 = vmatpush1.msra.mxu0 0.0
    %1179 = vmatprep.subr.mxu0 0.0
    %1180 = vmatpush1.msra.mxu0 0.0
    %1181 = vmatprep.subr.mxu0 0.0
    %1182 = vmatpush1.msra.mxu0 0.0
    %1183 = vmatprep.subr.mxu0 0.0
    %1184 = vmatpush1.msra.mxu0 0.0
    %1185 = vmatprep.subr.mxu0 0.0
    %1186 = vmatpush1.msra.mxu0 0.0
    %1187 = vmatprep.subr.mxu0 0.0
    %1188 = vmatpush1.msra.mxu0 0.0
    %1189 = vmatprep.subr.mxu0 0.0
    %1190 = vmatpush1.msra.mxu0 0.0
    %1191 = vmatprep.subr.mxu0 0.0
    %1192 = vmatpush1.msra.mxu0 0.0
    %1193 = vmatprep.subr.mxu0 0.0
    %1194 = vmatpush1.msra.mxu0 0.0
    %1195 = vmatprep.subr.mxu0 0.0
    %1196 = vmatpush1.msra.mxu0 0.0
    %1197 = vmatprep.subr.mxu0 0.0
    %1198 = vmatpush1.msra.mxu0 0.0
    %1199 = vmatprep.subr.mxu0 0.0
    %1200 = vmatpush1.msra.mxu0 0.0
    %1201 = vmatprep.subr.mxu0 0.0
    %1202 = vmatpush1.msra.mxu0 0.0
    %1203 = vmatprep.subr.mxu0 0.0
    %1204 = vmatpush1.msra.mxu0 0.0
    %1205 = vmatprep.subr.mxu0 0.0
    %1206 = vmatpush1.msra.mxu0 %v1170
    %1207 = vmatprep.subr.mxu0 0.0
    %1208 = vmatpush2.msra.mxu0 0.0
    %1209 = vmatprep.subr.mxu0 0.0
    %1210 = vmatpush2.msra.mxu0 0.0
    %1211 = vmatprep.subr.mxu0 0.0
    %1212 = vmatpush2.msra.mxu0 0.0
    %1213 = vmatprep.subr.mxu0 0.0
    %1214 = vmatpush2.msra.mxu0 0.0
    %1215 = vmatprep.subr.mxu0 0.0
    %1216 = vmatpush2.msra.mxu0 0.0
    %1217 = vmatprep.subr.mxu0 0.0
    %1218 = vmatpush2.msra.mxu0 0.0
    %1219 = vmatprep.subr.mxu0 0.0
    %1220 = vmatpush2.msra.mxu0 0.0
    %1221 = vmatprep.subr.mxu0 0.0
    %1222 = vmatpush2.msra.mxu0 0.0
    %1223 = vmatprep.subr.mxu0 0.0
    %1224 = vmatpush2.msra.mxu0 0.0
    %1225 = vmatprep.subr.mxu0 0.0
    %1226 = vmatpush2.msra.mxu0 0.0
    %1227 = vmatprep.subr.mxu0 0.0
    %1228 = vmatpush2.msra.mxu0 0.0
    %1229 = vmatprep.subr.mxu0 0.0
    %1230 = vmatpush2.msra.mxu0 0.0
    %1231 = vmatprep.subr.mxu0 0.0
    %1232 = vmatpush2.msra.mxu0 0.0
    %1233 = vmatprep.subr.mxu0 0.0
    %1234 = vmatpush2.msra.mxu0 0.0
    %1235 = vmatprep.subr.mxu0 0.0
    %1236 = vmatpush2.msra.mxu0 0.0
    %1237 = vmatprep.subr.mxu0 0.0
    %1238 = vmatpush2.msra.mxu0 0.0
    %1239 = vmatprep.mubr.f32.mxu0 0.0
    %1240 = vmatmul.mubr.f32.gmra.mxu0 %v1173
    %v1241 = vpop.f32.mrf.mxu0
    %v1242 = vadd.f32 0.0, %v1241
    %v1243 = vpop.f32.mrf.mxu0
    %1244 = vdwg.mxu0
    %1245 = vrot.lane.b32.xlu0 %v363, 64
    %v1246 = vpop.permute.xlu0 %1245
    %v1249 = vsel %vm390, %v1087, 0
    %1251 = vmatprep.subr.mxu0 0.0
    %1252 = vmatpush1.msra.mxu0 0.0
    %1253 = vmatprep.subr.mxu0 0.0
    %1254 = vmatpush1.msra.mxu0 0.0
    %1255 = vmatprep.subr.mxu0 0.0
    %1256 = vmatpush1.msra.mxu0 0.0
    %1257 = vmatprep.subr.mxu0 0.0
    %1258 = vmatpush1.msra.mxu0 0.0
    %1259 = vmatprep.subr.mxu0 0.0
    %1260 = vmatpush1.msra.mxu0 0.0
    %1261 = vmatprep.subr.mxu0 0.0
    %1262 = vmatpush1.msra.mxu0 0.0
    %1263 = vmatprep.subr.mxu0 0.0
    %1264 = vmatpush1.msra.mxu0 0.0
    %1265 = vmatprep.subr.mxu0 0.0
    %1266 = vmatpush1.msra.mxu0 0.0
    %1267 = vmatprep.subr.mxu0 0.0
    %1268 = vmatpush1.msra.mxu0 0.0
    %1269 = vmatprep.subr.mxu0 0.0
    %1270 = vmatpush1.msra.mxu0 0.0
    %1271 = vmatprep.subr.mxu0 0.0
    %1272 = vmatpush1.msra.mxu0 0.0
    %1273 = vmatprep.subr.mxu0 0.0
    %1274 = vmatpush1.msra.mxu0 0.0
    %1275 = vmatprep.subr.mxu0 0.0
    %1276 = vmatpush1.msra.mxu0 0.0
    %1277 = vmatprep.subr.mxu0 0.0
    %1278 = vmatpush1.msra.mxu0 0.0
    %1279 = vmatprep.subr.mxu0 0.0
    %1280 = vmatpush1.msra.mxu0 0.0
    %1281 = vmatprep.subr.mxu0 0.0
    %1282 = vmatpush1.msra.mxu0 %v1246
    %1283 = vmatprep.subr.mxu0 0.0
    %1284 = vmatpush2.msra.mxu0 0.0
    %1285 = vmatprep.subr.mxu0 0.0
    %1286 = vmatpush2.msra.mxu0 0.0
    %1287 = vmatprep.subr.mxu0 0.0
    %1288 = vmatpush2.msra.mxu0 0.0
    %1289 = vmatprep.subr.mxu0 0.0
    %1290 = vmatpush2.msra.mxu0 0.0
    %1291 = vmatprep.subr.mxu0 0.0
    %1292 = vmatpush2.msra.mxu0 0.0
    %1293 = vmatprep.subr.mxu0 0.0
    %1294 = vmatpush2.msra.mxu0 0.0
    %1295 = vmatprep.subr.mxu0 0.0
    %1296 = vmatpush2.msra.mxu0 0.0
    %1297 = vmatprep.subr.mxu0 0.0
    %1298 = vmatpush2.msra.mxu0 0.0
    %1299 = vmatprep.subr.mxu0 0.0
    %1300 = vmatpush2.msra.mxu0 0.0
    %1301 = vmatprep.subr.mxu0 0.0
    %1302 = vmatpush2.msra.mxu0 0.0
    %1303 = vmatprep.subr.mxu0 0.0
    %1304 = vmatpush2.msra.mxu0 0.0
    %1305 = vmatprep.subr.mxu0 0.0
    %1306 = vmatpush2.msra.mxu0 0.0
    %1307 = vmatprep.subr.mxu0 0.0
    %1308 = vmatpush2.msra.mxu0 0.0
    %1309 = vmatprep.subr.mxu0 0.0
    %1310 = vmatpush2.msra.mxu0 0.0
    %1311 = vmatprep.subr.mxu0 0.0
    %1312 = vmatpush2.msra.mxu0 0.0
    %1313 = vmatprep.subr.mxu0 0.0
    %1314 = vmatpush2.msra.mxu0 0.0
    %1315 = vmatprep.mubr.f32.mxu0 0.0
    %1316 = vmatmul.mubr.f32.gmra.mxu0 %v1249
    %v1317 = vpop.f32.mrf.mxu0
    %v1318 = vadd.f32 0.0, %v1317
    %v1319 = vpop.f32.mrf.mxu0
    %1320 = vdwg.mxu0
    %1321 = vrot.lane.b32.xlu0 %v365, 64
    %v1322 = vpop.permute.xlu0 %1321
    %v1325 = vsel %vm390, %v1088, 0
    %1327 = vmatprep.subr.mxu0 0.0
    %1328 = vmatpush1.msra.mxu0 0.0
    %1329 = vmatprep.subr.mxu0 0.0
    %1330 = vmatpush1.msra.mxu0 0.0
    %1331 = vmatprep.subr.mxu0 0.0
    %1332 = vmatpush1.msra.mxu0 0.0
    %1333 = vmatprep.subr.mxu0 0.0
    %1334 = vmatpush1.msra.mxu0 0.0
    %1335 = vmatprep.subr.mxu0 0.0
    %1336 = vmatpush1.msra.mxu0 0.0
    %1337 = vmatprep.subr.mxu0 0.0
    %1338 = vmatpush1.msra.mxu0 0.0
    %1339 = vmatprep.subr.mxu0 0.0
    %1340 = vmatpush1.msra.mxu0 0.0
    %1341 = vmatprep.subr.mxu0 0.0
    %1342 = vmatpush1.msra.mxu0 0.0
    %1343 = vmatprep.subr.mxu0 0.0
    %1344 = vmatpush1.msra.mxu0 0.0
    %1345 = vmatprep.subr.mxu0 0.0
    %1346 = vmatpush1.msra.mxu0 0.0
    %1347 = vmatprep.subr.mxu0 0.0
    %1348 = vmatpush1.msra.mxu0 0.0
    %1349 = vmatprep.subr.mxu0 0.0
    %1350 = vmatpush1.msra.mxu0 0.0
    %1351 = vmatprep.subr.mxu0 0.0
    %1352 = vmatpush1.msra.mxu0 0.0
    %1353 = vmatprep.subr.mxu0 0.0
    %1354 = vmatpush1.msra.mxu0 0.0
    %1355 = vmatprep.subr.mxu0 0.0
    %1356 = vmatpush1.msra.mxu0 0.0
    %1357 = vmatprep.subr.mxu0 0.0
    %1358 = vmatpush1.msra.mxu0 %v1322
    %1359 = vmatprep.subr.mxu0 0.0
    %1360 = vmatpush2.msra.mxu0 0.0
    %1361 = vmatprep.subr.mxu0 0.0
    %1362 = vmatpush2.msra.mxu0 0.0
    %1363 = vmatprep.subr.mxu0 0.0
    %1364 = vmatpush2.msra.mxu0 0.0
    %1365 = vmatprep.subr.mxu0 0.0
    %1366 = vmatpush2.msra.mxu0 0.0
    %1367 = vmatprep.subr.mxu0 0.0
    %1368 = vmatpush2.msra.mxu0 0.0
    %1369 = vmatprep.subr.mxu0 0.0
    %1370 = vmatpush2.msra.mxu0 0.0
    %1371 = vmatprep.subr.mxu0 0.0
    %1372 = vmatpush2.msra.mxu0 0.0
    %1373 = vmatprep.subr.mxu0 0.0
    %1374 = vmatpush2.msra.mxu0 0.0
    %1375 = vmatprep.subr.mxu0 0.0
    %1376 = vmatpush2.msra.mxu0 0.0
    %1377 = vmatprep.subr.mxu0 0.0
    %1378 = vmatpush2.msra.mxu0 0.0
    %1379 = vmatprep.subr.mxu0 0.0
    %1380 = vmatpush2.msra.mxu0 0.0
    %1381 = vmatprep.subr.mxu0 0.0
    %1382 = vmatpush2.msra.mxu0 0.0
    %1383 = vmatprep.subr.mxu0 0.0
    %1384 = vmatpush2.msra.mxu0 0.0
    %1385 = vmatprep.subr.mxu0 0.0
    %1386 = vmatpush2.msra.mxu0 0.0
    %1387 = vmatprep.subr.mxu0 0.0
    %1388 = vmatpush2.msra.mxu0 0.0
    %1389 = vmatprep.subr.mxu0 0.0
    %1390 = vmatpush2.msra.mxu0 0.0
    %1391 = vmatprep.mubr.f32.mxu0 0.0
    %1392 = vmatmul.mubr.f32.gmra.mxu0 %v1325
    %v1393 = vpop.f32.mrf.mxu0
    %v1394 = vadd.f32 0.0, %v1393
    %v1395 = vpop.f32.mrf.mxu0
    %1396 = vdwg.mxu0
    %1397 = vrot.lane.b32.xlu0 %v369, 64
    %v1398 = vpop.permute.xlu0 %1397
    %v1401 = vsel %vm390, %v1089, 0
    %1403 = vmatprep.subr.mxu0 0.0
    %1404 = vmatpush1.msra.mxu0 0.0
    %1405 = vmatprep.subr.mxu0 0.0
    %1406 = vmatpush1.msra.mxu0 0.0
    %1407 = vmatprep.subr.mxu0 0.0
    %1408 = vmatpush1.msra.mxu0 0.0
    %1409 = vmatprep.subr.mxu0 0.0
    %1410 = vmatpush1.msra.mxu0 0.0
    %1411 = vmatprep.subr.mxu0 0.0
    %1412 = vmatpush1.msra.mxu0 0.0
    %1413 = vmatprep.subr.mxu0 0.0
    %1414 = vmatpush1.msra.mxu0 0.0
    %1415 = vmatprep.subr.mxu0 0.0
    %1416 = vmatpush1.msra.mxu0 0.0
    %1417 = vmatprep.subr.mxu0 0.0
    %1418 = vmatpush1.msra.mxu0 0.0
    %1419 = vmatprep.subr.mxu0 0.0
    %1420 = vmatpush1.msra.mxu0 0.0
    %1421 = vmatprep.subr.mxu0 0.0
    %1422 = vmatpush1.msra.mxu0 0.0
    %1423 = vmatprep.subr.mxu0 0.0
    %1424 = vmatpush1.msra.mxu0 0.0
    %1425 = vmatprep.subr.mxu0 0.0
    %1426 = vmatpush1.msra.mxu0 0.0
    %1427 = vmatprep.subr.mxu0 0.0
    %1428 = vmatpush1.msra.mxu0 0.0
    %1429 = vmatprep.subr.mxu0 0.0
    %1430 = vmatpush1.msra.mxu0 0.0
    %1431 = vmatprep.subr.mxu0 0.0
    %1432 = vmatpush1.msra.mxu0 0.0
    %1433 = vmatprep.subr.mxu0 0.0
    %1434 = vmatpush1.msra.mxu0 %v1398
    %1435 = vmatprep.subr.mxu0 0.0
    %1436 = vmatpush2.msra.mxu0 0.0
    %1437 = vmatprep.subr.mxu0 0.0
    %1438 = vmatpush2.msra.mxu0 0.0
    %1439 = vmatprep.subr.mxu0 0.0
    %1440 = vmatpush2.msra.mxu0 0.0
    %1441 = vmatprep.subr.mxu0 0.0
    %1442 = vmatpush2.msra.mxu0 0.0
    %1443 = vmatprep.subr.mxu0 0.0
    %1444 = vmatpush2.msra.mxu0 0.0
    %1445 = vmatprep.subr.mxu0 0.0
    %1446 = vmatpush2.msra.mxu0 0.0
    %1447 = vmatprep.subr.mxu0 0.0
    %1448 = vmatpush2.msra.mxu0 0.0
    %1449 = vmatprep.subr.mxu0 0.0
    %1450 = vmatpush2.msra.mxu0 0.0
    %1451 = vmatprep.subr.mxu0 0.0
    %1452 = vmatpush2.msra.mxu0 0.0
    %1453 = vmatprep.subr.mxu0 0.0
    %1454 = vmatpush2.msra.mxu0 0.0
    %1455 = vmatprep.subr.mxu0 0.0
    %1456 = vmatpush2.msra.mxu0 0.0
    %1457 = vmatprep.subr.mxu0 0.0
    %1458 = vmatpush2.msra.mxu0 0.0
    %1459 = vmatprep.subr.mxu0 0.0
    %1460 = vmatpush2.msra.mxu0 0.0
    %1461 = vmatprep.subr.mxu0 0.0
    %1462 = vmatpush2.msra.mxu0 0.0
    %1463 = vmatprep.subr.mxu0 0.0
    %1464 = vmatpush2.msra.mxu0 0.0
    %1465 = vmatprep.subr.mxu0 0.0
    %1466 = vmatpush2.msra.mxu0 0.0
    %1467 = vmatprep.mubr.f32.mxu0 0.0
    %1468 = vmatmul.mubr.f32.gmra.mxu0 %v1401
    %v1469 = vpop.f32.mrf.mxu0
    %v1470 = vadd.f32 0.0, %v1469
    %v1471 = vpop.f32.mrf.mxu0
    %1472 = vdwg.mxu0
    %1473 = vrot.lane.b32.xlu0 %v371, 64
    %v1474 = vpop.permute.xlu0 %1473
    %v1477 = vsel %vm390, %v1090, 0
    %1479 = vmatprep.subr.mxu0 0.0
    %1480 = vmatpush1.msra.mxu0 0.0
    %1481 = vmatprep.subr.mxu0 0.0
    %1482 = vmatpush1.msra.mxu0 0.0
    %1483 = vmatprep.subr.mxu0 0.0
    %1484 = vmatpush1.msra.mxu0 0.0
    %1485 = vmatprep.subr.mxu0 0.0
    %1486 = vmatpush1.msra.mxu0 0.0
    %1487 = vmatprep.subr.mxu0 0.0
    %1488 = vmatpush1.msra.mxu0 0.0
    %1489 = vmatprep.subr.mxu0 0.0
    %1490 = vmatpush1.msra.mxu0 0.0
    %1491 = vmatprep.subr.mxu0 0.0
    %1492 = vmatpush1.msra.mxu0 0.0
    %1493 = vmatprep.subr.mxu0 0.0
    %1494 = vmatpush1.msra.mxu0 0.0
    %1495 = vmatprep.subr.mxu0 0.0
    %1496 = vmatpush1.msra.mxu0 0.0
    %1497 = vmatprep.subr.mxu0 0.0
    %1498 = vmatpush1.msra.mxu0 0.0
    %1499 = vmatprep.subr.mxu0 0.0
    %1500 = vmatpush1.msra.mxu0 0.0
    %1501 = vmatprep.subr.mxu0 0.0
    %1502 = vmatpush1.msra.mxu0 0.0
    %1503 = vmatprep.subr.mxu0 0.0
    %1504 = vmatpush1.msra.mxu0 0.0
    %1505 = vmatprep.subr.mxu0 0.0
    %1506 = vmatpush1.msra.mxu0 0.0
    %1507 = vmatprep.subr.mxu0 0.0
    %1508 = vmatpush1.msra.mxu0 0.0
    %1509 = vmatprep.subr.mxu0 0.0
    %1510 = vmatpush1.msra.mxu0 %v1474
    %1511 = vmatprep.subr.mxu0 0.0
    %1512 = vmatpush2.msra.mxu0 0.0
    %1513 = vmatprep.subr.mxu0 0.0
    %1514 = vmatpush2.msra.mxu0 0.0
    %1515 = vmatprep.subr.mxu0 0.0
    %1516 = vmatpush2.msra.mxu0 0.0
    %1517 = vmatprep.subr.mxu0 0.0
    %1518 = vmatpush2.msra.mxu0 0.0
    %1519 = vmatprep.subr.mxu0 0.0
    %1520 = vmatpush2.msra.mxu0 0.0
    %1521 = vmatprep.subr.mxu0 0.0
    %1522 = vmatpush2.msra.mxu0 0.0
    %1523 = vmatprep.subr.mxu0 0.0
    %1524 = vmatpush2.msra.mxu0 0.0
    %1525 = vmatprep.subr.mxu0 0.0
    %1526 = vmatpush2.msra.mxu0 0.0
    %1527 = vmatprep.subr.mxu0 0.0
    %1528 = vmatpush2.msra.mxu0 0.0
    %1529 = vmatprep.subr.mxu0 0.0
    %1530 = vmatpush2.msra.mxu0 0.0
    %1531 = vmatprep.subr.mxu0 0.0
    %1532 = vmatpush2.msra.mxu0 0.0
    %1533 = vmatprep.subr.mxu0 0.0
    %1534 = vmatpush2.msra.mxu0 0.0
    %1535 = vmatprep.subr.mxu0 0.0
    %1536 = vmatpush2.msra.mxu0 0.0
    %1537 = vmatprep.subr.mxu0 0.0
    %1538 = vmatpush2.msra.mxu0 0.0
    %1539 = vmatprep.subr.mxu0 0.0
    %1540 = vmatpush2.msra.mxu0 0.0
    %1541 = vmatprep.subr.mxu0 0.0
    %1542 = vmatpush2.msra.mxu0 0.0
    %1543 = vmatprep.mubr.f32.mxu0 0.0
    %1544 = vmatmul.mubr.f32.gmra.mxu0 %v1477
    %v1545 = vpop.f32.mrf.mxu0
    %v1546 = vadd.f32 0.0, %v1545
    %v1547 = vpop.f32.mrf.mxu0
    %1548 = vdwg.mxu0
    %1549 = vrot.lane.b32.xlu0 %v375, 64
    %v1550 = vpop.permute.xlu0 %1549
    %v1553 = vsel %vm390, %v1091, 0
    %1555 = vmatprep.subr.mxu0 0.0
    %1556 = vmatpush1.msra.mxu0 0.0
    %1557 = vmatprep.subr.mxu0 0.0
    %1558 = vmatpush1.msra.mxu0 0.0
    %1559 = vmatprep.subr.mxu0 0.0
    %1560 = vmatpush1.msra.mxu0 0.0
    %1561 = vmatprep.subr.mxu0 0.0
    %1562 = vmatpush1.msra.mxu0 0.0
    %1563 = vmatprep.subr.mxu0 0.0
    %1564 = vmatpush1.msra.mxu0 0.0
    %1565 = vmatprep.subr.mxu0 0.0
    %1566 = vmatpush1.msra.mxu0 0.0
    %1567 = vmatprep.subr.mxu0 0.0
    %1568 = vmatpush1.msra.mxu0 0.0
    %1569 = vmatprep.subr.mxu0 0.0
    %1570 = vmatpush1.msra.mxu0 0.0
    %1571 = vmatprep.subr.mxu0 0.0
    %1572 = vmatpush1.msra.mxu0 0.0
    %1573 = vmatprep.subr.mxu0 0.0
    %1574 = vmatpush1.msra.mxu0 0.0
    %1575 = vmatprep.subr.mxu0 0.0
    %1576 = vmatpush1.msra.mxu0 0.0
    %1577 = vmatprep.subr.mxu0 0.0
    %1578 = vmatpush1.msra.mxu0 0.0
    %1579 = vmatprep.subr.mxu0 0.0
    %1580 = vmatpush1.msra.mxu0 0.0
    %1581 = vmatprep.subr.mxu0 0.0
    %1582 = vmatpush1.msra.mxu0 0.0
    %1583 = vmatprep.subr.mxu0 0.0
    %1584 = vmatpush1.msra.mxu0 0.0
    %1585 = vmatprep.subr.mxu0 0.0
    %1586 = vmatpush1.msra.mxu0 %v1550
    %1587 = vmatprep.subr.mxu0 0.0
    %1588 = vmatpush2.msra.mxu0 0.0
    %1589 = vmatprep.subr.mxu0 0.0
    %1590 = vmatpush2.msra.mxu0 0.0
    %1591 = vmatprep.subr.mxu0 0.0
    %1592 = vmatpush2.msra.mxu0 0.0
    %1593 = vmatprep.subr.mxu0 0.0
    %1594 = vmatpush2.msra.mxu0 0.0
    %1595 = vmatprep.subr.mxu0 0.0
    %1596 = vmatpush2.msra.mxu0 0.0
    %1597 = vmatprep.subr.mxu0 0.0
    %1598 = vmatpush2.msra.mxu0 0.0
    %1599 = vmatprep.subr.mxu0 0.0
    %1600 = vmatpush2.msra.mxu0 0.0
    %1601 = vmatprep.subr.mxu0 0.0
    %1602 = vmatpush2.msra.mxu0 0.0
    %1603 = vmatprep.subr.mxu0 0.0
    %1604 = vmatpush2.msra.mxu0 0.0
    %1605 = vmatprep.subr.mxu0 0.0
    %1606 = vmatpush2.msra.mxu0 0.0
    %1607 = vmatprep.subr.mxu0 0.0
    %1608 = vmatpush2.msra.mxu0 0.0
    %1609 = vmatprep.subr.mxu0 0.0
    %1610 = vmatpush2.msra.mxu0 0.0
    %1611 = vmatprep.subr.mxu0 0.0
    %1612 = vmatpush2.msra.mxu0 0.0
    %1613 = vmatprep.subr.mxu0 0.0
    %1614 = vmatpush2.msra.mxu0 0.0
    %1615 = vmatprep.subr.mxu0 0.0
    %1616 = vmatpush2.msra.mxu0 0.0
    %1617 = vmatprep.subr.mxu0 0.0
    %1618 = vmatpush2.msra.mxu0 0.0
    %1619 = vmatprep.mubr.f32.mxu0 0.0
    %1620 = vmatmul.mubr.f32.gmra.mxu0 %v1553
    %v1621 = vpop.f32.mrf.mxu0
    %v1622 = vadd.f32 0.0, %v1621
    %v1623 = vpop.f32.mrf.mxu0
    %1624 = vdwg.mxu0
    %1625 = vrot.lane.b32.xlu0 %v377, 64
    %v1626 = vpop.permute.xlu0 %1625
    %v1629 = vsel %vm390, %v1092, 0
    %1631 = vmatprep.subr.mxu0 0.0
    %1632 = vmatpush1.msra.mxu0 0.0
    %1633 = vmatprep.subr.mxu0 0.0
    %1634 = vmatpush1.msra.mxu0 0.0
    %1635 = vmatprep.subr.mxu0 0.0
    %1636 = vmatpush1.msra.mxu0 0.0
    %1637 = vmatprep.subr.mxu0 0.0
    %1638 = vmatpush1.msra.mxu0 0.0
    %1639 = vmatprep.subr.mxu0 0.0
    %1640 = vmatpush1.msra.mxu0 0.0
    %1641 = vmatprep.subr.mxu0 0.0
    %1642 = vmatpush1.msra.mxu0 0.0
    %1643 = vmatprep.subr.mxu0 0.0
    %1644 = vmatpush1.msra.mxu0 0.0
    %1645 = vmatprep.subr.mxu0 0.0
    %1646 = vmatpush1.msra.mxu0 0.0
    %1647 = vmatprep.subr.mxu0 0.0
    %1648 = vmatpush1.msra.mxu0 0.0
    %1649 = vmatprep.subr.mxu0 0.0
    %1650 = vmatpush1.msra.mxu0 0.0
    %1651 = vmatprep.subr.mxu0 0.0
    %1652 = vmatpush1.msra.mxu0 0.0
    %1653 = vmatprep.subr.mxu0 0.0
    %1654 = vmatpush1.msra.mxu0 0.0
    %1655 = vmatprep.subr.mxu0 0.0
    %1656 = vmatpush1.msra.mxu0 0.0
    %1657 = vmatprep.subr.mxu0 0.0
    %1658 = vmatpush1.msra.mxu0 0.0
    %1659 = vmatprep.subr.mxu0 0.0
    %1660 = vmatpush1.msra.mxu0 0.0
    %1661 = vmatprep.subr.mxu0 0.0
    %1662 = vmatpush1.msra.mxu0 %v1626
    %1663 = vmatprep.subr.mxu0 0.0
    %1664 = vmatpush2.msra.mxu0 0.0
    %1665 = vmatprep.subr.mxu0 0.0
    %1666 = vmatpush2.msra.mxu0 0.0
    %1667 = vmatprep.subr.mxu0 0.0
    %1668 = vmatpush2.msra.mxu0 0.0
    %1669 = vmatprep.subr.mxu0 0.0
    %1670 = vmatpush2.msra.mxu0 0.0
    %1671 = vmatprep.subr.mxu0 0.0
    %1672 = vmatpush2.msra.mxu0 0.0
    %1673 = vmatprep.subr.mxu0 0.0
    %1674 = vmatpush2.msra.mxu0 0.0
    %1675 = vmatprep.subr.mxu0 0.0
    %1676 = vmatpush2.msra.mxu0 0.0
    %1677 = vmatprep.subr.mxu0 0.0
    %1678 = vmatpush2.msra.mxu0 0.0
    %1679 = vmatprep.subr.mxu0 0.0
    %1680 = vmatpush2.msra.mxu0 0.0
    %1681 = vmatprep.subr.mxu0 0.0
    %1682 = vmatpush2.msra.mxu0 0.0
    %1683 = vmatprep.subr.mxu0 0.0
    %1684 = vmatpush2.msra.mxu0 0.0
    %1685 = vmatprep.subr.mxu0 0.0
    %1686 = vmatpush2.msra.mxu0 0.0
    %1687 = vmatprep.subr.mxu0 0.0
    %1688 = vmatpush2.msra.mxu0 0.0
    %1689 = vmatprep.subr.mxu0 0.0
    %1690 = vmatpush2.msra.mxu0 0.0
    %1691 = vmatprep.subr.mxu0 0.0
    %1692 = vmatpush2.msra.mxu0 0.0
    %1693 = vmatprep.subr.mxu0 0.0
    %1694 = vmatpush2.msra.mxu0 0.0
    %1695 = vmatprep.mubr.f32.mxu0 0.0
    %1696 = vmatmul.mubr.f32.gmra.mxu0 %v1629
    %v1697 = vpop.f32.mrf.mxu0
    %v1698 = vadd.f32 0.0, %v1697
    %v1699 = vpop.f32.mrf.mxu0
    %1700 = vdwg.mxu0
    %1703 = vrot.lane.b32.xlu0 %v1318, 8
    %v1704 = vpop.permute.xlu0 %1703
    %1705 = vrot.lane.b32.xlu0 %v1394, 8
    %v1706 = vpop.permute.xlu0 %1705
    %1711 = vrot.lane.b32.xlu0 %v1470, 16
    %v1712 = vpop.permute.xlu0 %1711
    %1713 = vrot.lane.b32.xlu0 %v1546, 16
    %v1714 = vpop.permute.xlu0 %1713
    %1719 = vrot.lane.b32.xlu0 %v1622, 24
    %v1720 = vpop.permute.xlu0 %1719
    %1721 = vrot.lane.b32.xlu0 %v1698, 24
    %v1722 = vpop.permute.xlu0 %1721
    %v1725 = vsel %vm390, %v1166, %v1704
    %v1726 = vsel %vm390, %v1242, %v1706
    %vm1727 = vcmask 130048
    %v1728 = vsel %vm1727, %v1725, %v1712
    %v1729 = vsel %vm1727, %v1726, %v1714
    %vm1730 = vcmask 195584
    %v1731 = vsel %vm1730, %v1728, %v1720
    %v1732 = vsel %vm1730, %v1729, %v1722
    %v1733 = vld [vmem:[%s6] sm:$0xff]
    %v1734 = vld [vmem:[%s6 + $0x8] sm:$0xff]
    %v1735 = vld [vmem:[%s6 + $0x10] sm:$0xff]
    %v1736 = vld [vmem:[%s6 + $0x18] sm:$0xff]
    %v1737 = vld [vmem:[%s7] sm:$0x1]
    %v1739 = vlaneseq
    %v1740 = vshrl.u32 %v1739, 7
    %v1741 = vsub.s32 0, %v1740
    %v1742 = vrot.slane %v1737, %v1741
    %v1745 = vsel %vm278, %v1731, 0
    %v1748 = vsel %vm278, %v1732, 0
    %1750 = vmatprep.subr.mxu0 0.0
    %1751 = vmatpush1.msra.mxu0 0.0
    %1752 = vmatprep.subr.mxu0 0.0
    %1753 = vmatpush1.msra.mxu0 0.0
    %1754 = vmatprep.subr.mxu0 0.0
    %1755 = vmatpush1.msra.mxu0 0.0
    %1756 = vmatprep.subr.mxu0 0.0
    %1757 = vmatpush1.msra.mxu0 0.0
    %1758 = vmatprep.subr.mxu0 0.0
    %1759 = vmatpush1.msra.mxu0 0.0
    %1760 = vmatprep.subr.mxu0 0.0
    %1761 = vmatpush1.msra.mxu0 0.0
    %1762 = vmatprep.subr.mxu0 0.0
    %1763 = vmatpush1.msra.mxu0 0.0
    %1764 = vmatprep.subr.mxu0 0.0
    %1765 = vmatpush1.msra.mxu0 0.0
    %1766 = vmatprep.subr.mxu0 0.0
    %1767 = vmatpush1.msra.mxu0 0.0
    %1768 = vmatprep.subr.mxu0 0.0
    %1769 = vmatpush1.msra.mxu0 0.0
    %1770 = vmatprep.subr.mxu0 0.0
    %1771 = vmatpush1.msra.mxu0 0.0
    %1772 = vmatprep.subr.mxu0 0.0
    %1773 = vmatpush1.msra.mxu0 0.0
    %1774 = vmatprep.subr.mxu0 0.0
    %1775 = vmatpush1.msra.mxu0 %v1736
    %1776 = vmatprep.subr.mxu0 0.0
    %1777 = vmatpush1.msra.mxu0 %v1735
    %1778 = vmatprep.subr.mxu0 0.0
    %1779 = vmatpush1.msra.mxu0 %v1734
    %1780 = vmatprep.subr.mxu0 0.0
    %1781 = vmatpush1.msra.mxu0 %v1733
    %1782 = vmatprep.subr.mxu0 0.0
    %1783 = vmatpush2.msra.mxu0 0.0
    %1784 = vmatprep.subr.mxu0 0.0
    %1785 = vmatpush2.msra.mxu0 0.0
    %1786 = vmatprep.subr.mxu0 0.0
    %1787 = vmatpush2.msra.mxu0 0.0
    %1788 = vmatprep.subr.mxu0 0.0
    %1789 = vmatpush2.msra.mxu0 0.0
    %1790 = vmatprep.subr.mxu0 0.0
    %1791 = vmatpush2.msra.mxu0 0.0
    %1792 = vmatprep.subr.mxu0 0.0
    %1793 = vmatpush2.msra.mxu0 0.0
    %1794 = vmatprep.subr.mxu0 0.0
    %1795 = vmatpush2.msra.mxu0 0.0
    %1796 = vmatprep.subr.mxu0 0.0
    %1797 = vmatpush2.msra.mxu0 0.0
    %1798 = vmatprep.subr.mxu0 0.0
    %1799 = vmatpush2.msra.mxu0 0.0
    %1800 = vmatprep.subr.mxu0 0.0
    %1801 = vmatpush2.msra.mxu0 0.0
    %1802 = vmatprep.subr.mxu0 0.0
    %1803 = vmatpush2.msra.mxu0 0.0
    %1804 = vmatprep.subr.mxu0 0.0
    %1805 = vmatpush2.msra.mxu0 0.0
    %1806 = vmatprep.subr.mxu0 0.0
    %1807 = vmatpush2.msra.mxu0 0.0
    %1808 = vmatprep.subr.mxu0 0.0
    %1809 = vmatpush2.msra.mxu0 0.0
    %1810 = vmatprep.subr.mxu0 0.0
    %1811 = vmatpush2.msra.mxu0 0.0
    %1812 = vmatprep.subr.mxu0 0.0
    %1813 = vmatpush2.msra.mxu0 0.0
    %1814 = vmatprep.mubr.f32.mxu0 0.0
    %1815 = vmatmul.mubr.f32.gmra.mxu0 %v1745
    %v1816 = vpop.f32.mrf.mxu0
    %v1817 = vadd.f32 %v1742, %v1816
    %v1818 = vpop.f32.mrf.mxu0
    %1819 = vmatprep.mubr.f32.mxu0 0.0
    %1820 = vmatmul.mubr.f32.gmra.mxu0 %v1748
    %v1821 = vpop.f32.mrf.mxu0
    %v1822 = vadd.f32 %v1742, %v1821
    %v1823 = vpop.f32.mrf.mxu0
    %1824 = vdwg.mxu0
    %v1825 = vadd.f32 %v265, %v1817
    %v1826 = vadd.f32 %v266, %v1822
    %v1827 = vld [vmem:[%s8] sm:$0x1]
    %v1828 = vld [vmem:[#allocation5] sm:$0x1]
    %v1829 = vsel %vm278, %v1825, 0.0
    %1830 = vadd.xlane.f32.xlu0 %v1829
    %v1831 = vpop.xlane.xlu0 %1830
    %v1832 = vsel %vm278, %v1826, 0.0
    %1833 = vadd.xlane.f32.xlu0 %v1832
    %v1834 = vpop.xlane.xlu0 %1833
    %v1835 = vrcp.pop 32.0
    %v1836 = vmul.f32 %v1831, %v1835
    %v1837 = vmul.f32 %v1834, %v1835
    %v1838 = vsub.f32 %v1825, %v1836
    %v1839 = vsub.f32 %v1826, %v1837
    %v1840 = vmul.f32 %v1838, %v1838
    %v1841 = vmul.f32 %v1839, %v1839
    %v1842 = vsel %vm278, %v1840, 0.0
    %1843 = vadd.xlane.f32.xlu0 %v1842
    %v1844 = vpop.xlane.xlu0 %1843
    %v1845 = vsel %vm278, %v1841, 0.0
    %1846 = vadd.xlane.f32.xlu0 %v1845
    %v1847 = vpop.xlane.xlu0 %1846
    %v1848 = vmul.f32 %v1844, %v1835
    %v1849 = vmul.f32 %v1847, %v1835
    %v1850 = vadd.f32 %v1848, 1e-05
    %v1851 = vadd.f32 %v1849, 1e-05
    %v1852 = vrsqrt.pop %v1850
    %v1853 = vrsqrt.pop %v1851
    %v1854 = vmul.f32 %v1838, %v1852
    %v1855 = vmul.f32 %v1839, %v1853
    %v1857 = vlaneseq
    %v1858 = vshrl.u32 %v1857, 7
    %v1859 = vsub.s32 0, %v1858
    %v1860 = vrot.slane %v1827, %v1859
    %v1862 = vmul.f32 %v1854, %v1860
    %v1863 = vmul.f32 %v1855, %v1860
    %v1865 = vlaneseq
    %v1866 = vshrl.u32 %v1865, 7
    %v1867 = vsub.s32 0, %v1866
    %v1868 = vrot.slane %v1828, %v1867
    %v1870 = vadd.f32 %v1862, %v1868
    %v1871 = vadd.f32 %v1863, %v1868
    %v1872 = vld [vmem:[%s10] sm:$0xff]
    %v1873 = vld [vmem:[%s10 + $0x8] sm:$0xff]
    %v1874 = vld [vmem:[%s10 + $0x10] sm:$0xff]
    %v1875 = vld [vmem:[%s10 + $0x18] sm:$0xff]
    %v1876 = vld [vmem:[#allocation7] sm:$0x1]
    %v1878 = vlaneseq
    %v1879 = vshrl.u32 %v1878, 7
    %v1880 = vsub.s32 0, %v1879
    %v1881 = vrot.slane %v1876, %v1880
    %v1884 = vsel %vm278, %v1870, 0
    %v1887 = vsel %vm278, %v1871, 0
    %1889 = vmatprep.subr.mxu0 0.0
    %1890 = vmatpush1.msra.mxu0 0.0
    %1891 = vmatprep.subr.mxu0 0.0
    %1892 = vmatpush1.msra.mxu0 0.0
    %1893 = vmatprep.subr.mxu0 0.0
    %1894 = vmatpush1.msra.mxu0 0.0
    %1895 = vmatprep.subr.mxu0 0.0
    %1896 = vmatpush1.msra.mxu0 0.0
    %1897 = vmatprep.subr.mxu0 0.0
    %1898 = vmatpush1.msra.mxu0 0.0
    %1899 = vmatprep.subr.mxu0 0.0
    %1900 = vmatpush1.msra.mxu0 0.0
    %1901 = vmatprep.subr.mxu0 0.0
    %1902 = vmatpush1.msra.mxu0 0.0
    %1903 = vmatprep.subr.mxu0 0.0
    %1904 = vmatpush1.msra.mxu0 0.0
    %1905 = vmatprep.subr.mxu0 0.0
    %1906 = vmatpush1.msra.mxu0 0.0
    %1907 = vmatprep.subr.mxu0 0.0
    %1908 = vmatpush1.msra.mxu0 0.0
    %1909 = vmatprep.subr.mxu0 0.0
    %1910 = vmatpush1.msra.mxu0 0.0
    %1911 = vmatprep.subr.mxu0 0.0
    %1912 = vmatpush1.msra.mxu0 0.0
    %1913 = vmatprep.subr.mxu0 0.0
    %1914 = vmatpush1.msra.mxu0 %v1875
    %1915 = vmatprep.subr.mxu0 0.0
    %1916 = vmatpush1.msra.mxu0 %v1874
    %1917 = vmatprep.subr.mxu0 0.0
    %1918 = vmatpush1.msra.mxu0 %v1873
    %1919 = vmatprep.subr.mxu0 0.0
    %1920 = vmatpush1.msra.mxu0 %v1872
    %1921 = vmatprep.subr.mxu0 0.0
    %1922 = vmatpush2.msra.mxu0 0.0
    %1923 = vmatprep.subr.mxu0 0.0
    %1924 = vmatpush2.msra.mxu0 0.0
    %1925 = vmatprep.subr.mxu0 0.0
    %1926 = vmatpush2.msra.mxu0 0.0
    %1927 = vmatprep.subr.mxu0 0.0
    %1928 = vmatpush2.msra.mxu0 0.0
    %1929 = vmatprep.subr.mxu0 0.0
    %1930 = vmatpush2.msra.mxu0 0.0
    %1931 = vmatprep.subr.mxu0 0.0
    %1932 = vmatpush2.msra.mxu0 0.0
    %1933 = vmatprep.subr.mxu0 0.0
    %1934 = vmatpush2.msra.mxu0 0.0
    %1935 = vmatprep.subr.mxu0 0.0
    %1936 = vmatpush2.msra.mxu0 0.0
    %1937 = vmatprep.subr.mxu0 0.0
    %1938 = vmatpush2.msra.mxu0 0.0
    %1939 = vmatprep.subr.mxu0 0.0
    %1940 = vmatpush2.msra.mxu0 0.0
    %1941 = vmatprep.subr.mxu0 0.0
    %1942 = vmatpush2.msra.mxu0 0.0
    %1943 = vmatprep.subr.mxu0 0.0
    %1944 = vmatpush2.msra.mxu0 0.0
    %1945 = vmatprep.subr.mxu0 0.0
    %1946 = vmatpush2.msra.mxu0 0.0
    %1947 = vmatprep.subr.mxu0 0.0
    %1948 = vmatpush2.msra.mxu0 0.0
    %1949 = vmatprep.subr.mxu0 0.0
    %1950 = vmatpush2.msra.mxu0 0.0
    %1951 = vmatprep.subr.mxu0 0.0
    %1952 = vmatpush2.msra.mxu0 0.0
    %1953 = vmatprep.mubr.f32.mxu0 0.0
    %1954 = vmatmul.mubr.f32.gmra.mxu0 %v1884
    %v1955 = vpop.f32.mrf.mxu0
    %v1956 = vadd.f32 %v1881, %v1955
    %v1957 = vpop.f32.mrf.mxu0
    %1958 = vmatprep.mubr.f32.mxu0 0.0
    %1959 = vmatmul.mubr.f32.gmra.mxu0 %v1887
    %v1960 = vpop.f32.mrf.mxu0
    %v1961 = vadd.f32 %v1881, %v1960
    %v1962 = vpop.f32.mrf.mxu0
    %1963 = vdwg.mxu0
    %v1964 = vmax.f32 %v1956, 0.0
    %v1965 = vmax.f32 %v1961, 0.0
    %v1966 = vld [vmem:[%s12] sm:$0xff]
    %v1967 = vld [vmem:[%s12 + $0x8] sm:$0xff]
    %v1968 = vld [vmem:[%s12 + $0x10] sm:$0xff]
    %v1969 = vld [vmem:[%s12 + $0x18] sm:$0xff]
    %v1970 = vld [vmem:[%s12 + $0x20] sm:$0xff]
    %v1971 = vld [vmem:[%s12 + $0x28] sm:$0xff]
    %v1972 = vld [vmem:[%s12 + $0x30] sm:$0xff]
    %v1973 = vld [vmem:[%s12 + $0x38] sm:$0xff]
    %v1974 = vld [vmem:[%s13] sm:$0x1]
    %v1976 = vlaneseq
    %v1977 = vshrl.u32 %v1976, 7
    %v1978 = vsub.s32 0, %v1977
    %v1979 = vrot.slane %v1974, %v1978
    %vm1981 = vcmask 523264
    %v1983 = vsel %vm1981, %v1964, 0
    %v1986 = vsel %vm1981, %v1965, 0
    %1988 = vmatprep.subr.mxu0 0.0
    %1989 = vmatpush1.msra.mxu0 0.0
    %1990 = vmatprep.subr.mxu0 0.0
    %1991 = vmatpush1.msra.mxu0 0.0
    %1992 = vmatprep.subr.mxu0 0.0
    %1993 = vmatpush1.msra.mxu0 0.0
    %1994 = vmatprep.subr.mxu0 0.0
    %1995 = vmatpush1.msra.mxu0 0.0
    %1996 = vmatprep.subr.mxu0 0.0
    %1997 = vmatpush1.msra.mxu0 0.0
    %1998 = vmatprep.subr.mxu0 0.0
    %1999 = vmatpush1.msra.mxu0 0.0
    %2000 = vmatprep.subr.mxu0 0.0
    %2001 = vmatpush1.msra.mxu0 0.0
    %2002 = vmatprep.subr.mxu0 0.0
    %2003 = vmatpush1.msra.mxu0 0.0
    %2004 = vmatprep.subr.mxu0 0.0
    %2005 = vmatpush1.msra.mxu0 %v1973
    %2006 = vmatprep.subr.mxu0 0.0
    %2007 = vmatpush1.msra.mxu0 %v1972
    %2008 = vmatprep.subr.mxu0 0.0
    %2009 = vmatpush1.msra.mxu0 %v1971
    %2010 = vmatprep.subr.mxu0 0.0
    %2011 = vmatpush1.msra.mxu0 %v1970
    %2012 = vmatprep.subr.mxu0 0.0
    %2013 = vmatpush1.msra.mxu0 %v1969
    %2014 = vmatprep.subr.mxu0 0.0
    %2015 = vmatpush1.msra.mxu0 %v1968
    %2016 = vmatprep.subr.mxu0 0.0
    %2017 = vmatpush1.msra.mxu0 %v1967
    %2018 = vmatprep.subr.mxu0 0.0
    %2019 = vmatpush1.msra.mxu0 %v1966
    %2020 = vmatprep.subr.mxu0 0.0
    %2021 = vmatpush2.msra.mxu0 0.0
    %2022 = vmatprep.subr.mxu0 0.0
    %2023 = vmatpush2.msra.mxu0 0.0
    %2024 = vmatprep.subr.mxu0 0.0
    %2025 = vmatpush2.msra.mxu0 0.0
    %2026 = vmatprep.subr.mxu0 0.0
    %2027 = vmatpush2.msra.mxu0 0.0
    %2028 = vmatprep.subr.mxu0 0.0
    %2029 = vmatpush2.msra.mxu0 0.0
    %2030 = vmatprep.subr.mxu0 0.0
    %2031 = vmatpush2.msra.mxu0 0.0
    %2032 = vmatprep.subr.mxu0 0.0
    %2033 = vmatpush2.msra.mxu0 0.0
    %2034 = vmatprep.subr.mxu0 0.0
    %2035 = vmatpush2.msra.mxu0 0.0
    %2036 = vmatprep.subr.mxu0 0.0
    %2037 = vmatpush2.msra.mxu0 0.0
    %2038 = vmatprep.subr.mxu0 0.0
    %2039 = vmatpush2.msra.mxu0 0.0
    %2040 = vmatprep.subr.mxu0 0.0
    %2041 = vmatpush2.msra.mxu0 0.0
    %2042 = vmatprep.subr.mxu0 0.0
    %2043 = vmatpush2.msra.mxu0 0.0
    %2044 = vmatprep.subr.mxu0 0.0
    %2045 = vmatpush2.msra.mxu0 0.0
    %2046 = vmatprep.subr.mxu0 0.0
    %2047 = vmatpush2.msra.mxu0 0.0
    %2048 = vmatprep.subr.mxu0 0.0
    %2049 = vmatpush2.msra.mxu0 0.0
    %2050 = vmatprep.subr.mxu0 0.0
    %2051 = vmatpush2.msra.mxu0 0.0
    %2052 = vmatprep.mubr.f32.mxu0 0.0
    %2053 = vmatmul.mubr.f32.gmra.mxu0 %v1983
    %v2054 = vpop.f32.mrf.mxu0
    %v2055 = vadd.f32 %v1979, %v2054
    %v2056 = vpop.f32.mrf.mxu0
    %2057 = vmatprep.mubr.f32.mxu0 0.0
    %2058 = vmatmul.mubr.f32.gmra.mxu0 %v1986
    %v2059 = vpop.f32.mrf.mxu0
    %v2060 = vadd.f32 %v1979, %v2059
    %v2061 = vpop.f32.mrf.mxu0
    %2062 = vdwg.mxu0
    %v2063 = vadd.f32 %v1870, %v2055
    %v2064 = vadd.f32 %v1871, %v2060
    %v2065 = vld [vmem:[#allocation8] sm:$0x1]
    %v2066 = vld [vmem:[%s15] sm:$0x1]
    %v2067 = vsel %vm278, %v2063, 0.0
    %2068 = vadd.xlane.f32.xlu0 %v2067
    %v2069 = vpop.xlane.xlu0 %2068
    %v2070 = vsel %vm278, %v2064, 0.0
    %2071 = vadd.xlane.f32.xlu0 %v2070
    %v2072 = vpop.xlane.xlu0 %2071
    %v2073 = vmul.f32 %v2069, %v1835
    %v2074 = vmul.f32 %v2072, %v1835
    %v2075 = vsub.f32 %v2063, %v2073
    %v2076 = vsub.f32 %v2064, %v2074
    %v2077 = vmul.f32 %v2075, %v2075
    %v2078 = vmul.f32 %v2076, %v2076
    %v2079 = vsel %vm278, %v2077, 0.0
    %2080 = vadd.xlane.f32.xlu0 %v2079
    %v2081 = vpop.xlane.xlu0 %2080
    %v2082 = vsel %vm278, %v2078, 0.0
    %2083 = vadd.xlane.f32.xlu0 %v2082
    %v2084 = vpop.xlane.xlu0 %2083
    %v2085 = vmul.f32 %v2081, %v1835
    %v2086 = vmul.f32 %v2084, %v1835
    %v2087 = vadd.f32 %v2085, 1e-05
    %v2088 = vadd.f32 %v2086, 1e-05
    %v2089 = vrsqrt.pop %v2087
    %v2090 = vrsqrt.pop %v2088
    %v2091 = vmul.f32 %v2075, %v2089
    %v2092 = vmul.f32 %v2076, %v2090
    %v2094 = vlaneseq
    %v2095 = vshrl.u32 %v2094, 7
    %v2096 = vsub.s32 0, %v2095
    %v2097 = vrot.slane %v2065, %v2096
    %v2099 = vmul.f32 %v2091, %v2097
    %v2100 = vmul.f32 %v2092, %v2097
    %v2102 = vlaneseq
    %v2103 = vshrl.u32 %v2102, 7
    %v2104 = vsub.s32 0, %v2103
    %v2105 = vrot.slane %v2066, %v2104
    %v2107 = vadd.f32 %v2099, %v2105
    %v2108 = vadd.f32 %v2100, %v2105
    %s2109 = scalar_lea.vmem %s4, 32
    %v2110 = vld [vmem:[%s2109] sm:$0xff]
    %v2111 = vld [vmem:[%s2109 + $0x8] sm:$0xff]
    %v2112 = vld [vmem:[%s2109 + $0x10] sm:$0xff]
    %v2113 = vld [vmem:[%s2109 + $0x18] sm:$0xff]
    %s2114 = scalar_lea.vmem %s5, 1
    %v2115 = vld [vmem:[%s2114] sm:$0x1]
    %v2117 = vlaneseq
    %v2118 = vshrl.u32 %v2117, 7
    %v2119 = vsub.s32 0, %v2118
    %v2120 = vrot.slane %v2115, %v2119
    %v2123 = vsel %vm278, %v2107, 0
    %v2126 = vsel %vm278, %v2108, 0
    %2128 = vmatprep.subr.mxu0 0.0
    %2129 = vmatpush1.msra.mxu0 0.0
    %2130 = vmatprep.subr.mxu0 0.0
    %2131 = vmatpush1.msra.mxu0 0.0
    %2132 = vmatprep.subr.mxu0 0.0
    %2133 = vmatpush1.msra.mxu0 0.0
    %2134 = vmatprep.subr.mxu0 0.0
    %2135 = vmatpush1.msra.mxu0 0.0
    %2136 = vmatprep.subr.mxu0 0.0
    %2137 = vmatpush1.msra.mxu0 0.0
    %2138 = vmatprep.subr.mxu0 0.0
    %2139 = vmatpush1.msra.mxu0 0.0
    %2140 = vmatprep.subr.mxu0 0.0
    %2141 = vmatpush1.msra.mxu0 0.0
    %2142 = vmatprep.subr.mxu0 0.0
    %2143 = vmatpush1.msra.mxu0 0.0
    %2144 = vmatprep.subr.mxu0 0.0
    %2145 = vmatpush1.msra.mxu0 0.0
    %2146 = vmatprep.subr.mxu0 0.0
    %2147 = vmatpush1.msra.mxu0 0.0
    %2148 = vmatprep.subr.mxu0 0.0
    %2149 = vmatpush1.msra.mxu0 0.0
    %2150 = vmatprep.subr.mxu0 0.0
    %2151 = vmatpush1.msra.mxu0 0.0
    %2152 = vmatprep.subr.mxu0 0.0
    %2153 = vmatpush1.msra.mxu0 %v2113
    %2154 = vmatprep.subr.mxu0 0.0
    %2155 = vmatpush1.msra.mxu0 %v2112
    %2156 = vmatprep.subr.mxu0 0.0
    %2157 = vmatpush1.msra.mxu0 %v2111
    %2158 = vmatprep.subr.mxu0 0.0
    %2159 = vmatpush1.msra.mxu0 %v2110
    %2160 = vmatprep.subr.mxu0 0.0
    %2161 = vmatpush2.msra.mxu0 0.0
    %2162 = vmatprep.subr.mxu0 0.0
    %2163 = vmatpush2.msra.mxu0 0.0
    %2164 = vmatprep.subr.mxu0 0.0
    %2165 = vmatpush2.msra.mxu0 0.0
    %2166 = vmatprep.subr.mxu0 0.0
    %2167 = vmatpush2.msra.mxu0 0.0
    %2168 = vmatprep.subr.mxu0 0.0
    %2169 = vmatpush2.msra.mxu0 0.0
    %2170 = vmatprep.subr.mxu0 0.0
    %2171 = vmatpush2.msra.mxu0 0.0
    %2172 = vmatprep.subr.mxu0 0.0
    %2173 = vmatpush2.msra.mxu0 0.0
    %2174 = vmatprep.subr.mxu0 0.0
    %2175 = vmatpush2.msra.mxu0 0.0
    %2176 = vmatprep.subr.mxu0 0.0
    %2177 = vmatpush2.msra.mxu0 0.0
    %2178 = vmatprep.subr.mxu0 0.0
    %2179 = vmatpush2.msra.mxu0 0.0
    %2180 = vmatprep.subr.mxu0 0.0
    %2181 = vmatpush2.msra.mxu0 0.0
    %2182 = vmatprep.subr.mxu0 0.0
    %2183 = vmatpush2.msra.mxu0 0.0
    %2184 = vmatprep.subr.mxu0 0.0
    %2185 = vmatpush2.msra.mxu0 0.0
    %2186 = vmatprep.subr.mxu0 0.0
    %2187 = vmatpush2.msra.mxu0 0.0
    %2188 = vmatprep.subr.mxu0 0.0
    %2189 = vmatpush2.msra.mxu0 0.0
    %2190 = vmatprep.subr.mxu0 0.0
    %2191 = vmatpush2.msra.mxu0 0.0
    %2192 = vmatprep.mubr.f32.mxu0 0.0
    %2193 = vmatmul.mubr.f32.gmra.mxu0 %v2123
    %v2194 = vpop.f32.mrf.mxu0
    %v2195 = vadd.f32 %v2120, %v2194
    %v2196 = vpop.f32.mrf.mxu0
    %2197 = vmatprep.mubr.f32.mxu0 0.0
    %2198 = vmatmul.mubr.f32.gmra.mxu0 %v2126
    %v2199 = vpop.f32.mrf.mxu0
    %v2200 = vadd.f32 %v2120, %v2199
    %v2201 = vpop.f32.mrf.mxu0
    %2202 = vdwg.mxu0
    %2205 = vrot.lane.b32.xlu0 %v2195, 120
    %v2206 = vpop.permute.xlu0 %2205
    %2207 = vrot.lane.b32.xlu0 %v2200, 120
    %v2208 = vpop.permute.xlu0 %2207
    %2211 = vrot.lane.b32.xlu0 %v2195, 112
    %v2212 = vpop.permute.xlu0 %2211
    %2213 = vrot.lane.b32.xlu0 %v2200, 112
    %v2214 = vpop.permute.xlu0 %2213
    %2217 = vrot.lane.b32.xlu0 %v2195, 104
    %v2218 = vpop.permute.xlu0 %2217
    %2219 = vrot.lane.b32.xlu0 %v2200, 104
    %v2220 = vpop.permute.xlu0 %2219
    %v2223 = vmul.f32 %v2195, 0.35355338
    %v2224 = vmul.f32 %v2200, 0.35355338
    %v2225 = vmul.f32 %v2206, 0.35355338
    %v2226 = vmul.f32 %v2208, 0.35355338
    %v2227 = vmul.f32 %v2212, 0.35355338
    %v2228 = vmul.f32 %v2214, 0.35355338
    %v2229 = vmul.f32 %v2218, 0.35355338
    %v2230 = vmul.f32 %v2220, 0.35355338
    %2231 = vrot.lane.b32.xlu0 %v2195, 96
    %v2232 = vpop.permute.xlu0 %2231
    %v2234 = vsel %vm390, %v2223, 0
    %v2236 = vsel %vm390, %v2232, 0
    %2238 = vmatprep.subr.mxu0 0.0
    %2239 = vmatpush1.xpose.msra.mxu0 0.0
    %2240 = vmatprep.subr.mxu0 0.0
    %2241 = vmatpush1.xpose.msra.mxu0 0.0
    %2242 = vmatprep.subr.mxu0 0.0
    %2243 = vmatpush1.xpose.msra.mxu0 0.0
    %2244 = vmatprep.subr.mxu0 0.0
    %2245 = vmatpush1.xpose.msra.mxu0 0.0
    %2246 = vmatprep.subr.mxu0 0.0
    %2247 = vmatpush1.xpose.msra.mxu0 0.0
    %2248 = vmatprep.subr.mxu0 0.0
    %2249 = vmatpush1.xpose.msra.mxu0 0.0
    %2250 = vmatprep.subr.mxu0 0.0
    %2251 = vmatpush1.xpose.msra.mxu0 0.0
    %2252 = vmatprep.subr.mxu0 0.0
    %2253 = vmatpush1.xpose.msra.mxu0 0.0
    %2254 = vmatprep.subr.mxu0 0.0
    %2255 = vmatpush1.xpose.msra.mxu0 0.0
    %2256 = vmatprep.subr.mxu0 0.0
    %2257 = vmatpush1.xpose.msra.mxu0 0.0
    %2258 = vmatprep.subr.mxu0 0.0
    %2259 = vmatpush1.xpose.msra.mxu0 0.0
    %2260 = vmatprep.subr.mxu0 0.0
    %2261 = vmatpush1.xpose.msra.mxu0 0.0
    %2262 = vmatprep.subr.mxu0 0.0
    %2263 = vmatpush1.xpose.msra.mxu0 0.0
    %2264 = vmatprep.subr.mxu0 0.0
    %2265 = vmatpush1.xpose.msra.mxu0 0.0
    %2266 = vmatprep.subr.mxu0 0.0
    %2267 = vmatpush1.xpose.msra.mxu0 0.0
    %2268 = vmatprep.subr.mxu0 0.0
    %2269 = vmatpush1.xpose.msra.mxu0 %v2236
    %2270 = vmatprep.subr.mxu0 0.0
    %2271 = vmatpush2.xpose.msra.mxu0 0.0
    %2272 = vmatprep.subr.mxu0 0.0
    %2273 = vmatpush2.xpose.msra.mxu0 0.0
    %2274 = vmatprep.subr.mxu0 0.0
    %2275 = vmatpush2.xpose.msra.mxu0 0.0
    %2276 = vmatprep.subr.mxu0 0.0
    %2277 = vmatpush2.xpose.msra.mxu0 0.0
    %2278 = vmatprep.subr.mxu0 0.0
    %2279 = vmatpush2.xpose.msra.mxu0 0.0
    %2280 = vmatprep.subr.mxu0 0.0
    %2281 = vmatpush2.xpose.msra.mxu0 0.0
    %2282 = vmatprep.subr.mxu0 0.0
    %2283 = vmatpush2.xpose.msra.mxu0 0.0
    %2284 = vmatprep.subr.mxu0 0.0
    %2285 = vmatpush2.xpose.msra.mxu0 0.0
    %2286 = vmatprep.subr.mxu0 0.0
    %2287 = vmatpush2.xpose.msra.mxu0 0.0
    %2288 = vmatprep.subr.mxu0 0.0
    %2289 = vmatpush2.xpose.msra.mxu0 0.0
    %2290 = vmatprep.subr.mxu0 0.0
    %2291 = vmatpush2.xpose.msra.mxu0 0.0
    %2292 = vmatprep.subr.mxu0 0.0
    %2293 = vmatpush2.xpose.msra.mxu0 0.0
    %2294 = vmatprep.subr.mxu0 0.0
    %2295 = vmatpush2.xpose.msra.mxu0 0.0
    %2296 = vmatprep.subr.mxu0 0.0
    %2297 = vmatpush2.xpose.msra.mxu0 0.0
    %2298 = vmatprep.subr.mxu0 0.0
    %2299 = vmatpush2.xpose.msra.mxu0 0.0
    %2300 = vmatprep.subr.mxu0 0.0
    %2301 = vmatpush2.xpose.msra.mxu0 0.0
    %2302 = vmatprep.mubr.f32.mxu0 0.0
    %2303 = vmatmul.mubr.f32.gmra.mxu0 %v2234
    %v2304 = vpop.f32.mrf.mxu0
    %v2305 = vadd.f32 0.0, %v2304
    %v2306 = vpop.f32.mrf.mxu0
    %2307 = vdwg.mxu0
    %2308 = vrot.lane.b32.xlu0 %v2200, 96
    %v2309 = vpop.permute.xlu0 %2308
    %v2311 = vsel %vm390, %v2224, 0
    %v2313 = vsel %vm390, %v2309, 0
    %2315 = vmatprep.subr.mxu0 0.0
    %2316 = vmatpush1.xpose.msra.mxu0 0.0
    %2317 = vmatprep.subr.mxu0 0.0
    %2318 = vmatpush1.xpose.msra.mxu0 0.0
    %2319 = vmatprep.subr.mxu0 0.0
    %2320 = vmatpush1.xpose.msra.mxu0 0.0
    %2321 = vmatprep.subr.mxu0 0.0
    %2322 = vmatpush1.xpose.msra.mxu0 0.0
    %2323 = vmatprep.subr.mxu0 0.0
    %2324 = vmatpush1.xpose.msra.mxu0 0.0
    %2325 = vmatprep.subr.mxu0 0.0
    %2326 = vmatpush1.xpose.msra.mxu0 0.0
    %2327 = vmatprep.subr.mxu0 0.0
    %2328 = vmatpush1.xpose.msra.mxu0 0.0
    %2329 = vmatprep.subr.mxu0 0.0
    %2330 = vmatpush1.xpose.msra.mxu0 0.0
    %2331 = vmatprep.subr.mxu0 0.0
    %2332 = vmatpush1.xpose.msra.mxu0 0.0
    %2333 = vmatprep.subr.mxu0 0.0
    %2334 = vmatpush1.xpose.msra.mxu0 0.0
    %2335 = vmatprep.subr.mxu0 0.0
    %2336 = vmatpush1.xpose.msra.mxu0 0.0
    %2337 = vmatprep.subr.mxu0 0.0
    %2338 = vmatpush1.xpose.msra.mxu0 0.0
    %2339 = vmatprep.subr.mxu0 0.0
    %2340 = vmatpush1.xpose.msra.mxu0 0.0
    %2341 = vmatprep.subr.mxu0 0.0
    %2342 = vmatpush1.xpose.msra.mxu0 0.0
    %2343 = vmatprep.subr.mxu0 0.0
    %2344 = vmatpush1.xpose.msra.mxu0 0.0
    %2345 = vmatprep.subr.mxu0 0.0
    %2346 = vmatpush1.xpose.msra.mxu0 %v2313
    %2347 = vmatprep.subr.mxu0 0.0
    %2348 = vmatpush2.xpose.msra.mxu0 0.0
    %2349 = vmatprep.subr.mxu0 0.0
    %2350 = vmatpush2.xpose.msra.mxu0 0.0
    %2351 = vmatprep.subr.mxu0 0.0
    %2352 = vmatpush2.xpose.msra.mxu0 0.0
    %2353 = vmatprep.subr.mxu0 0.0
    %2354 = vmatpush2.xpose.msra.mxu0 0.0
    %2355 = vmatprep.subr.mxu0 0.0
    %2356 = vmatpush2.xpose.msra.mxu0 0.0
    %2357 = vmatprep.subr.mxu0 0.0
    %2358 = vmatpush2.xpose.msra.mxu0 0.0
    %2359 = vmatprep.subr.mxu0 0.0
    %2360 = vmatpush2.xpose.msra.mxu0 0.0
    %2361 = vmatprep.subr.mxu0 0.0
    %2362 = vmatpush2.xpose.msra.mxu0 0.0
    %2363 = vmatprep.subr.mxu0 0.0
    %2364 = vmatpush2.xpose.msra.mxu0 0.0
    %2365 = vmatprep.subr.mxu0 0.0
    %2366 = vmatpush2.xpose.msra.mxu0 0.0
    %2367 = vmatprep.subr.mxu0 0.0
    %2368 = vmatpush2.xpose.msra.mxu0 0.0
    %2369 = vmatprep.subr.mxu0 0.0
    %2370 = vmatpush2.xpose.msra.mxu0 0.0
    %2371 = vmatprep.subr.mxu0 0.0
    %2372 = vmatpush2.xpose.msra.mxu0 0.0
    %2373 = vmatprep.subr.mxu0 0.0
    %2374 = vmatpush2.xpose.msra.mxu0 0.0
    %2375 = vmatprep.subr.mxu0 0.0
    %2376 = vmatpush2.xpose.msra.mxu0 0.0
    %2377 = vmatprep.subr.mxu0 0.0
    %2378 = vmatpush2.xpose.msra.mxu0 0.0
    %2379 = vmatprep.mubr.f32.mxu0 0.0
    %2380 = vmatmul.mubr.f32.gmra.mxu0 %v2311
    %v2381 = vpop.f32.mrf.mxu0
    %v2382 = vadd.f32 0.0, %v2381
    %v2383 = vpop.f32.mrf.mxu0
    %2384 = vdwg.mxu0
    %2385 = vrot.lane.b32.xlu0 %v2206, 96
    %v2386 = vpop.permute.xlu0 %2385
    %v2388 = vsel %vm390, %v2225, 0
    %v2390 = vsel %vm390, %v2386, 0
    %2392 = vmatprep.subr.mxu0 0.0
    %2393 = vmatpush1.xpose.msra.mxu0 0.0
    %2394 = vmatprep.subr.mxu0 0.0
    %2395 = vmatpush1.xpose.msra.mxu0 0.0
    %2396 = vmatprep.subr.mxu0 0.0
    %2397 = vmatpush1.xpose.msra.mxu0 0.0
    %2398 = vmatprep.subr.mxu0 0.0
    %2399 = vmatpush1.xpose.msra.mxu0 0.0
    %2400 = vmatprep.subr.mxu0 0.0
    %2401 = vmatpush1.xpose.msra.mxu0 0.0
    %2402 = vmatprep.subr.mxu0 0.0
    %2403 = vmatpush1.xpose.msra.mxu0 0.0
    %2404 = vmatprep.subr.mxu0 0.0
    %2405 = vmatpush1.xpose.msra.mxu0 0.0
    %2406 = vmatprep.subr.mxu0 0.0
    %2407 = vmatpush1.xpose.msra.mxu0 0.0
    %2408 = vmatprep.subr.mxu0 0.0
    %2409 = vmatpush1.xpose.msra.mxu0 0.0
    %2410 = vmatprep.subr.mxu0 0.0
    %2411 = vmatpush1.xpose.msra.mxu0 0.0
    %2412 = vmatprep.subr.mxu0 0.0
    %2413 = vmatpush1.xpose.msra.mxu0 0.0
    %2414 = vmatprep.subr.mxu0 0.0
    %2415 = vmatpush1.xpose.msra.mxu0 0.0
    %2416 = vmatprep.subr.mxu0 0.0
    %2417 = vmatpush1.xpose.msra.mxu0 0.0
    %2418 = vmatprep.subr.mxu0 0.0
    %2419 = vmatpush1.xpose.msra.mxu0 0.0
    %2420 = vmatprep.subr.mxu0 0.0
    %2421 = vmatpush1.xpose.msra.mxu0 0.0
    %2422 = vmatprep.subr.mxu0 0.0
    %2423 = vmatpush1.xpose.msra.mxu0 %v2390
    %2424 = vmatprep.subr.mxu0 0.0
    %2425 = vmatpush2.xpose.msra.mxu0 0.0
    %2426 = vmatprep.subr.mxu0 0.0
    %2427 = vmatpush2.xpose.msra.mxu0 0.0
    %2428 = vmatprep.subr.mxu0 0.0
    %2429 = vmatpush2.xpose.msra.mxu0 0.0
    %2430 = vmatprep.subr.mxu0 0.0
    %2431 = vmatpush2.xpose.msra.mxu0 0.0
    %2432 = vmatprep.subr.mxu0 0.0
    %2433 = vmatpush2.xpose.msra.mxu0 0.0
    %2434 = vmatprep.subr.mxu0 0.0
    %2435 = vmatpush2.xpose.msra.mxu0 0.0
    %2436 = vmatprep.subr.mxu0 0.0
    %2437 = vmatpush2.xpose.msra.mxu0 0.0
    %2438 = vmatprep.subr.mxu0 0.0
    %2439 = vmatpush2.xpose.msra.mxu0 0.0
    %2440 = vmatprep.subr.mxu0 0.0
    %2441 = vmatpush2.xpose.msra.mxu0 0.0
    %2442 = vmatprep.subr.mxu0 0.0
    %2443 = vmatpush2.xpose.msra.mxu0 0.0
    %2444 = vmatprep.subr.mxu0 0.0
    %2445 = vmatpush2.xpose.msra.mxu0 0.0
    %2446 = vmatprep.subr.mxu0 0.0
    %2447 = vmatpush2.xpose.msra.mxu0 0.0
    %2448 = vmatprep.subr.mxu0 0.0
    %2449 = vmatpush2.xpose.msra.mxu0 0.0
    %2450 = vmatprep.subr.mxu0 0.0
    %2451 = vmatpush2.xpose.msra.mxu0 0.0
    %2452 = vmatprep.subr.mxu0 0.0
    %2453 = vmatpush2.xpose.msra.mxu0 0.0
    %2454 = vmatprep.subr.mxu0 0.0
    %2455 = vmatpush2.xpose.msra.mxu0 0.0
    %2456 = vmatprep.mubr.f32.mxu0 0.0
    %2457 = vmatmul.mubr.f32.gmra.mxu0 %v2388
    %v2458 = vpop.f32.mrf.mxu0
    %v2459 = vadd.f32 0.0, %v2458
    %v2460 = vpop.f32.mrf.mxu0
    %2461 = vdwg.mxu0
    %2462 = vrot.lane.b32.xlu0 %v2208, 96
    %v2463 = vpop.permute.xlu0 %2462
    %v2465 = vsel %vm390, %v2226, 0
    %v2467 = vsel %vm390, %v2463, 0
    %2469 = vmatprep.subr.mxu0 0.0
    %2470 = vmatpush1.xpose.msra.mxu0 0.0
    %2471 = vmatprep.subr.mxu0 0.0
    %2472 = vmatpush1.xpose.msra.mxu0 0.0
    %2473 = vmatprep.subr.mxu0 0.0
    %2474 = vmatpush1.xpose.msra.mxu0 0.0
    %2475 = vmatprep.subr.mxu0 0.0
    %2476 = vmatpush1.xpose.msra.mxu0 0.0
    %2477 = vmatprep.subr.mxu0 0.0
    %2478 = vmatpush1.xpose.msra.mxu0 0.0
    %2479 = vmatprep.subr.mxu0 0.0
    %2480 = vmatpush1.xpose.msra.mxu0 0.0
    %2481 = vmatprep.subr.mxu0 0.0
    %2482 = vmatpush1.xpose.msra.mxu0 0.0
    %2483 = vmatprep.subr.mxu0 0.0
    %2484 = vmatpush1.xpose.msra.mxu0 0.0
    %2485 = vmatprep.subr.mxu0 0.0
    %2486 = vmatpush1.xpose.msra.mxu0 0.0
    %2487 = vmatprep.subr.mxu0 0.0
    %2488 = vmatpush1.xpose.msra.mxu0 0.0
    %2489 = vmatprep.subr.mxu0 0.0
    %2490 = vmatpush1.xpose.msra.mxu0 0.0
    %2491 = vmatprep.subr.mxu0 0.0
    %2492 = vmatpush1.xpose.msra.mxu0 0.0
    %2493 = vmatprep.subr.mxu0 0.0
    %2494 = vmatpush1.xpose.msra.mxu0 0.0
    %2495 = vmatprep.subr.mxu0 0.0
    %2496 = vmatpush1.xpose.msra.mxu0 0.0
    %2497 = vmatprep.subr.mxu0 0.0
    %2498 = vmatpush1.xpose.msra.mxu0 0.0
    %2499 = vmatprep.subr.mxu0 0.0
    %2500 = vmatpush1.xpose.msra.mxu0 %v2467
    %2501 = vmatprep.subr.mxu0 0.0
    %2502 = vmatpush2.xpose.msra.mxu0 0.0
    %2503 = vmatprep.subr.mxu0 0.0
    %2504 = vmatpush2.xpose.msra.mxu0 0.0
    %2505 = vmatprep.subr.mxu0 0.0
    %2506 = vmatpush2.xpose.msra.mxu0 0.0
    %2507 = vmatprep.subr.mxu0 0.0
    %2508 = vmatpush2.xpose.msra.mxu0 0.0
    %2509 = vmatprep.subr.mxu0 0.0
    %2510 = vmatpush2.xpose.msra.mxu0 0.0
    %2511 = vmatprep.subr.mxu0 0.0
    %2512 = vmatpush2.xpose.msra.mxu0 0.0
    %2513 = vmatprep.subr.mxu0 0.0
    %2514 = vmatpush2.xpose.msra.mxu0 0.0
    %2515 = vmatprep.subr.mxu0 0.0
    %2516 = vmatpush2.xpose.msra.mxu0 0.0
    %2517 = vmatprep.subr.mxu0 0.0
    %2518 = vmatpush2.xpose.msra.mxu0 0.0
    %2519 = vmatprep.subr.mxu0 0.0
    %2520 = vmatpush2.xpose.msra.mxu0 0.0
    %2521 = vmatprep.subr.mxu0 0.0
    %2522 = vmatpush2.xpose.msra.mxu0 0.0
    %2523 = vmatprep.subr.mxu0 0.0
    %2524 = vmatpush2.xpose.msra.mxu0 0.0
    %2525 = vmatprep.subr.mxu0 0.0
    %2526 = vmatpush2.xpose.msra.mxu0 0.0
    %2527 = vmatprep.subr.mxu0 0.0
    %2528 = vmatpush2.xpose.msra.mxu0 0.0
    %2529 = vmatprep.subr.mxu0 0.0
    %2530 = vmatpush2.xpose.msra.mxu0 0.0
    %2531 = vmatprep.subr.mxu0 0.0
    %2532 = vmatpush2.xpose.msra.mxu0 0.0
    %2533 = vmatprep.mubr.f32.mxu0 0.0
    %2534 = vmatmul.mubr.f32.gmra.mxu0 %v2465
    %v2535 = vpop.f32.mrf.mxu0
    %v2536 = vadd.f32 0.0, %v2535
    %v2537 = vpop.f32.mrf.mxu0
    %2538 = vdwg.mxu0
    %2539 = vrot.lane.b32.xlu0 %v2212, 96
    %v2540 = vpop.permute.xlu0 %2539
    %v2542 = vsel %vm390, %v2227, 0
    %v2544 = vsel %vm390, %v2540, 0
    %2546 = vmatprep.subr.mxu0 0.0
    %2547 = vmatpush1.xpose.msra.mxu0 0.0
    %2548 = vmatprep.subr.mxu0 0.0
    %2549 = vmatpush1.xpose.msra.mxu0 0.0
    %2550 = vmatprep.subr.mxu0 0.0
    %2551 = vmatpush1.xpose.msra.mxu0 0.0
    %2552 = vmatprep.subr.mxu0 0.0
    %2553 = vmatpush1.xpose.msra.mxu0 0.0
    %2554 = vmatprep.subr.mxu0 0.0
    %2555 = vmatpush1.xpose.msra.mxu0 0.0
    %2556 = vmatprep.subr.mxu0 0.0
    %2557 = vmatpush1.xpose.msra.mxu0 0.0
    %2558 = vmatprep.subr.mxu0 0.0
    %2559 = vmatpush1.xpose.msra.mxu0 0.0
    %2560 = vmatprep.subr.mxu0 0.0
    %2561 = vmatpush1.xpose.msra.mxu0 0.0
    %2562 = vmatprep.subr.mxu0 0.0
    %2563 = vmatpush1.xpose.msra.mxu0 0.0
    %2564 = vmatprep.subr.mxu0 0.0
    %2565 = vmatpush1.xpose.msra.mxu0 0.0
    %2566 = vmatprep.subr.mxu0 0.0
    %2567 = vmatpush1.xpose.msra.mxu0 0.0
    %2568 = vmatprep.subr.mxu0 0.0
    %2569 = vmatpush1.xpose.msra.mxu0 0.0
    %2570 = vmatprep.subr.mxu0 0.0
    %2571 = vmatpush1.xpose.msra.mxu0 0.0
    %2572 = vmatprep.subr.mxu0 0.0
    %2573 = vmatpush1.xpose.msra.mxu0 0.0
    %2574 = vmatprep.subr.mxu0 0.0
    %2575 = vmatpush1.xpose.msra.mxu0 0.0
    %2576 = vmatprep.subr.mxu0 0.0
    %2577 = vmatpush1.xpose.msra.mxu0 %v2544
    %2578 = vmatprep.subr.mxu0 0.0
    %2579 = vmatpush2.xpose.msra.mxu0 0.0
    %2580 = vmatprep.subr.mxu0 0.0
    %2581 = vmatpush2.xpose.msra.mxu0 0.0
    %2582 = vmatprep.subr.mxu0 0.0
    %2583 = vmatpush2.xpose.msra.mxu0 0.0
    %2584 = vmatprep.subr.mxu0 0.0
    %2585 = vmatpush2.xpose.msra.mxu0 0.0
    %2586 = vmatprep.subr.mxu0 0.0
    %2587 = vmatpush2.xpose.msra.mxu0 0.0
    %2588 = vmatprep.subr.mxu0 0.0
    %2589 = vmatpush2.xpose.msra.mxu0 0.0
    %2590 = vmatprep.subr.mxu0 0.0
    %2591 = vmatpush2.xpose.msra.mxu0 0.0
    %2592 = vmatprep.subr.mxu0 0.0
    %2593 = vmatpush2.xpose.msra.mxu0 0.0
    %2594 = vmatprep.subr.mxu0 0.0
    %2595 = vmatpush2.xpose.msra.mxu0 0.0
    %2596 = vmatprep.subr.mxu0 0.0
    %2597 = vmatpush2.xpose.msra.mxu0 0.0
    %2598 = vmatprep.subr.mxu0 0.0
    %2599 = vmatpush2.xpose.msra.mxu0 0.0
    %2600 = vmatprep.subr.mxu0 0.0
    %2601 = vmatpush2.xpose.msra.mxu0 0.0
    %2602 = vmatprep.subr.mxu0 0.0
    %2603 = vmatpush2.xpose.msra.mxu0 0.0
    %2604 = vmatprep.subr.mxu0 0.0
    %2605 = vmatpush2.xpose.msra.mxu0 0.0
    %2606 = vmatprep.subr.mxu0 0.0
    %2607 = vmatpush2.xpose.msra.mxu0 0.0
    %2608 = vmatprep.subr.mxu0 0.0
    %2609 = vmatpush2.xpose.msra.mxu0 0.0
    %2610 = vmatprep.mubr.f32.mxu0 0.0
    %2611 = vmatmul.mubr.f32.gmra.mxu0 %v2542
    %v2612 = vpop.f32.mrf.mxu0
    %v2613 = vadd.f32 0.0, %v2612
    %v2614 = vpop.f32.mrf.mxu0
    %2615 = vdwg.mxu0
    %2616 = vrot.lane.b32.xlu0 %v2214, 96
    %v2617 = vpop.permute.xlu0 %2616
    %v2619 = vsel %vm390, %v2228, 0
    %v2621 = vsel %vm390, %v2617, 0
    %2623 = vmatprep.subr.mxu0 0.0
    %2624 = vmatpush1.xpose.msra.mxu0 0.0
    %2625 = vmatprep.subr.mxu0 0.0
    %2626 = vmatpush1.xpose.msra.mxu0 0.0
    %2627 = vmatprep.subr.mxu0 0.0
    %2628 = vmatpush1.xpose.msra.mxu0 0.0
    %2629 = vmatprep.subr.mxu0 0.0
    %2630 = vmatpush1.xpose.msra.mxu0 0.0
    %2631 = vmatprep.subr.mxu0 0.0
    %2632 = vmatpush1.xpose.msra.mxu0 0.0
    %2633 = vmatprep.subr.mxu0 0.0
    %2634 = vmatpush1.xpose.msra.mxu0 0.0
    %2635 = vmatprep.subr.mxu0 0.0
    %2636 = vmatpush1.xpose.msra.mxu0 0.0
    %2637 = vmatprep.subr.mxu0 0.0
    %2638 = vmatpush1.xpose.msra.mxu0 0.0
    %2639 = vmatprep.subr.mxu0 0.0
    %2640 = vmatpush1.xpose.msra.mxu0 0.0
    %2641 = vmatprep.subr.mxu0 0.0
    %2642 = vmatpush1.xpose.msra.mxu0 0.0
    %2643 = vmatprep.subr.mxu0 0.0
    %2644 = vmatpush1.xpose.msra.mxu0 0.0
    %2645 = vmatprep.subr.mxu0 0.0
    %2646 = vmatpush1.xpose.msra.mxu0 0.0
    %2647 = vmatprep.subr.mxu0 0.0
    %2648 = vmatpush1.xpose.msra.mxu0 0.0
    %2649 = vmatprep.subr.mxu0 0.0
    %2650 = vmatpush1.xpose.msra.mxu0 0.0
    %2651 = vmatprep.subr.mxu0 0.0
    %2652 = vmatpush1.xpose.msra.mxu0 0.0
    %2653 = vmatprep.subr.mxu0 0.0
    %2654 = vmatpush1.xpose.msra.mxu0 %v2621
    %2655 = vmatprep.subr.mxu0 0.0
    %2656 = vmatpush2.xpose.msra.mxu0 0.0
    %2657 = vmatprep.subr.mxu0 0.0
    %2658 = vmatpush2.xpose.msra.mxu0 0.0
    %2659 = vmatprep.subr.mxu0 0.0
    %2660 = vmatpush2.xpose.msra.mxu0 0.0
    %2661 = vmatprep.subr.mxu0 0.0
    %2662 = vmatpush2.xpose.msra.mxu0 0.0
    %2663 = vmatprep.subr.mxu0 0.0
    %2664 = vmatpush2.xpose.msra.mxu0 0.0
    %2665 = vmatprep.subr.mxu0 0.0
    %2666 = vmatpush2.xpose.msra.mxu0 0.0
    %2667 = vmatprep.subr.mxu0 0.0
    %2668 = vmatpush2.xpose.msra.mxu0 0.0
    %2669 = vmatprep.subr.mxu0 0.0
    %2670 = vmatpush2.xpose.msra.mxu0 0.0
    %2671 = vmatprep.subr.mxu0 0.0
    %2672 = vmatpush2.xpose.msra.mxu0 0.0
    %2673 = vmatprep.subr.mxu0 0.0
    %2674 = vmatpush2.xpose.msra.mxu0 0.0
    %2675 = vmatprep.subr.mxu0 0.0
    %2676 = vmatpush2.xpose.msra.mxu0 0.0
    %2677 = vmatprep.subr.mxu0 0.0
    %2678 = vmatpush2.xpose.msra.mxu0 0.0
    %2679 = vmatprep.subr.mxu0 0.0
    %2680 = vmatpush2.xpose.msra.mxu0 0.0
    %2681 = vmatprep.subr.mxu0 0.0
    %2682 = vmatpush2.xpose.msra.mxu0 0.0
    %2683 = vmatprep.subr.mxu0 0.0
    %2684 = vmatpush2.xpose.msra.mxu0 0.0
    %2685 = vmatprep.subr.mxu0 0.0
    %2686 = vmatpush2.xpose.msra.mxu0 0.0
    %2687 = vmatprep.mubr.f32.mxu0 0.0
    %2688 = vmatmul.mubr.f32.gmra.mxu0 %v2619
    %v2689 = vpop.f32.mrf.mxu0
    %v2690 = vadd.f32 0.0, %v2689
    %v2691 = vpop.f32.mrf.mxu0
    %2692 = vdwg.mxu0
    %2693 = vrot.lane.b32.xlu0 %v2218, 96
    %v2694 = vpop.permute.xlu0 %2693
    %v2696 = vsel %vm390, %v2229, 0
    %v2698 = vsel %vm390, %v2694, 0
    %2700 = vmatprep.subr.mxu0 0.0
    %2701 = vmatpush1.xpose.msra.mxu0 0.0
    %2702 = vmatprep.subr.mxu0 0.0
    %2703 = vmatpush1.xpose.msra.mxu0 0.0
    %2704 = vmatprep.subr.mxu0 0.0
    %2705 = vmatpush1.xpose.msra.mxu0 0.0
    %2706 = vmatprep.subr.mxu0 0.0
    %2707 = vmatpush1.xpose.msra.mxu0 0.0
    %2708 = vmatprep.subr.mxu0 0.0
    %2709 = vmatpush1.xpose.msra.mxu0 0.0
    %2710 = vmatprep.subr.mxu0 0.0
    %2711 = vmatpush1.xpose.msra.mxu0 0.0
    %2712 = vmatprep.subr.mxu0 0.0
    %2713 = vmatpush1.xpose.msra.mxu0 0.0
    %2714 = vmatprep.subr.mxu0 0.0
    %2715 = vmatpush1.xpose.msra.mxu0 0.0
    %2716 = vmatprep.subr.mxu0 0.0
    %2717 = vmatpush1.xpose.msra.mxu0 0.0
    %2718 = vmatprep.subr.mxu0 0.0
    %2719 = vmatpush1.xpose.msra.mxu0 0.0
    %2720 = vmatprep.subr.mxu0 0.0
    %2721 = vmatpush1.xpose.msra.mxu0 0.0
    %2722 = vmatprep.subr.mxu0 0.0
    %2723 = vmatpush1.xpose.msra.mxu0 0.0
    %2724 = vmatprep.subr.mxu0 0.0
    %2725 = vmatpush1.xpose.msra.mxu0 0.0
    %2726 = vmatprep.subr.mxu0 0.0
    %2727 = vmatpush1.xpose.msra.mxu0 0.0
    %2728 = vmatprep.subr.mxu0 0.0
    %2729 = vmatpush1.xpose.msra.mxu0 0.0
    %2730 = vmatprep.subr.mxu0 0.0
    %2731 = vmatpush1.xpose.msra.mxu0 %v2698
    %2732 = vmatprep.subr.mxu0 0.0
    %2733 = vmatpush2.xpose.msra.mxu0 0.0
    %2734 = vmatprep.subr.mxu0 0.0
    %2735 = vmatpush2.xpose.msra.mxu0 0.0
    %2736 = vmatprep.subr.mxu0 0.0
    %2737 = vmatpush2.xpose.msra.mxu0 0.0
    %2738 = vmatprep.subr.mxu0 0.0
    %2739 = vmatpush2.xpose.msra.mxu0 0.0
    %2740 = vmatprep.subr.mxu0 0.0
    %2741 = vmatpush2.xpose.msra.mxu0 0.0
    %2742 = vmatprep.subr.mxu0 0.0
    %2743 = vmatpush2.xpose.msra.mxu0 0.0
    %2744 = vmatprep.subr.mxu0 0.0
    %2745 = vmatpush2.xpose.msra.mxu0 0.0
    %2746 = vmatprep.subr.mxu0 0.0
    %2747 = vmatpush2.xpose.msra.mxu0 0.0
    %2748 = vmatprep.subr.mxu0 0.0
    %2749 = vmatpush2.xpose.msra.mxu0 0.0
    %2750 = vmatprep.subr.mxu0 0.0
    %2751 = vmatpush2.xpose.msra.mxu0 0.0
    %2752 = vmatprep.subr.mxu0 0.0
    %2753 = vmatpush2.xpose.msra.mxu0 0.0
    %2754 = vmatprep.subr.mxu0 0.0
    %2755 = vmatpush2.xpose.msra.mxu0 0.0
    %2756 = vmatprep.subr.mxu0 0.0
    %2757 = vmatpush2.xpose.msra.mxu0 0.0
    %2758 = vmatprep.subr.mxu0 0.0
    %2759 = vmatpush2.xpose.msra.mxu0 0.0
    %2760 = vmatprep.subr.mxu0 0.0
    %2761 = vmatpush2.xpose.msra.mxu0 0.0
    %2762 = vmatprep.subr.mxu0 0.0
    %2763 = vmatpush2.xpose.msra.mxu0 0.0
    %2764 = vmatprep.mubr.f32.mxu0 0.0
    %2765 = vmatmul.mubr.f32.gmra.mxu0 %v2696
    %v2766 = vpop.f32.mrf.mxu0
    %v2767 = vadd.f32 0.0, %v2766
    %v2768 = vpop.f32.mrf.mxu0
    %2769 = vdwg.mxu0
    %2770 = vrot.lane.b32.xlu0 %v2220, 96
    %v2771 = vpop.permute.xlu0 %2770
    %v2773 = vsel %vm390, %v2230, 0
    %v2775 = vsel %vm390, %v2771, 0
    %2777 = vmatprep.subr.mxu0 0.0
    %2778 = vmatpush1.xpose.msra.mxu0 0.0
    %2779 = vmatprep.subr.mxu0 0.0
    %2780 = vmatpush1.xpose.msra.mxu0 0.0
    %2781 = vmatprep.subr.mxu0 0.0
    %2782 = vmatpush1.xpose.msra.mxu0 0.0
    %2783 = vmatprep.subr.mxu0 0.0
    %2784 = vmatpush1.xpose.msra.mxu0 0.0
    %2785 = vmatprep.subr.mxu0 0.0
    %2786 = vmatpush1.xpose.msra.mxu0 0.0
    %2787 = vmatprep.subr.mxu0 0.0
    %2788 = vmatpush1.xpose.msra.mxu0 0.0
    %2789 = vmatprep.subr.mxu0 0.0
    %2790 = vmatpush1.xpose.msra.mxu0 0.0
    %2791 = vmatprep.subr.mxu0 0.0
    %2792 = vmatpush1.xpose.msra.mxu0 0.0
    %2793 = vmatprep.subr.mxu0 0.0
    %2794 = vmatpush1.xpose.msra.mxu0 0.0
    %2795 = vmatprep.subr.mxu0 0.0
    %2796 = vmatpush1.xpose.msra.mxu0 0.0
    %2797 = vmatprep.subr.mxu0 0.0
    %2798 = vmatpush1.xpose.msra.mxu0 0.0
    %2799 = vmatprep.subr.mxu0 0.0
    %2800 = vmatpush1.xpose.msra.mxu0 0.0
    %2801 = vmatprep.subr.mxu0 0.0
    %2802 = vmatpush1.xpose.msra.mxu0 0.0
    %2803 = vmatprep.subr.mxu0 0.0
    %2804 = vmatpush1.xpose.msra.mxu0 0.0
    %2805 = vmatprep.subr.mxu0 0.0
    %2806 = vmatpush1.xpose.msra.mxu0 0.0
    %2807 = vmatprep.subr.mxu0 0.0
    %2808 = vmatpush1.xpose.msra.mxu0 %v2775
    %2809 = vmatprep.subr.mxu0 0.0
    %2810 = vmatpush2.xpose.msra.mxu0 0.0
    %2811 = vmatprep.subr.mxu0 0.0
    %2812 = vmatpush2.xpose.msra.mxu0 0.0
    %2813 = vmatprep.subr.mxu0 0.0
    %2814 = vmatpush2.xpose.msra.mxu0 0.0
    %2815 = vmatprep.subr.mxu0 0.0
    %2816 = vmatpush2.xpose.msra.mxu0 0.0
    %2817 = vmatprep.subr.mxu0 0.0
    %2818 = vmatpush2.xpose.msra.mxu0 0.0
    %2819 = vmatprep.subr.mxu0 0.0
    %2820 = vmatpush2.xpose.msra.mxu0 0.0
    %2821 = vmatprep.subr.mxu0 0.0
    %2822 = vmatpush2.xpose.msra.mxu0 0.0
    %2823 = vmatprep.subr.mxu0 0.0
    %2824 = vmatpush2.xpose.msra.mxu0 0.0
    %2825 = vmatprep.subr.mxu0 0.0
    %2826 = vmatpush2.xpose.msra.mxu0 0.0
    %2827 = vmatprep.subr.mxu0 0.0
    %2828 = vmatpush2.xpose.msra.mxu0 0.0
    %2829 = vmatprep.subr.mxu0 0.0
    %2830 = vmatpush2.xpose.msra.mxu0 0.0
    %2831 = vmatprep.subr.mxu0 0.0
    %2832 = vmatpush2.xpose.msra.mxu0 0.0
    %2833 = vmatprep.subr.mxu0 0.0
    %2834 = vmatpush2.xpose.msra.mxu0 0.0
    %2835 = vmatprep.subr.mxu0 0.0
    %2836 = vmatpush2.xpose.msra.mxu0 0.0
    %2837 = vmatprep.subr.mxu0 0.0
    %2838 = vmatpush2.xpose.msra.mxu0 0.0
    %2839 = vmatprep.subr.mxu0 0.0
    %2840 = vmatpush2.xpose.msra.mxu0 0.0
    %2841 = vmatprep.mubr.f32.mxu0 0.0
    %2842 = vmatmul.mubr.f32.gmra.mxu0 %v2773
    %v2843 = vpop.f32.mrf.mxu0
    %v2844 = vadd.f32 0.0, %v2843
    %v2845 = vpop.f32.mrf.mxu0
    %2846 = vdwg.mxu0
    %v2847 = vsel %vm390, %v2305, -inf
    %2848 = vmax.xlane.f32.xlu0 %v2847
    %v2849 = vpop.xlane.xlu0 %2848
    %v2850 = vsel %vm390, %v2382, -inf
    %2851 = vmax.xlane.f32.xlu0 %v2850
    %v2852 = vpop.xlane.xlu0 %2851
    %v2853 = vsel %vm390, %v2459, -inf
    %2854 = vmax.xlane.f32.xlu0 %v2853
    %v2855 = vpop.xlane.xlu0 %2854
    %v2856 = vsel %vm390, %v2536, -inf
    %2857 = vmax.xlane.f32.xlu0 %v2856
    %v2858 = vpop.xlane.xlu0 %2857
    %v2859 = vsel %vm390, %v2613, -inf
    %2860 = vmax.xlane.f32.xlu0 %v2859
    %v2861 = vpop.xlane.xlu0 %2860
    %v2862 = vsel %vm390, %v2690, -inf
    %2863 = vmax.xlane.f32.xlu0 %v2862
    %v2864 = vpop.xlane.xlu0 %2863
    %v2865 = vsel %vm390, %v2767, -inf
    %2866 = vmax.xlane.f32.xlu0 %v2865
    %v2867 = vpop.xlane.xlu0 %2866
    %v2868 = vsel %vm390, %v2844, -inf
    %2869 = vmax.xlane.f32.xlu0 %v2868
    %v2870 = vpop.xlane.xlu0 %2869
    %v2871 = vsub.f32 %v2305, %v2849
    %v2872 = vsub.f32 %v2382, %v2852
    %v2873 = vsub.f32 %v2459, %v2855
    %v2874 = vsub.f32 %v2536, %v2858
    %v2875 = vsub.f32 %v2613, %v2861
    %v2876 = vsub.f32 %v2690, %v2864
    %v2877 = vsub.f32 %v2767, %v2867
    %v2878 = vsub.f32 %v2844, %v2870
    %v2879 = vmul.f32 %v2871, 1.442695
    %v2880 = vpow.pop %v2879
    %v2881 = vmul.f32 %v2872, 1.442695
    %v2882 = vpow.pop %v2881
    %v2883 = vmul.f32 %v2873, 1.442695
    %v2884 = vpow.pop %v2883
    %v2885 = vmul.f32 %v2874, 1.442695
    %v2886 = vpow.pop %v2885
    %v2887 = vmul.f32 %v2875, 1.442695
    %v2888 = vpow.pop %v2887
    %v2889 = vmul.f32 %v2876, 1.442695
    %v2890 = vpow.pop %v2889
    %v2891 = vmul.f32 %v2877, 1.442695
    %v2892 = vpow.pop %v2891
    %v2893 = vmul.f32 %v2878, 1.442695
    %v2894 = vpow.pop %v2893
    %v2895 = vsel %vm390, %v2880, 0.0
    %2896 = vadd.xlane.f32.xlu0 %v2895
    %v2897 = vpop.xlane.xlu0 %2896
    %v2898 = vsel %vm390, %v2882, 0.0
    %2899 = vadd.xlane.f32.xlu0 %v2898
    %v2900 = vpop.xlane.xlu0 %2899
    %v2901 = vsel %vm390, %v2884, 0.0
    %2902 = vadd.xlane.f32.xlu0 %v2901
    %v2903 = vpop.xlane.xlu0 %2902
    %v2904 = vsel %vm390, %v2886, 0.0
    %2905 = vadd.xlane.f32.xlu0 %v2904
    %v2906 = vpop.xlane.xlu0 %2905
    %v2907 = vsel %vm390, %v2888, 0.0
    %2908 = vadd.xlane.f32.xlu0 %v2907
    %v2909 = vpop.xlane.xlu0 %2908
    %v2910 = vsel %vm390, %v2890, 0.0
    %2911 = vadd.xlane.f32.xlu0 %v2910
    %v2912 = vpop.xlane.xlu0 %2911
    %v2913 = vsel %vm390, %v2892, 0.0
    %2914 = vadd.xlane.f32.xlu0 %v2913
    %v2915 = vpop.xlane.xlu0 %2914
    %v2916 = vsel %vm390, %v2894, 0.0
    %2917 = vadd.xlane.f32.xlu0 %v2916
    %v2918 = vpop.xlane.xlu0 %2917
    %v2919 = vrcp.pop %v2897
    %v2920 = vrcp.pop %v2900
    %v2921 = vrcp.pop %v2903
    %v2922 = vrcp.pop %v2906
    %v2923 = vrcp.pop %v2909
    %v2924 = vrcp.pop %v2912
    %v2925 = vrcp.pop %v2915
    %v2926 = vrcp.pop %v2918
    %v2927 = vmul.f32 %v2880, %v2919
    %v2928 = vmul.f32 %v2882, %v2920
    %v2929 = vmul.f32 %v2884, %v2921
    %v2930 = vmul.f32 %v2886, %v2922
    %v2931 = vmul.f32 %v2888, %v2923
    %v2932 = vmul.f32 %v2890, %v2924
    %v2933 = vmul.f32 %v2892, %v2925
    %v2934 = vmul.f32 %v2894, %v2926
    %2935 = vrot.lane.b32.xlu0 %v2195, 64
    %v2936 = vpop.permute.xlu0 %2935
    %v2939 = vsel %vm390, %v2927, 0
    %2941 = vmatprep.subr.mxu0 0.0
    %2942 = vmatpush1.msra.mxu0 0.0
    %2943 = vmatprep.subr.mxu0 0.0
    %2944 = vmatpush1.msra.mxu0 0.0
    %2945 = vmatprep.subr.mxu0 0.0
    %2946 = vmatpush1.msra.mxu0 0.0
    %2947 = vmatprep.subr.mxu0 0.0
    %2948 = vmatpush1.msra.mxu0 0.0
    %2949 = vmatprep.subr.mxu0 0.0
    %2950 = vmatpush1.msra.mxu0 0.0
    %2951 = vmatprep.subr.mxu0 0.0
    %2952 = vmatpush1.msra.mxu0 0.0
    %2953 = vmatprep.subr.mxu0 0.0
    %2954 = vmatpush1.msra.mxu0 0.0
    %2955 = vmatprep.subr.mxu0 0.0
    %2956 = vmatpush1.msra.mxu0 0.0
    %2957 = vmatprep.subr.mxu0 0.0
    %2958 = vmatpush1.msra.mxu0 0.0
    %2959 = vmatprep.subr.mxu0 0.0
    %2960 = vmatpush1.msra.mxu0 0.0
    %2961 = vmatprep.subr.mxu0 0.0
    %2962 = vmatpush1.msra.mxu0 0.0
    %2963 = vmatprep.subr.mxu0 0.0
    %2964 = vmatpush1.msra.mxu0 0.0
    %2965 = vmatprep.subr.mxu0 0.0
    %2966 = vmatpush1.msra.mxu0 0.0
    %2967 = vmatprep.subr.mxu0 0.0
    %2968 = vmatpush1.msra.mxu0 0.0
    %2969 = vmatprep.subr.mxu0 0.0
    %2970 = vmatpush1.msra.mxu0 0.0
    %2971 = vmatprep.subr.mxu0 0.0
    %2972 = vmatpush1.msra.mxu0 %v2936
    %2973 = vmatprep.subr.mxu0 0.0
    %2974 = vmatpush2.msra.mxu0 0.0
    %2975 = vmatprep.subr.mxu0 0.0
    %2976 = vmatpush2.msra.mxu0 0.0
    %2977 = vmatprep.subr.mxu0 0.0
    %2978 = vmatpush2.msra.mxu0 0.0
    %2979 = vmatprep.subr.mxu0 0.0
    %2980 = vmatpush2.msra.mxu0 0.0
    %2981 = vmatprep.subr.mxu0 0.0
    %2982 = vmatpush2.msra.mxu0 0.0
    %2983 = vmatprep.subr.mxu0 0.0
    %2984 = vmatpush2.msra.mxu0 0.0
    %2985 = vmatprep.subr.mxu0 0.0
    %2986 = vmatpush2.msra.mxu0 0.0
    %2987 = vmatprep.subr.mxu0 0.0
    %2988 = vmatpush2.msra.mxu0 0.0
    %2989 = vmatprep.subr.mxu0 0.0
    %2990 = vmatpush2.msra.mxu0 0.0
    %2991 = vmatprep.subr.mxu0 0.0
    %2992 = vmatpush2.msra.mxu0 0.0
    %2993 = vmatprep.subr.mxu0 0.0
    %2994 = vmatpush2.msra.mxu0 0.0
    %2995 = vmatprep.subr.mxu0 0.0
    %2996 = vmatpush2.msra.mxu0 0.0
    %2997 = vmatprep.subr.mxu0 0.0
    %2998 = vmatpush2.msra.mxu0 0.0
    %2999 = vmatprep.subr.mxu0 0.0
    %3000 = vmatpush2.msra.mxu0 0.0
    %3001 = vmatprep.subr.mxu0 0.0
    %3002 = vmatpush2.msra.mxu0 0.0
    %3003 = vmatprep.subr.mxu0 0.0
    %3004 = vmatpush2.msra.mxu0 0.0
    %3005 = vmatprep.mubr.f32.mxu0 0.0
    %3006 = vmatmul.mubr.f32.gmra.mxu0 %v2939
    %v3007 = vpop.f32.mrf.mxu0
    %v3008 = vadd.f32 0.0, %v3007
    %v3009 = vpop.f32.mrf.mxu0
    %3010 = vdwg.mxu0
    %3011 = vrot.lane.b32.xlu0 %v2200, 64
    %v3012 = vpop.permute.xlu0 %3011
    %v3015 = vsel %vm390, %v2928, 0
    %3017 = vmatprep.subr.mxu0 0.0
    %3018 = vmatpush1.msra.mxu0 0.0
    %3019 = vmatprep.subr.mxu0 0.0
    %3020 = vmatpush1.msra.mxu0 0.0
    %3021 = vmatprep.subr.mxu0 0.0
    %3022 = vmatpush1.msra.mxu0 0.0
    %3023 = vmatprep.subr.mxu0 0.0
    %3024 = vmatpush1.msra.mxu0 0.0
    %3025 = vmatprep.subr.mxu0 0.0
    %3026 = vmatpush1.msra.mxu0 0.0
    %3027 = vmatprep.subr.mxu0 0.0
    %3028 = vmatpush1.msra.mxu0 0.0
    %3029 = vmatprep.subr.mxu0 0.0
    %3030 = vmatpush1.msra.mxu0 0.0
    %3031 = vmatprep.subr.mxu0 0.0
    %3032 = vmatpush1.msra.mxu0 0.0
    %3033 = vmatprep.subr.mxu0 0.0
    %3034 = vmatpush1.msra.mxu0 0.0
    %3035 = vmatprep.subr.mxu0 0.0
    %3036 = vmatpush1.msra.mxu0 0.0
    %3037 = vmatprep.subr.mxu0 0.0
    %3038 = vmatpush1.msra.mxu0 0.0
    %3039 = vmatprep.subr.mxu0 0.0
    %3040 = vmatpush1.msra.mxu0 0.0
    %3041 = vmatprep.subr.mxu0 0.0
    %3042 = vmatpush1.msra.mxu0 0.0
    %3043 = vmatprep.subr.mxu0 0.0
    %3044 = vmatpush1.msra.mxu0 0.0
    %3045 = vmatprep.subr.mxu0 0.0
    %3046 = vmatpush1.msra.mxu0 0.0
    %3047 = vmatprep.subr.mxu0 0.0
    %3048 = vmatpush1.msra.mxu0 %v3012
    %3049 = vmatprep.subr.mxu0 0.0
    %3050 = vmatpush2.msra.mxu0 0.0
    %3051 = vmatprep.subr.mxu0 0.0
    %3052 = vmatpush2.msra.mxu0 0.0
    %3053 = vmatprep.subr.mxu0 0.0
    %3054 = vmatpush2.msra.mxu0 0.0
    %3055 = vmatprep.subr.mxu0 0.0
    %3056 = vmatpush2.msra.mxu0 0.0
    %3057 = vmatprep.subr.mxu0 0.0
    %3058 = vmatpush2.msra.mxu0 0.0
    %3059 = vmatprep.subr.mxu0 0.0
    %3060 = vmatpush2.msra.mxu0 0.0
    %3061 = vmatprep.subr.mxu0 0.0
    %3062 = vmatpush2.msra.mxu0 0.0
    %3063 = vmatprep.subr.mxu0 0.0
    %3064 = vmatpush2.msra.mxu0 0.0
    %3065 = vmatprep.subr.mxu0 0.0
    %3066 = vmatpush2.msra.mxu0 0.0
    %3067 = vmatprep.subr.mxu0 0.0
    %3068 = vmatpush2.msra.mxu0 0.0
    %3069 = vmatprep.subr.mxu0 0.0
    %3070 = vmatpush2.msra.mxu0 0.0
    %3071 = vmatprep.subr.mxu0 0.0
    %3072 = vmatpush2.msra.mxu0 0.0
    %3073 = vmatprep.subr.mxu0 0.0
    %3074 = vmatpush2.msra.mxu0 0.0
    %3075 = vmatprep.subr.mxu0 0.0
    %3076 = vmatpush2.msra.mxu0 0.0
    %3077 = vmatprep.subr.mxu0 0.0
    %3078 = vmatpush2.msra.mxu0 0.0
    %3079 = vmatprep.subr.mxu0 0.0
    %3080 = vmatpush2.msra.mxu0 0.0
    %3081 = vmatprep.mubr.f32.mxu0 0.0
    %3082 = vmatmul.mubr.f32.gmra.mxu0 %v3015
    %v3083 = vpop.f32.mrf.mxu0
    %v3084 = vadd.f32 0.0, %v3083
    %v3085 = vpop.f32.mrf.mxu0
    %3086 = vdwg.mxu0
    %3087 = vrot.lane.b32.xlu0 %v2206, 64
    %v3088 = vpop.permute.xlu0 %3087
    %v3091 = vsel %vm390, %v2929, 0
    %3093 = vmatprep.subr.mxu0 0.0
    %3094 = vmatpush1.msra.mxu0 0.0
    %3095 = vmatprep.subr.mxu0 0.0
    %3096 = vmatpush1.msra.mxu0 0.0
    %3097 = vmatprep.subr.mxu0 0.0
    %3098 = vmatpush1.msra.mxu0 0.0
    %3099 = vmatprep.subr.mxu0 0.0
    %3100 = vmatpush1.msra.mxu0 0.0
    %3101 = vmatprep.subr.mxu0 0.0
    %3102 = vmatpush1.msra.mxu0 0.0
    %3103 = vmatprep.subr.mxu0 0.0
    %3104 = vmatpush1.msra.mxu0 0.0
    %3105 = vmatprep.subr.mxu0 0.0
    %3106 = vmatpush1.msra.mxu0 0.0
    %3107 = vmatprep.subr.mxu0 0.0
    %3108 = vmatpush1.msra.mxu0 0.0
    %3109 = vmatprep.subr.mxu0 0.0
    %3110 = vmatpush1.msra.mxu0 0.0
    %3111 = vmatprep.subr.mxu0 0.0
    %3112 = vmatpush1.msra.mxu0 0.0
    %3113 = vmatprep.subr.mxu0 0.0
    %3114 = vmatpush1.msra.mxu0 0.0
    %3115 = vmatprep.subr.mxu0 0.0
    %3116 = vmatpush1.msra.mxu0 0.0
    %3117 = vmatprep.subr.mxu0 0.0
    %3118 = vmatpush1.msra.mxu0 0.0
    %3119 = vmatprep.subr.mxu0 0.0
    %3120 = vmatpush1.msra.mxu0 0.0
    %3121 = vmatprep.subr.mxu0 0.0
    %3122 = vmatpush1.msra.mxu0 0.0
    %3123 = vmatprep.subr.mxu0 0.0
    %3124 = vmatpush1.msra.mxu0 %v3088
    %3125 = vmatprep.subr.mxu0 0.0
    %3126 = vmatpush2.msra.mxu0 0.0
    %3127 = vmatprep.subr.mxu0 0.0
    %3128 = vmatpush2.msra.mxu0 0.0
    %3129 = vmatprep.subr.mxu0 0.0
    %3130 = vmatpush2.msra.mxu0 0.0
    %3131 = vmatprep.subr.mxu0 0.0
    %3132 = vmatpush2.msra.mxu0 0.0
    %3133 = vmatprep.subr.mxu0 0.0
    %3134 = vmatpush2.msra.mxu0 0.0
    %3135 = vmatprep.subr.mxu0 0.0
    %3136 = vmatpush2.msra.mxu0 0.0
    %3137 = vmatprep.subr.mxu0 0.0
    %3138 = vmatpush2.msra.mxu0 0.0
    %3139 = vmatprep.subr.mxu0 0.0
    %3140 = vmatpush2.msra.mxu0 0.0
    %3141 = vmatprep.subr.mxu0 0.0
    %3142 = vmatpush2.msra.mxu0 0.0
    %3143 = vmatprep.subr.mxu0 0.0
    %3144 = vmatpush2.msra.mxu0 0.0
    %3145 = vmatprep.subr.mxu0 0.0
    %3146 = vmatpush2.msra.mxu0 0.0
    %3147 = vmatprep.subr.mxu0 0.0
    %3148 = vmatpush2.msra.mxu0 0.0
    %3149 = vmatprep.subr.mxu0 0.0
    %3150 = vmatpush2.msra.mxu0 0.0
    %3151 = vmatprep.subr.mxu0 0.0
    %3152 = vmatpush2.msra.mxu0 0.0
    %3153 = vmatprep.subr.mxu0 0.0
    %3154 = vmatpush2.msra.mxu0 0.0
    %3155 = vmatprep.subr.mxu0 0.0
    %3156 = vmatpush2.msra.mxu0 0.0
    %3157 = vmatprep.mubr.f32.mxu0 0.0
    %3158 = vmatmul.mubr.f32.gmra.mxu0 %v3091
    %v3159 = vpop.f32.mrf.mxu0
    %v3160 = vadd.f32 0.0, %v3159
    %v3161 = vpop.f32.mrf.mxu0
    %3162 = vdwg.mxu0
    %3163 = vrot.lane.b32.xlu0 %v2208, 64
    %v3164 = vpop.permute.xlu0 %3163
    %v3167 = vsel %vm390, %v2930, 0
    %3169 = vmatprep.subr.mxu0 0.0
    %3170 = vmatpush1.msra.mxu0 0.0
    %3171 = vmatprep.subr.mxu0 0.0
    %3172 = vmatpush1.msra.mxu0 0.0
    %3173 = vmatprep.subr.mxu0 0.0
    %3174 = vmatpush1.msra.mxu0 0.0
    %3175 = vmatprep.subr.mxu0 0.0
    %3176 = vmatpush1.msra.mxu0 0.0
    %3177 = vmatprep.subr.mxu0 0.0
    %3178 = vmatpush1.msra.mxu0 0.0
    %3179 = vmatprep.subr.mxu0 0.0
    %3180 = vmatpush1.msra.mxu0 0.0
    %3181 = vmatprep.subr.mxu0 0.0
    %3182 = vmatpush1.msra.mxu0 0.0
    %3183 = vmatprep.subr.mxu0 0.0
    %3184 = vmatpush1.msra.mxu0 0.0
    %3185 = vmatprep.subr.mxu0 0.0
    %3186 = vmatpush1.msra.mxu0 0.0
    %3187 = vmatprep.subr.mxu0 0.0
    %3188 = vmatpush1.msra.mxu0 0.0
    %3189 = vmatprep.subr.mxu0 0.0
    %3190 = vmatpush1.msra.mxu0 0.0
    %3191 = vmatprep.subr.mxu0 0.0
    %3192 = vmatpush1.msra.mxu0 0.0
    %3193 = vmatprep.subr.mxu0 0.0
    %3194 = vmatpush1.msra.mxu0 0.0
    %3195 = vmatprep.subr.mxu0 0.0
    %3196 = vmatpush1.msra.mxu0 0.0
    %3197 = vmatprep.subr.mxu0 0.0
    %3198 = vmatpush1.msra.mxu0 0.0
    %3199 = vmatprep.subr.mxu0 0.0
    %3200 = vmatpush1.msra.mxu0 %v3164
    %3201 = vmatprep.subr.mxu0 0.0
    %3202 = vmatpush2.msra.mxu0 0.0
    %3203 = vmatprep.subr.mxu0 0.0
    %3204 = vmatpush2.msra.mxu0 0.0
    %3205 = vmatprep.subr.mxu0 0.0
    %3206 = vmatpush2.msra.mxu0 0.0
    %3207 = vmatprep.subr.mxu0 0.0
    %3208 = vmatpush2.msra.mxu0 0.0
    %3209 = vmatprep.subr.mxu0 0.0
    %3210 = vmatpush2.msra.mxu0 0.0
    %3211 = vmatprep.subr.mxu0 0.0
    %3212 = vmatpush2.msra.mxu0 0.0
    %3213 = vmatprep.subr.mxu0 0.0
    %3214 = vmatpush2.msra.mxu0 0.0
    %3215 = vmatprep.subr.mxu0 0.0
    %3216 = vmatpush2.msra.mxu0 0.0
    %3217 = vmatprep.subr.mxu0 0.0
    %3218 = vmatpush2.msra.mxu0 0.0
    %3219 = vmatprep.subr.mxu0 0.0
    %3220 = vmatpush2.msra.mxu0 0.0
    %3221 = vmatprep.subr.mxu0 0.0
    %3222 = vmatpush2.msra.mxu0 0.0
    %3223 = vmatprep.subr.mxu0 0.0
    %3224 = vmatpush2.msra.mxu0 0.0
    %3225 = vmatprep.subr.mxu0 0.0
    %3226 = vmatpush2.msra.mxu0 0.0
    %3227 = vmatprep.subr.mxu0 0.0
    %3228 = vmatpush2.msra.mxu0 0.0
    %3229 = vmatprep.subr.mxu0 0.0
    %3230 = vmatpush2.msra.mxu0 0.0
    %3231 = vmatprep.subr.mxu0 0.0
    %3232 = vmatpush2.msra.mxu0 0.0
    %3233 = vmatprep.mubr.f32.mxu0 0.0
    %3234 = vmatmul.mubr.f32.gmra.mxu0 %v3167
    %v3235 = vpop.f32.mrf.mxu0
    %v3236 = vadd.f32 0.0, %v3235
    %v3237 = vpop.f32.mrf.mxu0
    %3238 = vdwg.mxu0
    %3239 = vrot.lane.b32.xlu0 %v2212, 64
    %v3240 = vpop.permute.xlu0 %3239
    %v3243 = vsel %vm390, %v2931, 0
    %3245 = vmatprep.subr.mxu0 0.0
    %3246 = vmatpush1.msra.mxu0 0.0
    %3247 = vmatprep.subr.mxu0 0.0
    %3248 = vmatpush1.msra.mxu0 0.0
    %3249 = vmatprep.subr.mxu0 0.0
    %3250 = vmatpush1.msra.mxu0 0.0
    %3251 = vmatprep.subr.mxu0 0.0
    %3252 = vmatpush1.msra.mxu0 0.0
    %3253 = vmatprep.subr.mxu0 0.0
    %3254 = vmatpush1.msra.mxu0 0.0
    %3255 = vmatprep.subr.mxu0 0.0
    %3256 = vmatpush1.msra.mxu0 0.0
    %3257 = vmatprep.subr.mxu0 0.0
    %3258 = vmatpush1.msra.mxu0 0.0
    %3259 = vmatprep.subr.mxu0 0.0
    %3260 = vmatpush1.msra.mxu0 0.0
    %3261 = vmatprep.subr.mxu0 0.0
    %3262 = vmatpush1.msra.mxu0 0.0
    %3263 = vmatprep.subr.mxu0 0.0
    %3264 = vmatpush1.msra.mxu0 0.0
    %3265 = vmatprep.subr.mxu0 0.0
    %3266 = vmatpush1.msra.mxu0 0.0
    %3267 = vmatprep.subr.mxu0 0.0
    %3268 = vmatpush1.msra.mxu0 0.0
    %3269 = vmatprep.subr.mxu0 0.0
    %3270 = vmatpush1.msra.mxu0 0.0
    %3271 = vmatprep.subr.mxu0 0.0
    %3272 = vmatpush1.msra.mxu0 0.0
    %3273 = vmatprep.subr.mxu0 0.0
    %3274 = vmatpush1.msra.mxu0 0.0
    %3275 = vmatprep.subr.mxu0 0.0
    %3276 = vmatpush1.msra.mxu0 %v3240
    %3277 = vmatprep.subr.mxu0 0.0
    %3278 = vmatpush2.msra.mxu0 0.0
    %3279 = vmatprep.subr.mxu0 0.0
    %3280 = vmatpush2.msra.mxu0 0.0
    %3281 = vmatprep.subr.mxu0 0.0
    %3282 = vmatpush2.msra.mxu0 0.0
    %3283 = vmatprep.subr.mxu0 0.0
    %3284 = vmatpush2.msra.mxu0 0.0
    %3285 = vmatprep.subr.mxu0 0.0
    %3286 = vmatpush2.msra.mxu0 0.0
    %3287 = vmatprep.subr.mxu0 0.0
    %3288 = vmatpush2.msra.mxu0 0.0
    %3289 = vmatprep.subr.mxu0 0.0
    %3290 = vmatpush2.msra.mxu0 0.0
    %3291 = vmatprep.subr.mxu0 0.0
    %3292 = vmatpush2.msra.mxu0 0.0
    %3293 = vmatprep.subr.mxu0 0.0
    %3294 = vmatpush2.msra.mxu0 0.0
    %3295 = vmatprep.subr.mxu0 0.0
    %3296 = vmatpush2.msra.mxu0 0.0
    %3297 = vmatprep.subr.mxu0 0.0
    %3298 = vmatpush2.msra.mxu0 0.0
    %3299 = vmatprep.subr.mxu0 0.0
    %3300 = vmatpush2.msra.mxu0 0.0
    %3301 = vmatprep.subr.mxu0 0.0
    %3302 = vmatpush2.msra.mxu0 0.0
    %3303 = vmatprep.subr.mxu0 0.0
    %3304 = vmatpush2.msra.mxu0 0.0
    %3305 = vmatprep.subr.mxu0 0.0
    %3306 = vmatpush2.msra.mxu0 0.0
    %3307 = vmatprep.subr.mxu0 0.0
    %3308 = vmatpush2.msra.mxu0 0.0
    %3309 = vmatprep.mubr.f32.mxu0 0.0
    %3310 = vmatmul.mubr.f32.gmra.mxu0 %v3243
    %v3311 = vpop.f32.mrf.mxu0
    %v3312 = vadd.f32 0.0, %v3311
    %v3313 = vpop.f32.mrf.mxu0
    %3314 = vdwg.mxu0
    %3315 = vrot.lane.b32.xlu0 %v2214, 64
    %v3316 = vpop.permute.xlu0 %3315
    %v3319 = vsel %vm390, %v2932, 0
    %3321 = vmatprep.subr.mxu0 0.0
    %3322 = vmatpush1.msra.mxu0 0.0
    %3323 = vmatprep.subr.mxu0 0.0
    %3324 = vmatpush1.msra.mxu0 0.0
    %3325 = vmatprep.subr.mxu0 0.0
    %3326 = vmatpush1.msra.mxu0 0.0
    %3327 = vmatprep.subr.mxu0 0.0
    %3328 = vmatpush1.msra.mxu0 0.0
    %3329 = vmatprep.subr.mxu0 0.0
    %3330 = vmatpush1.msra.mxu0 0.0
    %3331 = vmatprep.subr.mxu0 0.0
    %3332 = vmatpush1.msra.mxu0 0.0
    %3333 = vmatprep.subr.mxu0 0.0
    %3334 = vmatpush1.msra.mxu0 0.0
    %3335 = vmatprep.subr.mxu0 0.0
    %3336 = vmatpush1.msra.mxu0 0.0
    %3337 = vmatprep.subr.mxu0 0.0
    %3338 = vmatpush1.msra.mxu0 0.0
    %3339 = vmatprep.subr.mxu0 0.0
    %3340 = vmatpush1.msra.mxu0 0.0
    %3341 = vmatprep.subr.mxu0 0.0
    %3342 = vmatpush1.msra.mxu0 0.0
    %3343 = vmatprep.subr.mxu0 0.0
    %3344 = vmatpush1.msra.mxu0 0.0
    %3345 = vmatprep.subr.mxu0 0.0
    %3346 = vmatpush1.msra.mxu0 0.0
    %3347 = vmatprep.subr.mxu0 0.0
    %3348 = vmatpush1.msra.mxu0 0.0
    %3349 = vmatprep.subr.mxu0 0.0
    %3350 = vmatpush1.msra.mxu0 0.0
    %3351 = vmatprep.subr.mxu0 0.0
    %3352 = vmatpush1.msra.mxu0 %v3316
    %3353 = vmatprep.subr.mxu0 0.0
    %3354 = vmatpush2.msra.mxu0 0.0
    %3355 = vmatprep.subr.mxu0 0.0
    %3356 = vmatpush2.msra.mxu0 0.0
    %3357 = vmatprep.subr.mxu0 0.0
    %3358 = vmatpush2.msra.mxu0 0.0
    %3359 = vmatprep.subr.mxu0 0.0
    %3360 = vmatpush2.msra.mxu0 0.0
    %3361 = vmatprep.subr.mxu0 0.0
    %3362 = vmatpush2.msra.mxu0 0.0
    %3363 = vmatprep.subr.mxu0 0.0
    %3364 = vmatpush2.msra.mxu0 0.0
    %3365 = vmatprep.subr.mxu0 0.0
    %3366 = vmatpush2.msra.mxu0 0.0
    %3367 = vmatprep.subr.mxu0 0.0
    %3368 = vmatpush2.msra.mxu0 0.0
    %3369 = vmatprep.subr.mxu0 0.0
    %3370 = vmatpush2.msra.mxu0 0.0
    %3371 = vmatprep.subr.mxu0 0.0
    %3372 = vmatpush2.msra.mxu0 0.0
    %3373 = vmatprep.subr.mxu0 0.0
    %3374 = vmatpush2.msra.mxu0 0.0
    %3375 = vmatprep.subr.mxu0 0.0
    %3376 = vmatpush2.msra.mxu0 0.0
    %3377 = vmatprep.subr.mxu0 0.0
    %3378 = vmatpush2.msra.mxu0 0.0
    %3379 = vmatprep.subr.mxu0 0.0
    %3380 = vmatpush2.msra.mxu0 0.0
    %3381 = vmatprep.subr.mxu0 0.0
    %3382 = vmatpush2.msra.mxu0 0.0
    %3383 = vmatprep.subr.mxu0 0.0
    %3384 = vmatpush2.msra.mxu0 0.0
    %3385 = vmatprep.mubr.f32.mxu0 0.0
    %3386 = vmatmul.mubr.f32.gmra.mxu0 %v3319
    %v3387 = vpop.f32.mrf.mxu0
    %v3388 = vadd.f32 0.0, %v3387
    %v3389 = vpop.f32.mrf.mxu0
    %3390 = vdwg.mxu0
    %3391 = vrot.lane.b32.xlu0 %v2218, 64
    %v3392 = vpop.permute.xlu0 %3391
    %v3395 = vsel %vm390, %v2933, 0
    %3397 = vmatprep.subr.mxu0 0.0
    %3398 = vmatpush1.msra.mxu0 0.0
    %3399 = vmatprep.subr.mxu0 0.0
    %3400 = vmatpush1.msra.mxu0 0.0
    %3401 = vmatprep.subr.mxu0 0.0
    %3402 = vmatpush1.msra.mxu0 0.0
    %3403 = vmatprep.subr.mxu0 0.0
    %3404 = vmatpush1.msra.mxu0 0.0
    %3405 = vmatprep.subr.mxu0 0.0
    %3406 = vmatpush1.msra.mxu0 0.0
    %3407 = vmatprep.subr.mxu0 0.0
    %3408 = vmatpush1.msra.mxu0 0.0
    %3409 = vmatprep.subr.mxu0 0.0
    %3410 = vmatpush1.msra.mxu0 0.0
    %3411 = vmatprep.subr.mxu0 0.0
    %3412 = vmatpush1.msra.mxu0 0.0
    %3413 = vmatprep.subr.mxu0 0.0
    %3414 = vmatpush1.msra.mxu0 0.0
    %3415 = vmatprep.subr.mxu0 0.0
    %3416 = vmatpush1.msra.mxu0 0.0
    %3417 = vmatprep.subr.mxu0 0.0
    %3418 = vmatpush1.msra.mxu0 0.0
    %3419 = vmatprep.subr.mxu0 0.0
    %3420 = vmatpush1.msra.mxu0 0.0
    %3421 = vmatprep.subr.mxu0 0.0
    %3422 = vmatpush1.msra.mxu0 0.0
    %3423 = vmatprep.subr.mxu0 0.0
    %3424 = vmatpush1.msra.mxu0 0.0
    %3425 = vmatprep.subr.mxu0 0.0
    %3426 = vmatpush1.msra.mxu0 0.0
    %3427 = vmatprep.subr.mxu0 0.0
    %3428 = vmatpush1.msra.mxu0 %v3392
    %3429 = vmatprep.subr.mxu0 0.0
    %3430 = vmatpush2.msra.mxu0 0.0
    %3431 = vmatprep.subr.mxu0 0.0
    %3432 = vmatpush2.msra.mxu0 0.0
    %3433 = vmatprep.subr.mxu0 0.0
    %3434 = vmatpush2.msra.mxu0 0.0
    %3435 = vmatprep.subr.mxu0 0.0
    %3436 = vmatpush2.msra.mxu0 0.0
    %3437 = vmatprep.subr.mxu0 0.0
    %3438 = vmatpush2.msra.mxu0 0.0
    %3439 = vmatprep.subr.mxu0 0.0
    %3440 = vmatpush2.msra.mxu0 0.0
    %3441 = vmatprep.subr.mxu0 0.0
    %3442 = vmatpush2.msra.mxu0 0.0
    %3443 = vmatprep.subr.mxu0 0.0
    %3444 = vmatpush2.msra.mxu0 0.0
    %3445 = vmatprep.subr.mxu0 0.0
    %3446 = vmatpush2.msra.mxu0 0.0
    %3447 = vmatprep.subr.mxu0 0.0
    %3448 = vmatpush2.msra.mxu0 0.0
    %3449 = vmatprep.subr.mxu0 0.0
    %3450 = vmatpush2.msra.mxu0 0.0
    %3451 = vmatprep.subr.mxu0 0.0
    %3452 = vmatpush2.msra.mxu0 0.0
    %3453 = vmatprep.subr.mxu0 0.0
    %3454 = vmatpush2.msra.mxu0 0.0
    %3455 = vmatprep.subr.mxu0 0.0
    %3456 = vmatpush2.msra.mxu0 0.0
    %3457 = vmatprep.subr.mxu0 0.0
    %3458 = vmatpush2.msra.mxu0 0.0
    %3459 = vmatprep.subr.mxu0 0.0
    %3460 = vmatpush2.msra.mxu0 0.0
    %3461 = vmatprep.mubr.f32.mxu0 0.0
    %3462 = vmatmul.mubr.f32.gmra.mxu0 %v3395
    %v3463 = vpop.f32.mrf.mxu0
    %v3464 = vadd.f32 0.0, %v3463
    %v3465 = vpop.f32.mrf.mxu0
    %3466 = vdwg.mxu0
    %3467 = vrot.lane.b32.xlu0 %v2220, 64
    %v3468 = vpop.permute.xlu0 %3467
    %v3471 = vsel %vm390, %v2934, 0
    %3473 = vmatprep.subr.mxu0 0.0
    %3474 = vmatpush1.msra.mxu0 0.0
    %3475 = vmatprep.subr.mxu0 0.0
    %3476 = vmatpush1.msra.mxu0 0.0
    %3477 = vmatprep.subr.mxu0 0.0
    %3478 = vmatpush1.msra.mxu0 0.0
    %3479 = vmatprep.subr.mxu0 0.0
    %3480 = vmatpush1.msra.mxu0 0.0
    %3481 = vmatprep.subr.mxu0 0.0
    %3482 = vmatpush1.msra.mxu0 0.0
    %3483 = vmatprep.subr.mxu0 0.0
    %3484 = vmatpush1.msra.mxu0 0.0
    %3485 = vmatprep.subr.mxu0 0.0
    %3486 = vmatpush1.msra.mxu0 0.0
    %3487 = vmatprep.subr.mxu0 0.0
    %3488 = vmatpush1.msra.mxu0 0.0
    %3489 = vmatprep.subr.mxu0 0.0
    %3490 = vmatpush1.msra.mxu0 0.0
    %3491 = vmatprep.subr.mxu0 0.0
    %3492 = vmatpush1.msra.mxu0 0.0
    %3493 = vmatprep.subr.mxu0 0.0
    %3494 = vmatpush1.msra.mxu0 0.0
    %3495 = vmatprep.subr.mxu0 0.0
    %3496 = vmatpush1.msra.mxu0 0.0
    %3497 = vmatprep.subr.mxu0 0.0
    %3498 = vmatpush1.msra.mxu0 0.0
    %3499 = vmatprep.subr.mxu0 0.0
    %3500 = vmatpush1.msra.mxu0 0.0
    %3501 = vmatprep.subr.mxu0 0.0
    %3502 = vmatpush1.msra.mxu0 0.0
    %3503 = vmatprep.subr.mxu0 0.0
    %3504 = vmatpush1.msra.mxu0 %v3468
    %3505 = vmatprep.subr.mxu0 0.0
    %3506 = vmatpush2.msra.mxu0 0.0
    %3507 = vmatprep.subr.mxu0 0.0
    %3508 = vmatpush2.msra.mxu0 0.0
    %3509 = vmatprep.subr.mxu0 0.0
    %3510 = vmatpush2.msra.mxu0 0.0
    %3511 = vmatprep.subr.mxu0 0.0
    %3512 = vmatpush2.msra.mxu0 0.0
    %3513 = vmatprep.subr.mxu0 0.0
    %3514 = vmatpush2.msra.mxu0 0.0
    %3515 = vmatprep.subr.mxu0 0.0
    %3516 = vmatpush2.msra.mxu0 0.0
    %3517 = vmatprep.subr.mxu0 0.0
    %3518 = vmatpush2.msra.mxu0 0.0
    %3519 = vmatprep.subr.mxu0 0.0
    %3520 = vmatpush2.msra.mxu0 0.0
    %3521 = vmatprep.subr.mxu0 0.0
    %3522 = vmatpush2.msra.mxu0 0.0
    %3523 = vmatprep.subr.mxu0 0.0
    %3524 = vmatpush2.msra.mxu0 0.0
    %3525 = vmatprep.subr.mxu0 0.0
    %3526 = vmatpush2.msra.mxu0 0.0
    %3527 = vmatprep.subr.mxu0 0.0
    %3528 = vmatpush2.msra.mxu0 0.0
    %3529 = vmatprep.subr.mxu0 0.0
    %3530 = vmatpush2.msra.mxu0 0.0
    %3531 = vmatprep.subr.mxu0 0.0
    %3532 = vmatpush2.msra.mxu0 0.0
    %3533 = vmatprep.subr.mxu0 0.0
    %3534 = vmatpush2.msra.mxu0 0.0
    %3535 = vmatprep.subr.mxu0 0.0
    %3536 = vmatpush2.msra.mxu0 0.0
    %3537 = vmatprep.mubr.f32.mxu0 0.0
    %3538 = vmatmul.mubr.f32.gmra.mxu0 %v3471
    %v3539 = vpop.f32.mrf.mxu0
    %v3540 = vadd.f32 0.0, %v3539
    %v3541 = vpop.f32.mrf.mxu0
    %3542 = vdwg.mxu0
    %3545 = vrot.lane.b32.xlu0 %v3160, 8
    %v3546 = vpop.permute.xlu0 %3545
    %3547 = vrot.lane.b32.xlu0 %v3236, 8
    %v3548 = vpop.permute.xlu0 %3547
    %3553 = vrot.lane.b32.xlu0 %v3312, 16
    %v3554 = vpop.permute.xlu0 %3553
    %3555 = vrot.lane.b32.xlu0 %v3388, 16
    %v3556 = vpop.permute.xlu0 %3555
    %3561 = vrot.lane.b32.xlu0 %v3464, 24
    %v3562 = vpop.permute.xlu0 %3561
    %3563 = vrot.lane.b32.xlu0 %v3540, 24
    %v3564 = vpop.permute.xlu0 %3563
    %v3567 = vsel %vm390, %v3008, %v3546
    %v3568 = vsel %vm390, %v3084, %v3548
    %v3569 = vsel %vm1727, %v3567, %v3554
    %v3570 = vsel %vm1727, %v3568, %v3556
    %v3571 = vsel %vm1730, %v3569, %v3562
    %v3572 = vsel %vm1730, %v3570, %v3564
    %s3573 = scalar_lea.vmem %s6, 32
    %v3574 = vld [vmem:[%s3573] sm:$0xff]
    %v3575 = vld [vmem:[%s3573 + $0x8] sm:$0xff]
    %v3576 = vld [vmem:[%s3573 + $0x10] sm:$0xff]
    %v3577 = vld [vmem:[%s3573 + $0x18] sm:$0xff]
    %s3578 = scalar_lea.vmem %s7, 1
    %v3579 = vld [vmem:[%s3578] sm:$0x1]
    %v3581 = vlaneseq
    %v3582 = vshrl.u32 %v3581, 7
    %v3583 = vsub.s32 0, %v3582
    %v3584 = vrot.slane %v3579, %v3583
    %v3587 = vsel %vm278, %v3571, 0
    %v3590 = vsel %vm278, %v3572, 0
    %3592 = vmatprep.subr.mxu0 0.0
    %3593 = vmatpush1.msra.mxu0 0.0
    %3594 = vmatprep.subr.mxu0 0.0
    %3595 = vmatpush1.msra.mxu0 0.0
    %3596 = vmatprep.subr.mxu0 0.0
    %3597 = vmatpush1.msra.mxu0 0.0
    %3598 = vmatprep.subr.mxu0 0.0
    %3599 = vmatpush1.msra.mxu0 0.0
    %3600 = vmatprep.subr.mxu0 0.0
    %3601 = vmatpush1.msra.mxu0 0.0
    %3602 = vmatprep.subr.mxu0 0.0
    %3603 = vmatpush1.msra.mxu0 0.0
    %3604 = vmatprep.subr.mxu0 0.0
    %3605 = vmatpush1.msra.mxu0 0.0
    %3606 = vmatprep.subr.mxu0 0.0
    %3607 = vmatpush1.msra.mxu0 0.0
    %3608 = vmatprep.subr.mxu0 0.0
    %3609 = vmatpush1.msra.mxu0 0.0
    %3610 = vmatprep.subr.mxu0 0.0
    %3611 = vmatpush1.msra.mxu0 0.0
    %3612 = vmatprep.subr.mxu0 0.0
    %3613 = vmatpush1.msra.mxu0 0.0
    %3614 = vmatprep.subr.mxu0 0.0
    %3615 = vmatpush1.msra.mxu0 0.0
    %3616 = vmatprep.subr.mxu0 0.0
    %3617 = vmatpush1.msra.mxu0 %v3577
    %3618 = vmatprep.subr.mxu0 0.0
    %3619 = vmatpush1.msra.mxu0 %v3576
    %3620 = vmatprep.subr.mxu0 0.0
    %3621 = vmatpush1.msra.mxu0 %v3575
    %3622 = vmatprep.subr.mxu0 0.0
    %3623 = vmatpush1.msra.mxu0 %v3574
    %3624 = vmatprep.subr.mxu0 0.0
    %3625 = vmatpush2.msra.mxu0 0.0
    %3626 = vmatprep.subr.mxu0 0.0
    %3627 = vmatpush2.msra.mxu0 0.0
    %3628 = vmatprep.subr.mxu0 0.0
    %3629 = vmatpush2.msra.mxu0 0.0
    %3630 = vmatprep.subr.mxu0 0.0
    %3631 = vmatpush2.msra.mxu0 0.0
    %3632 = vmatprep.subr.mxu0 0.0
    %3633 = vmatpush2.msra.mxu0 0.0
    %3634 = vmatprep.subr.mxu0 0.0
    %3635 = vmatpush2.msra.mxu0 0.0
    %3636 = vmatprep.subr.mxu0 0.0
    %3637 = vmatpush2.msra.mxu0 0.0
    %3638 = vmatprep.subr.mxu0 0.0
    %3639 = vmatpush2.msra.mxu0 0.0
    %3640 = vmatprep.subr.mxu0 0.0
    %3641 = vmatpush2.msra.mxu0 0.0
    %3642 = vmatprep.subr.mxu0 0.0
    %3643 = vmatpush2.msra.mxu0 0.0
    %3644 = vmatprep.subr.mxu0 0.0
    %3645 = vmatpush2.msra.mxu0 0.0
    %3646 = vmatprep.subr.mxu0 0.0
    %3647 = vmatpush2.msra.mxu0 0.0
    %3648 = vmatprep.subr.mxu0 0.0
    %3649 = vmatpush2.msra.mxu0 0.0
    %3650 = vmatprep.subr.mxu0 0.0
    %3651 = vmatpush2.msra.mxu0 0.0
    %3652 = vmatprep.subr.mxu0 0.0
    %3653 = vmatpush2.msra.mxu0 0.0
    %3654 = vmatprep.subr.mxu0 0.0
    %3655 = vmatpush2.msra.mxu0 0.0
    %3656 = vmatprep.mubr.f32.mxu0 0.0
    %3657 = vmatmul.mubr.f32.gmra.mxu0 %v3587
    %v3658 = vpop.f32.mrf.mxu0
    %v3659 = vadd.f32 %v3584, %v3658
    %v3660 = vpop.f32.mrf.mxu0
    %3661 = vmatprep.mubr.f32.mxu0 0.0
    %3662 = vmatmul.mubr.f32.gmra.mxu0 %v3590
    %v3663 = vpop.f32.mrf.mxu0
    %v3664 = vadd.f32 %v3584, %v3663
    %v3665 = vpop.f32.mrf.mxu0
    %3666 = vdwg.mxu0
    %v3667 = vadd.f32 %v2107, %v3659
    %v3668 = vadd.f32 %v2108, %v3664
    %s3669 = scalar_lea.vmem %s8, 1
    %v3670 = vld [vmem:[%s3669] sm:$0x1]
    %s3671 = scalar_lea.vmem [#allocation5], 1
    %v3672 = vld [vmem:[%s3671] sm:$0x1]
    %v3673 = vsel %vm278, %v3667, 0.0
    %3674 = vadd.xlane.f32.xlu0 %v3673
    %v3675 = vpop.xlane.xlu0 %3674
    %v3676 = vsel %vm278, %v3668, 0.0
    %3677 = vadd.xlane.f32.xlu0 %v3676
    %v3678 = vpop.xlane.xlu0 %3677
    %v3679 = vmul.f32 %v3675, %v1835
    %v3680 = vmul.f32 %v3678, %v1835
    %v3681 = vsub.f32 %v3667, %v3679
    %v3682 = vsub.f32 %v3668, %v3680
    %v3683 = vmul.f32 %v3681, %v3681
    %v3684 = vmul.f32 %v3682, %v3682
    %v3685 = vsel %vm278, %v3683, 0.0
    %3686 = vadd.xlane.f32.xlu0 %v3685
    %v3687 = vpop.xlane.xlu0 %3686
    %v3688 = vsel %vm278, %v3684, 0.0
    %3689 = vadd.xlane.f32.xlu0 %v3688
    %v3690 = vpop.xlane.xlu0 %3689
    %v3691 = vmul.f32 %v3687, %v1835
    %v3692 = vmul.f32 %v3690, %v1835
    %v3693 = vadd.f32 %v3691, 1e-05
    %v3694 = vadd.f32 %v3692, 1e-05
    %v3695 = vrsqrt.pop %v3693
    %v3696 = vrsqrt.pop %v3694
    %v3697 = vmul.f32 %v3681, %v3695
    %v3698 = vmul.f32 %v3682, %v3696
    %v3700 = vlaneseq
    %v3701 = vshrl.u32 %v3700, 7
    %v3702 = vsub.s32 0, %v3701
    %v3703 = vrot.slane %v3670, %v3702
    %v3705 = vmul.f32 %v3697, %v3703
    %v3706 = vmul.f32 %v3698, %v3703
    %v3708 = vlaneseq
    %v3709 = vshrl.u32 %v3708, 7
    %v3710 = vsub.s32 0, %v3709
    %v3711 = vrot.slane %v3672, %v3710
    %v3713 = vadd.f32 %v3705, %v3711
    %v3714 = vadd.f32 %v3706, %v3711
    %s3715 = scalar_lea.vmem %s10, 32
    %v3716 = vld [vmem:[%s3715] sm:$0xff]
    %v3717 = vld [vmem:[%s3715 + $0x8] sm:$0xff]
    %v3718 = vld [vmem:[%s3715 + $0x10] sm:$0xff]
    %v3719 = vld [vmem:[%s3715 + $0x18] sm:$0xff]
    %s3720 = scalar_lea.vmem [#allocation7], 1
    %v3721 = vld [vmem:[%s3720] sm:$0x1]
    %v3723 = vlaneseq
    %v3724 = vshrl.u32 %v3723, 7
    %v3725 = vsub.s32 0, %v3724
    %v3726 = vrot.slane %v3721, %v3725
    %v3729 = vsel %vm278, %v3713, 0
    %v3732 = vsel %vm278, %v3714, 0
    %3734 = vmatprep.subr.mxu0 0.0
    %3735 = vmatpush1.msra.mxu0 0.0
    %3736 = vmatprep.subr.mxu0 0.0
    %3737 = vmatpush1.msra.mxu0 0.0
    %3738 = vmatprep.subr.mxu0 0.0
    %3739 = vmatpush1.msra.mxu0 0.0
    %3740 = vmatprep.subr.mxu0 0.0
    %3741 = vmatpush1.msra.mxu0 0.0
    %3742 = vmatprep.subr.mxu0 0.0
    %3743 = vmatpush1.msra.mxu0 0.0
    %3744 = vmatprep.subr.mxu0 0.0
    %3745 = vmatpush1.msra.mxu0 0.0
    %3746 = vmatprep.subr.mxu0 0.0
    %3747 = vmatpush1.msra.mxu0 0.0
    %3748 = vmatprep.subr.mxu0 0.0
    %3749 = vmatpush1.msra.mxu0 0.0
    %3750 = vmatprep.subr.mxu0 0.0
    %3751 = vmatpush1.msra.mxu0 0.0
    %3752 = vmatprep.subr.mxu0 0.0
    %3753 = vmatpush1.msra.mxu0 0.0
    %3754 = vmatprep.subr.mxu0 0.0
    %3755 = vmatpush1.msra.mxu0 0.0
    %3756 = vmatprep.subr.mxu0 0.0
    %3757 = vmatpush1.msra.mxu0 0.0
    %3758 = vmatprep.subr.mxu0 0.0
    %3759 = vmatpush1.msra.mxu0 %v3719
    %3760 = vmatprep.subr.mxu0 0.0
    %3761 = vmatpush1.msra.mxu0 %v3718
    %3762 = vmatprep.subr.mxu0 0.0
    %3763 = vmatpush1.msra.mxu0 %v3717
    %3764 = vmatprep.subr.mxu0 0.0
    %3765 = vmatpush1.msra.mxu0 %v3716
    %3766 = vmatprep.subr.mxu0 0.0
    %3767 = vmatpush2.msra.mxu0 0.0
    %3768 = vmatprep.subr.mxu0 0.0
    %3769 = vmatpush2.msra.mxu0 0.0
    %3770 = vmatprep.subr.mxu0 0.0
    %3771 = vmatpush2.msra.mxu0 0.0
    %3772 = vmatprep.subr.mxu0 0.0
    %3773 = vmatpush2.msra.mxu0 0.0
    %3774 = vmatprep.subr.mxu0 0.0
    %3775 = vmatpush2.msra.mxu0 0.0
    %3776 = vmatprep.subr.mxu0 0.0
    %3777 = vmatpush2.msra.mxu0 0.0
    %3778 = vmatprep.subr.mxu0 0.0
    %3779 = vmatpush2.msra.mxu0 0.0
    %3780 = vmatprep.subr.mxu0 0.0
    %3781 = vmatpush2.msra.mxu0 0.0
    %3782 = vmatprep.subr.mxu0 0.0
    %3783 = vmatpush2.msra.mxu0 0.0
    %3784 = vmatprep.subr.mxu0 0.0
    %3785 = vmatpush2.msra.mxu0 0.0
    %3786 = vmatprep.subr.mxu0 0.0
    %3787 = vmatpush2.msra.mxu0 0.0
    %3788 = vmatprep.subr.mxu0 0.0
    %3789 = vmatpush2.msra.mxu0 0.0
    %3790 = vmatprep.subr.mxu0 0.0
    %3791 = vmatpush2.msra.mxu0 0.0
    %3792 = vmatprep.subr.mxu0 0.0
    %3793 = vmatpush2.msra.mxu0 0.0
    %3794 = vmatprep.subr.mxu0 0.0
    %3795 = vmatpush2.msra.mxu0 0.0
    %3796 = vmatprep.subr.mxu0 0.0
    %3797 = vmatpush2.msra.mxu0 0.0
    %3798 = vmatprep.mubr.f32.mxu0 0.0
    %3799 = vmatmul.mubr.f32.gmra.mxu0 %v3729
    %v3800 = vpop.f32.mrf.mxu0
    %v3801 = vadd.f32 %v3726, %v3800
    %v3802 = vpop.f32.mrf.mxu0
    %3803 = vmatprep.mubr.f32.mxu0 0.0
    %3804 = vmatmul.mubr.f32.gmra.mxu0 %v3732
    %v3805 = vpop.f32.mrf.mxu0
    %v3806 = vadd.f32 %v3726, %v3805
    %v3807 = vpop.f32.mrf.mxu0
    %3808 = vdwg.mxu0
    %v3809 = vmax.f32 %v3801, 0.0
    %v3810 = vmax.f32 %v3806, 0.0
    %s3811 = scalar_lea.vmem %s12, 64
    %v3812 = vld [vmem:[%s3811] sm:$0xff]
    %v3813 = vld [vmem:[%s3811 + $0x8] sm:$0xff]
    %v3814 = vld [vmem:[%s3811 + $0x10] sm:$0xff]
    %v3815 = vld [vmem:[%s3811 + $0x18] sm:$0xff]
    %v3816 = vld [vmem:[%s3811 + $0x20] sm:$0xff]
    %v3817 = vld [vmem:[%s3811 + $0x28] sm:$0xff]
    %v3818 = vld [vmem:[%s3811 + $0x30] sm:$0xff]
    %v3819 = vld [vmem:[%s3811 + $0x38] sm:$0xff]
    %s3820 = scalar_lea.vmem %s13, 1
    %v3821 = vld [vmem:[%s3820] sm:$0x1]
    %v3823 = vlaneseq
    %v3824 = vshrl.u32 %v3823, 7
    %v3825 = vsub.s32 0, %v3824
    %v3826 = vrot.slane %v3821, %v3825
    %v3829 = vsel %vm1981, %v3809, 0
    %v3832 = vsel %vm1981, %v3810, 0
    %3834 = vmatprep.subr.mxu0 0.0
    %3835 = vmatpush1.msra.mxu0 0.0
    %3836 = vmatprep.subr.mxu0 0.0
    %3837 = vmatpush1.msra.mxu0 0.0
    %3838 = vmatprep.subr.mxu0 0.0
    %3839 = vmatpush1.msra.mxu0 0.0
    %3840 = vmatprep.subr.mxu0 0.0
    %3841 = vmatpush1.msra.mxu0 0.0
    %3842 = vmatprep.subr.mxu0 0.0
    %3843 = vmatpush1.msra.mxu0 0.0
    %3844 = vmatprep.subr.mxu0 0.0
    %3845 = vmatpush1.msra.mxu0 0.0
    %3846 = vmatprep.subr.mxu0 0.0
    %3847 = vmatpush1.msra.mxu0 0.0
    %3848 = vmatprep.subr.mxu0 0.0
    %3849 = vmatpush1.msra.mxu0 0.0
    %3850 = vmatprep.subr.mxu0 0.0
    %3851 = vmatpush1.msra.mxu0 %v3819
    %3852 = vmatprep.subr.mxu0 0.0
    %3853 = vmatpush1.msra.mxu0 %v3818
    %3854 = vmatprep.subr.mxu0 0.0
    %3855 = vmatpush1.msra.mxu0 %v3817
    %3856 = vmatprep.subr.mxu0 0.0
    %3857 = vmatpush1.msra.mxu0 %v3816
    %3858 = vmatprep.subr.mxu0 0.0
    %3859 = vmatpush1.msra.mxu0 %v3815
    %3860 = vmatprep.subr.mxu0 0.0
    %3861 = vmatpush1.msra.mxu0 %v3814
    %3862 = vmatprep.subr.mxu0 0.0
    %3863 = vmatpush1.msra.mxu0 %v3813
    %3864 = vmatprep.subr.mxu0 0.0
    %3865 = vmatpush1.msra.mxu0 %v3812
    %3866 = vmatprep.subr.mxu0 0.0
    %3867 = vmatpush2.msra.mxu0 0.0
    %3868 = vmatprep.subr.mxu0 0.0
    %3869 = vmatpush2.msra.mxu0 0.0
    %3870 = vmatprep.subr.mxu0 0.0
    %3871 = vmatpush2.msra.mxu0 0.0
    %3872 = vmatprep.subr.mxu0 0.0
    %3873 = vmatpush2.msra.mxu0 0.0
    %3874 = vmatprep.subr.mxu0 0.0
    %3875 = vmatpush2.msra.mxu0 0.0
    %3876 = vmatprep.subr.mxu0 0.0
    %3877 = vmatpush2.msra.mxu0 0.0
    %3878 = vmatprep.subr.mxu0 0.0
    %3879 = vmatpush2.msra.mxu0 0.0
    %3880 = vmatprep.subr.mxu0 0.0
    %3881 = vmatpush2.msra.mxu0 0.0
    %3882 = vmatprep.subr.mxu0 0.0
    %3883 = vmatpush2.msra.mxu0 0.0
    %3884 = vmatprep.subr.mxu0 0.0
    %3885 = vmatpush2.msra.mxu0 0.0
    %3886 = vmatprep.subr.mxu0 0.0
    %3887 = vmatpush2.msra.mxu0 0.0
    %3888 = vmatprep.subr.mxu0 0.0
    %3889 = vmatpush2.msra.mxu0 0.0
    %3890 = vmatprep.subr.mxu0 0.0
    %3891 = vmatpush2.msra.mxu0 0.0
    %3892 = vmatprep.subr.mxu0 0.0
    %3893 = vmatpush2.msra.mxu0 0.0
    %3894 = vmatprep.subr.mxu0 0.0
    %3895 = vmatpush2.msra.mxu0 0.0
    %3896 = vmatprep.subr.mxu0 0.0
    %3897 = vmatpush2.msra.mxu0 0.0
    %3898 = vmatprep.mubr.f32.mxu0 0.0
    %3899 = vmatmul.mubr.f32.gmra.mxu0 %v3829
    %v3900 = vpop.f32.mrf.mxu0
    %v3901 = vadd.f32 %v3826, %v3900
    %v3902 = vpop.f32.mrf.mxu0
    %3903 = vmatprep.mubr.f32.mxu0 0.0
    %3904 = vmatmul.mubr.f32.gmra.mxu0 %v3832
    %v3905 = vpop.f32.mrf.mxu0
    %v3906 = vadd.f32 %v3826, %v3905
    %v3907 = vpop.f32.mrf.mxu0
    %3908 = vdwg.mxu0
    %v3909 = vadd.f32 %v3713, %v3901
    %v3910 = vadd.f32 %v3714, %v3906
    %s3911 = scalar_lea.vmem [#allocation8], 1
    %v3912 = vld [vmem:[%s3911] sm:$0x1]
    %s3913 = scalar_lea.vmem %s15, 1
    %v3914 = vld [vmem:[%s3913] sm:$0x1]
    %v3915 = vsel %vm278, %v3909, 0.0
    %3916 = vadd.xlane.f32.xlu0 %v3915
    %v3917 = vpop.xlane.xlu0 %3916
    %v3918 = vsel %vm278, %v3910, 0.0
    %3919 = vadd.xlane.f32.xlu0 %v3918
    %v3920 = vpop.xlane.xlu0 %3919
    %v3921 = vmul.f32 %v3917, %v1835
    %v3922 = vmul.f32 %v3920, %v1835
    %v3923 = vsub.f32 %v3909, %v3921
    %v3924 = vsub.f32 %v3910, %v3922
    %v3925 = vmul.f32 %v3923, %v3923
    %v3926 = vmul.f32 %v3924, %v3924
    %v3927 = vsel %vm278, %v3925, 0.0
    %3928 = vadd.xlane.f32.xlu0 %v3927
    %v3929 = vpop.xlane.xlu0 %3928
    %v3930 = vsel %vm278, %v3926, 0.0
    %3931 = vadd.xlane.f32.xlu0 %v3930
    %v3932 = vpop.xlane.xlu0 %3931
    %v3933 = vmul.f32 %v3929, %v1835
    %v3934 = vmul.f32 %v3932, %v1835
    %v3935 = vadd.f32 %v3933, 1e-05
    %v3936 = vadd.f32 %v3934, 1e-05
    %v3937 = vrsqrt.pop %v3935
    %v3938 = vrsqrt.pop %v3936
    %v3939 = vmul.f32 %v3923, %v3937
    %v3940 = vmul.f32 %v3924, %v3938
    %v3942 = vlaneseq
    %v3943 = vshrl.u32 %v3942, 7
    %v3944 = vsub.s32 0, %v3943
    %v3945 = vrot.slane %v3912, %v3944
    %v3947 = vmul.f32 %v3939, %v3945
    %v3948 = vmul.f32 %v3940, %v3945
    %v3950 = vlaneseq
    %v3951 = vshrl.u32 %v3950, 7
    %v3952 = vsub.s32 0, %v3951
    %v3953 = vrot.slane %v3914, %v3952
    %v3955 = vadd.f32 %v3947, %v3953
    %v3956 = vadd.f32 %v3948, %v3953
    %v3957 = vsel %vm278, %v3955, 0.0
    %v3958 = vrot.slane %v3957, 4
    %v3959 = vadd.f32 %v3957, %v3958
    %v3960 = vrot.slane %v3959, 2
    %v3961 = vadd.f32 %v3959, %v3960
    %v3962 = vrot.slane %v3961, 1
    %v3963 = vadd.f32 %v3961, %v3962
    %v3964 = vsel %vm278, %v3956, 0.0
    %v3965 = vrot.slane %v3964, 4
    %v3966 = vadd.f32 %v3964, %v3965
    %v3967 = vrot.slane %v3966, 2
    %v3968 = vadd.f32 %v3966, %v3967
    %v3969 = vrot.slane %v3968, 1
    %v3970 = vadd.f32 %v3968, %v3969
    %v3971 = vmul.f32 %v3963, 0.125
    %v3972 = vmul.f32 %v3970, 0.125
    %v3973 = vadd.f32 %v3971, %v3955
    %v3974 = vadd.f32 %v3972, %v3956
    %v3975 = vld [vmem:[#allocation10] sm:$0xff]
    %v3976 = vld [vmem:[#allocation10 + $0x8] sm:$0xff]
    %v3977 = vld [vmem:[#allocation10 + $0x10] sm:$0xff]
    %v3978 = vld [vmem:[#allocation10 + $0x18] sm:$0xff]
    %v3979 = vld [vmem:[%s17] sm:$0x1]
    %v3981 = vlaneseq
    %v3982 = vshrl.u32 %v3981, 7
    %v3983 = vsub.s32 0, %v3982
    %v3984 = vrot.slane %v3979, %v3983
    %v3988 = vrot.slane %v3973, 7
    %v3989 = vrot.slane %v3974, 6
    %vm3990 = vcmask 1041409
    %v3991 = vsel %vm3990, %v3989, %v3988
    %v3992 = vsel %vm278, %v3991, 0
    %3994 = vmatprep.subr.mxu0 0.0
    %3995 = vmatpush1.msra.mxu0 0.0
    %3996 = vmatprep.subr.mxu0 0.0
    %3997 = vmatpush1.msra.mxu0 0.0
    %3998 = vmatprep.subr.mxu0 0.0
    %3999 = vmatpush1.msra.mxu0 0.0
    %4000 = vmatprep.subr.mxu0 0.0
    %4001 = vmatpush1.msra.mxu0 0.0
    %4002 = vmatprep.subr.mxu0 0.0
    %4003 = vmatpush1.msra.mxu0 0.0
    %4004 = vmatprep.subr.mxu0 0.0
    %4005 = vmatpush1.msra.mxu0 0.0
    %4006 = vmatprep.subr.mxu0 0.0
    %4007 = vmatpush1.msra.mxu0 0.0
    %4008 = vmatprep.subr.mxu0 0.0
    %4009 = vmatpush1.msra.mxu0 0.0
    %4010 = vmatprep.subr.mxu0 0.0
    %4011 = vmatpush1.msra.mxu0 0.0
    %4012 = vmatprep.subr.mxu0 0.0
    %4013 = vmatpush1.msra.mxu0 0.0
    %4014 = vmatprep.subr.mxu0 0.0
    %4015 = vmatpush1.msra.mxu0 0.0
    %4016 = vmatprep.subr.mxu0 0.0
    %4017 = vmatpush1.msra.mxu0 0.0
    %4018 = vmatprep.subr.mxu0 0.0
    %4019 = vmatpush1.msra.mxu0 %v3978
    %4020 = vmatprep.subr.mxu0 0.0
    %4021 = vmatpush1.msra.mxu0 %v3977
    %4022 = vmatprep.subr.mxu0 0.0
    %4023 = vmatpush1.msra.mxu0 %v3976
    %4024 = vmatprep.subr.mxu0 0.0
    %4025 = vmatpush1.msra.mxu0 %v3975
    %4026 = vmatprep.subr.mxu0 0.0
    %4027 = vmatpush2.msra.mxu0 0.0
    %4028 = vmatprep.subr.mxu0 0.0
    %4029 = vmatpush2.msra.mxu0 0.0
    %4030 = vmatprep.subr.mxu0 0.0
    %4031 = vmatpush2.msra.mxu0 0.0
    %4032 = vmatprep.subr.mxu0 0.0
    %4033 = vmatpush2.msra.mxu0 0.0
    %4034 = vmatprep.subr.mxu0 0.0
    %4035 = vmatpush2.msra.mxu0 0.0
    %4036 = vmatprep.subr.mxu0 0.0
    %4037 = vmatpush2.msra.mxu0 0.0
    %4038 = vmatprep.subr.mxu0 0.0
    %4039 = vmatpush2.msra.mxu0 0.0
    %4040 = vmatprep.subr.mxu0 0.0
    %4041 = vmatpush2.msra.mxu0 0.0
    %4042 = vmatprep.subr.mxu0 0.0
    %4043 = vmatpush2.msra.mxu0 0.0
    %4044 = vmatprep.subr.mxu0 0.0
    %4045 = vmatpush2.msra.mxu0 0.0
    %4046 = vmatprep.subr.mxu0 0.0
    %4047 = vmatpush2.msra.mxu0 0.0
    %4048 = vmatprep.subr.mxu0 0.0
    %4049 = vmatpush2.msra.mxu0 0.0
    %4050 = vmatprep.subr.mxu0 0.0
    %4051 = vmatpush2.msra.mxu0 0.0
    %4052 = vmatprep.subr.mxu0 0.0
    %4053 = vmatpush2.msra.mxu0 0.0
    %4054 = vmatprep.subr.mxu0 0.0
    %4055 = vmatpush2.msra.mxu0 0.0
    %4056 = vmatprep.subr.mxu0 0.0
    %4057 = vmatpush2.msra.mxu0 0.0
    %4058 = vmatprep.mubr.f32.mxu0 0.0
    %4059 = vmatmul.mubr.f32.gmra.mxu0 %v3992
    %v4060 = vpop.f32.mrf.mxu0
    %v4061 = vadd.f32 %v3984, %v4060
    %v4062 = vpop.f32.mrf.mxu0
    %4063 = vdwg.mxu0
    %v4064 = vmax.f32 %v4061, 0.0
    %v4065 = vld [vmem:[%s18] sm:$0xff]
    %v4066 = vld [vmem:[%s18 + $0x8] sm:$0xff]
    %v4067 = vld [vmem:[%s18 + $0x10] sm:$0xff]
    %v4068 = vld [vmem:[%s18 + $0x18] sm:$0xff]
    %v4069 = vld [vmem:[#allocation2] sm:$0x1]
    %v4071 = vlaneseq
    %v4072 = vshrl.u32 %v4071, 7
    %v4073 = vsub.s32 0, %v4072
    %v4074 = vrot.slane %v4069, %v4073
    %v4077 = vsel %vm278, %v4064, 0
    %4079 = vmatprep.subr.mxu0 0.0
    %4080 = vmatpush1.msra.mxu0 0.0
    %4081 = vmatprep.subr.mxu0 0.0
    %4082 = vmatpush1.msra.mxu0 0.0
    %4083 = vmatprep.subr.mxu0 0.0
    %4084 = vmatpush1.msra.mxu0 0.0
    %4085 = vmatprep.subr.mxu0 0.0
    %4086 = vmatpush1.msra.mxu0 0.0
    %4087 = vmatprep.subr.mxu0 0.0
    %4088 = vmatpush1.msra.mxu0 0.0
    %4089 = vmatprep.subr.mxu0 0.0
    %4090 = vmatpush1.msra.mxu0 0.0
    %4091 = vmatprep.subr.mxu0 0.0
    %4092 = vmatpush1.msra.mxu0 0.0
    %4093 = vmatprep.subr.mxu0 0.0
    %4094 = vmatpush1.msra.mxu0 0.0
    %4095 = vmatprep.subr.mxu0 0.0
    %4096 = vmatpush1.msra.mxu0 0.0
    %4097 = vmatprep.subr.mxu0 0.0
    %4098 = vmatpush1.msra.mxu0 0.0
    %4099 = vmatprep.subr.mxu0 0.0
    %4100 = vmatpush1.msra.mxu0 0.0
    %4101 = vmatprep.subr.mxu0 0.0
    %4102 = vmatpush1.msra.mxu0 0.0
    %4103 = vmatprep.subr.mxu0 0.0
    %4104 = vmatpush1.msra.mxu0 %v4068
    %4105 = vmatprep.subr.mxu0 0.0
    %4106 = vmatpush1.msra.mxu0 %v4067
    %4107 = vmatprep.subr.mxu0 0.0
    %4108 = vmatpush1.msra.mxu0 %v4066
    %4109 = vmatprep.subr.mxu0 0.0
    %4110 = vmatpush1.msra.mxu0 %v4065
    %4111 = vmatprep.subr.mxu0 0.0
    %4112 = vmatpush2.msra.mxu0 0.0
    %4113 = vmatprep.subr.mxu0 0.0
    %4114 = vmatpush2.msra.mxu0 0.0
    %4115 = vmatprep.subr.mxu0 0.0
    %4116 = vmatpush2.msra.mxu0 0.0
    %4117 = vmatprep.subr.mxu0 0.0
    %4118 = vmatpush2.msra.mxu0 0.0
    %4119 = vmatprep.subr.mxu0 0.0
    %4120 = vmatpush2.msra.mxu0 0.0
    %4121 = vmatprep.subr.mxu0 0.0
    %4122 = vmatpush2.msra.mxu0 0.0
    %4123 = vmatprep.subr.mxu0 0.0
    %4124 = vmatpush2.msra.mxu0 0.0
    %4125 = vmatprep.subr.mxu0 0.0
    %4126 = vmatpush2.msra.mxu0 0.0
    %4127 = vmatprep.subr.mxu0 0.0
    %4128 = vmatpush2.msra.mxu0 0.0
    %4129 = vmatprep.subr.mxu0 0.0
    %4130 = vmatpush2.msra.mxu0 0.0
    %4131 = vmatprep.subr.mxu0 0.0
    %4132 = vmatpush2.msra.mxu0 0.0
    %4133 = vmatprep.subr.mxu0 0.0
    %4134 = vmatpush2.msra.mxu0 0.0
    %4135 = vmatprep.subr.mxu0 0.0
    %4136 = vmatpush2.msra.mxu0 0.0
    %4137 = vmatprep.subr.mxu0 0.0
    %4138 = vmatpush2.msra.mxu0 0.0
    %4139 = vmatprep.subr.mxu0 0.0
    %4140 = vmatpush2.msra.mxu0 0.0
    %4141 = vmatprep.subr.mxu0 0.0
    %4142 = vmatpush2.msra.mxu0 0.0
    %4143 = vmatprep.mubr.f32.mxu0 0.0
    %4144 = vmatmul.mubr.f32.gmra.mxu0 %v4077
    %v4145 = vpop.f32.mrf.mxu0
    %v4146 = vadd.f32 %v4074, %v4145
    %v4147 = vpop.f32.mrf.mxu0
    %4148 = vdwg.mxu0
    %vm4149 = vcmask 1024
    %4150 = vst.msk [vmem:[%s20] sm:$0x3] %vm4149, %v4146
    // Predicated region
    $region102: #{tpu_custom_call.1} parent=1 // pred_check
      _
    $region103: #{tpu_custom_call.1} parent=1 // pred_check_branch
      %4152 = sbr.rel (0) target = $region105
    $region104: #{tpu_custom_call.1} parent=1 // pred_region
      _
    $region105: #{tpu_custom_call.1} parent=1 // pred_fallthru
      _
    // Predicated region
    $region106: #{tpu_custom_call.1} parent=1 // pred_check
      _
    $region107: #{tpu_custom_call.1} parent=1 // pred_check_branch
      %4154 = sbr.rel (0) target = $region109
    $region108: #{tpu_custom_call.1} parent=1 // pred_region
      _
    $region109: #{tpu_custom_call.1} parent=1 // pred_fallthru
      _
    %4155 = vsyncpa [#allocation4], 1
    %4156 = vsyncpa [#allocation6], 1
    %4157 = vsyncpa [#allocation9], 1

</llo_original>
